<compile_context>
chip_gen: v5e
topology: v5e:2x2
jax: 0.10.0
libtpu: 0.0.40
codegen_flags: <defaults>
</compile_context>

<pallas_src>
import functools

import jax
import jax.numpy as jnp
from jax.experimental import pallas as pl
from jax.experimental.pallas import tpu as pltpu

FC_OUT = 256          # fc_output_size
IMG_OUT = 1000        # img_output_size (mobilenetv2_140 classifier width)
NUM_PRED = 6          # num_predictions
DATA_IN = 163
CONCAT = IMG_OUT + FC_OUT        # 1256
HEAD1 = CONCAT // 2              # 628
HEAD2 = CONCAT // 4              # 314

# Hardware-friendly (zero-)padded widths.
DATA_PAD = 256
IMG_PAD = 1024
HEAD1_PAD = 640
HEAD2_PAD = 320
OUT_PAD = 128                    # lane-dense output; sliced to 6 in the wrapper


def _round_up(x, m):
    return ((x + m - 1) // m) * m


def _cdiv(a, b):
    return (a + b - 1) // b


def _pad_axis(x, target, axis):
    pad = target - x.shape[axis]
    if pad <= 0:
        return x
    widths = [(0, 0)] * x.ndim
    widths[axis] = (0, pad)
    return jnp.pad(x, widths)


def _vmem_bytes(shape, dtype):
    """(8,128)/(16,128)-padded VMEM footprint of a single buffer."""
    itemsize = jnp.dtype(dtype).itemsize
    sublane = 8 * (4 // itemsize)            # 8 for f32, 16 for bf16
    if len(shape) == 1:
        lead, r, c = 1, 1, int(shape[0])
    else:
        lead = 1
        for d in shape[:-2]:
            lead *= int(d)
        r, c = int(shape[-2]), int(shape[-1])
    return lead * _round_up(max(r, 1), sublane) * _round_up(c, 128) * itemsize


def _largest_dividing_tile(hw, cap):
    """Largest multiple of 128 that divides `hw` and is <= cap."""
    ts = 128
    t = 256
    lim = min(hw, cap)
    while t <= lim:
        if hw % t == 0:
            ts = t
        t += 128
    return ts


def bigboy_kernel(inv_hw,
                  img_ref, data_ref,
                  wimg_ref, bimg_ref,
                  w1_ref, b1_ref, w2_ref, b2_ref, w3_ref, b3_ref,
                  w4i_ref, w4d_ref, b4_ref,
                  w5_ref, b5_ref,
                  w6_ref, b6_ref,
                  out_ref,
                  gap_acc):
    f32 = jnp.float32
    bf16 = jnp.bfloat16
    s = pl.program_id(1)

    # ---------------- image branch: streaming global average pool -----------
    @pl.when(s == 0)
    def _():
        gap_acc[...] = jnp.zeros_like(gap_acc)

    # [TB, C, TS] f32 tile, spatial in lanes: VPU tree-add over lane tiles plus
    # one small per-row XLU reduce, all hidden under the tile's HBM DMA.
    gap_acc[...] += jnp.sum(img_ref[...], axis=-1)                 # [TB, C]

    # ---------------- last spatial step: run the MLP stack once -------------
    @pl.when(s == pl.num_programs(1) - 1)
    def _():
        def bdot(a, w_ref):
            return jnp.dot(a.astype(bf16), w_ref[...],
                           preferred_element_type=f32)

        n_ch = gap_acc.shape[1]
        gap = gap_acc[...] * inv_hw                                # [TB, C] f32

        # Image-branch stand-in head: GAP -> linear classifier (1000 logits).
        # C is tiny (3-4), so use rank-1 VPU updates instead of a K=C matmul.
        img_feat = gap[:, 0:1] * wimg_ref[0:1, :]
        for c in range(1, n_ch):
            img_feat = img_feat + gap[:, c:c + 1] * wimg_ref[c:c + 1, :]
        img_feat = img_feat + bimg_ref[...]                        # [TB, 1024]

        # FC branch: 163(pad 256) -> 256 -> 256 -> 256. Dropout = identity.
        h = jnp.maximum(bdot(data_ref[...], w1_ref) + b1_ref[...], 0.0)
        h = jnp.maximum(bdot(h, w2_ref) + b2_ref[...], 0.0)
        h = jnp.maximum(bdot(h, w3_ref) + b3_ref[...], 0.0)        # [TB, 256]

        # linear_head over concat([img_feat, h]) without materializing concat.
        z = bdot(img_feat, w4i_ref) + bdot(h, w4d_ref) + b4_ref[...]
        z = jnp.maximum(z, 0.0)                                    # [TB, 640]
        z = jnp.maximum(bdot(z, w5_ref) + b5_ref[...], 0.0)        # [TB, 320]
        out_ref[...] = (bdot(z, w6_ref) + b6_ref[...]).astype(out_ref.dtype)


def bigboy_forward(img, data, params):
    """img: [B, C, H, W] float32 (NCHW); data: [B, 163] float32 -> [B, 6] f32."""
    B, C, H, W = img.shape
    HW = H * W
    f32, bf16 = jnp.float32, jnp.bfloat16

    # ---- per-generation caps (conservative default = v7x's 64 MiB VMEM) ----
    try:
        vmem_cap = int(pltpu.get_tpu_info().vmem_capacity_bytes)
    except Exception:
        vmem_cap = 64 << 20
    if vmem_cap > (64 << 20):                 # v5e / v6e: 128 MiB physical VMEM
        tile_cap, limit_cap = 12 << 20, 96 << 20
    else:                                     # v7x: 64 MiB per TensorCore
        tile_cap, limit_cap = 6 << 20, 48 << 20

    # ---- batch tiling: >= 2 "parallel" tiles when B is large enough --------
    if B <= 8:
        TB = 8
    else:
        TB = min(64, _round_up(_cdiv(B, 2), 8))
    n_bt = _cdiv(B, TB)
    B_pad = n_bt * TB

    # ---- image: native [B, C, HW] f32 stream (reshape is a view) -----------
    img3 = img.reshape(B, C, HW).astype(f32)
    C_sub = _round_up(C, 8)

    # Spatial tile: multiple of 128 in lanes, dividing HW, under the VMEM cap.
    ts_cap = max(128, (tile_cap // (TB * C_sub * 4)) // 128 * 128)
    if HW % 128 == 0:
        HW_pad = HW
        TS = _largest_dividing_tile(HW_pad, ts_cap)
    elif HW * TB * C_sub * 4 <= tile_cap:
        HW_pad, TS = HW, HW                   # single full-extent spatial tile
    else:
        # Rare fallback (large HW not a multiple of 128): zero-pad HW once.
        # Zeros are inert for the GAP sum (we divide by the true HW).
        HW_pad = _round_up(HW, 128)
        img3 = _pad_axis(img3, HW_pad, 2)
        TS = _largest_dividing_tile(HW_pad, ts_cap)
    n_st = HW_pad // TS

    if B < TB:
        # Tiny batch: cheap zero-pad so the single batch block is fully in-bounds.
        img3 = _pad_axis(img3, TB, 0)
    # For B >= TB a non-dividing batch leaves a standard partial last block:
    # out-of-bounds rows read unspecified data that only feeds discarded rows.

    data_p = _pad_axis(_pad_axis(data.astype(f32), B_pad, 0), DATA_PAD, 1)

    (wimg, bimg, w1, b1, w2, b2, w3, b3,
     w4i, w4d, b4, w5, b5, w6, b6) = params
    weights = (
        _pad_axis(wimg, IMG_PAD, 1).astype(f32),     # tiny; f32 rank-1 head
        _pad_axis(bimg, IMG_PAD, 1).astype(f32),
        _pad_axis(w1, DATA_PAD, 0).astype(bf16),
        b1.astype(f32),
        w2.astype(bf16), b2.astype(f32),
        w3.astype(bf16), b3.astype(f32),
        _pad_axis(_pad_axis(w4i, IMG_PAD, 0), HEAD1_PAD, 1).astype(bf16),
        _pad_axis(w4d, HEAD1_PAD, 1).astype(bf16),
        _pad_axis(b4, HEAD1_PAD, 1).astype(f32),
        _pad_axis(_pad_axis(w5, HEAD1_PAD, 0), HEAD2_PAD, 1).astype(bf16),
        _pad_axis(b5, HEAD2_PAD, 1).astype(f32),
        _pad_axis(_pad_axis(w6, HEAD2_PAD, 0), OUT_PAD, 1).astype(bf16),
        _pad_axis(b6, OUT_PAD, 1).astype(f32),
    )

    grid = (n_bt, n_st)

    def resident(a):
        return pl.BlockSpec(a.shape, lambda b, s: (0, 0))   # weights stay resident

    in_specs = ([pl.BlockSpec((TB, C, TS), lambda b, s: (b, 0, s)),
                 pl.BlockSpec((TB, DATA_PAD), lambda b, s: (b, 0))]
                + [resident(w) for w in weights])
    out_specs = pl.BlockSpec((TB, OUT_PAD), lambda b, s: (b, 0))

    # VMEM budget from (8,128)/(16,128)-padded footprints, double-buffered,
    # plus headroom; capped per generation.
    dbl = 2 * (sum(_vmem_bytes(w.shape, w.dtype) for w in weights)
               + _vmem_bytes((TB, C, TS), f32)
               + _vmem_bytes((TB, DATA_PAD), f32)
               + _vmem_bytes((TB, OUT_PAD), f32))
    vmem_limit = int(min(dbl + _vmem_bytes((TB, C), f32) + (8 << 20), limit_cap))

    out = pl.pallas_call(
        functools.partial(bigboy_kernel, 1.0 / HW),
        out_shape=jax.ShapeDtypeStruct((B_pad, OUT_PAD), f32),
        grid_spec=pltpu.PrefetchScalarGridSpec(
            num_scalar_prefetch=0,
            grid=grid,
            in_specs=in_specs,
            out_specs=out_specs,
            scratch_shapes=[pltpu.VMEM((TB, C), f32)],
        ),
        compiler_params=pltpu.CompilerParams(
            dimension_semantics=("parallel", "arbitrary"),
            vmem_limit_bytes=vmem_limit,
        ),
    )(img3, data_p, *weights)
    return out[:B, :NUM_PRED]


def init_params(key, img_channels):
    """Deterministic PyTorch-Linear-style init: U(-1/sqrt(fan_in), 1/sqrt(fan_in))."""
    def linear(k, fan_in, fan_out):
        kw, kb = jax.random.split(k)
        bound = 1.0 / jnp.sqrt(jnp.float32(fan_in))
        w = jax.random.uniform(kw, (fan_in, fan_out), jnp.float32, -bound, bound)
        b = jax.random.uniform(kb, (1, fan_out), jnp.float32, -bound, bound)
        return w, b

    keys = jax.random.split(key, 7)
    wimg, bimg = linear(keys[0], img_channels, IMG_OUT)    # image-branch stand-in
    w1, b1 = linear(keys[1], DATA_IN, 256)                 # FC.linear[0]
    w2, b2 = linear(keys[2], 256, 256)                     # FC.linear[3]
    w3, b3 = linear(keys[3], 256, FC_OUT)                  # FC.linear[6]
    w4, b4 = linear(keys[4], CONCAT, HEAD1)                # linear_head[0]
    w4i, w4d = w4[:IMG_OUT, :], w4[IMG_OUT:, :]            # split along concat axis
    w5, b5 = linear(keys[5], HEAD1, HEAD2)                 # linear_head[3]
    w6, b6 = linear(keys[6], HEAD2, NUM_PRED)              # linear_head[6]
    return (wimg, bimg, w1, b1, w2, b2, w3, b3,
            w4i, w4d, b4, w5, b5, w6, b6)


def reference_forward(img, data, params):
    """Pure-JAX reference matching the kernel's precision: full-f32 GAP + image
    head, bf16 operand / f32 accumulation for the MLP matmuls."""
    (wimg, bimg, w1, b1, w2, b2, w3, b3,
     w4i, w4d, b4, w5, b5, w6, b6) = params
    bf16, f32 = jnp.bfloat16, jnp.float32

    def q(x):
        return x.astype(bf16).astype(f32)

    def bdot(a, w):
        return jnp.dot(q(a), q(w))

    B, C, H, W = img.shape
    gap = jnp.sum(img.astype(f32).reshape(B, C, H * W), axis=-1) * (1.0 / (H * W))
    img_feat = jnp.dot(gap, wimg, precision=jax.lax.Precision.HIGHEST) + bimg
    h = jnp.maximum(bdot(data, w1) + b1, 0.0)
    h = jnp.maximum(bdot(h, w2) + b2, 0.0)
    h = jnp.maximum(bdot(h, w3) + b3, 0.0)
    z = jnp.maximum(bdot(img_feat, w4i) + bdot(h, w4d) + b4, 0.0)
    z = jnp.maximum(bdot(z, w5) + b5, 0.0)
    return bdot(z, w6) + b6


if __name__ == "__main__":
    key = jax.random.PRNGKey(0)
    k_img, k_data, k_param = jax.random.split(key, 3)

    B, C, Hs, Ws = 2, 4, 16, 16        # small synthetic shapes (NCHW)
    img = jax.random.normal(k_img, (B, C, Hs, Ws), jnp.float32)
    data = jax.random.normal(k_data, (B, DATA_IN), jnp.float32)
    params = init_params(k_param, C)

    out = jax.block_until_ready(bigboy_forward(img, data, params))

    ref = reference_forward(img, data, params)
    assert out.shape == (B, NUM_PRED), out.shape
    assert jnp.allclose(out, ref, atol=3e-2, rtol=3e-2), (out, ref)

    print("KERNEL_OK")
</pallas_src>

<mosaic_0001>
module attributes {stable_mosaic.version = 11 : i64} {
  func.func @bigboy_kernel(%arg0: i32, %arg1: i32, %arg2: memref<8x4x256xf32, #tpu.memory_space<vmem>>, %arg3: memref<8x256xf32, #tpu.memory_space<vmem>>, %arg4: memref<4x1024xf32, #tpu.memory_space<vmem>>, %arg5: memref<1x1024xf32, #tpu.memory_space<vmem>>, %arg6: memref<256x256xbf16, #tpu.memory_space<vmem>>, %arg7: memref<1x256xf32, #tpu.memory_space<vmem>>, %arg8: memref<256x256xbf16, #tpu.memory_space<vmem>>, %arg9: memref<1x256xf32, #tpu.memory_space<vmem>>, %arg10: memref<256x256xbf16, #tpu.memory_space<vmem>>, %arg11: memref<1x256xf32, #tpu.memory_space<vmem>>, %arg12: memref<1024x640xbf16, #tpu.memory_space<vmem>>, %arg13: memref<256x640xbf16, #tpu.memory_space<vmem>>, %arg14: memref<1x640xf32, #tpu.memory_space<vmem>>, %arg15: memref<640x320xbf16, #tpu.memory_space<vmem>>, %arg16: memref<1x320xf32, #tpu.memory_space<vmem>>, %arg17: memref<320x128xbf16, #tpu.memory_space<vmem>>, %arg18: memref<1x128xf32, #tpu.memory_space<vmem>>, %arg19: memref<8x128xf32, #tpu.memory_space<vmem>>, %arg20: memref<8x4xf32, #tpu.memory_space<vmem>>) attributes {dimension_semantics = [#tpu.dimension_semantics<parallel>, #tpu.dimension_semantics<arbitrary>], iteration_bounds = array<i64: 1, 1>, scalar_prefetch = 0 : i64, scratch_operands = 1 : i64, tpu.core_type = #tpu.core_type<tc>, window_params = [{transform_indices = @transform_0, window_bounds = array<i64: 8, 4, 256>}, {transform_indices = @transform_1, window_bounds = array<i64: 8, 256>}, {pipeline_mode = #tpu.pipeline_mode<synchronous>, transform_indices = @transform_2, window_bounds = array<i64: 4, 1024>}, {pipeline_mode = #tpu.pipeline_mode<synchronous>, transform_indices = @transform_3, window_bounds = array<i64: 1, 1024>}, {pipeline_mode = #tpu.pipeline_mode<synchronous>, transform_indices = @transform_4, window_bounds = array<i64: 256, 256>}, {pipeline_mode = #tpu.pipeline_mode<synchronous>, transform_indices = @transform_5, window_bounds = array<i64: 1, 256>}, {pipeline_mode = #tpu.pipeline_mode<synchronous>, transform_indices = @transform_6, window_bounds = array<i64: 256, 256>}, {pipeline_mode = #tpu.pipeline_mode<synchronous>, transform_indices = @transform_7, window_bounds = array<i64: 1, 256>}, {pipeline_mode = #tpu.pipeline_mode<synchronous>, transform_indices = @transform_8, window_bounds = array<i64: 256, 256>}, {pipeline_mode = #tpu.pipeline_mode<synchronous>, transform_indices = @transform_9, window_bounds = array<i64: 1, 256>}, {pipeline_mode = #tpu.pipeline_mode<synchronous>, transform_indices = @transform_10, window_bounds = array<i64: 1024, 640>}, {pipeline_mode = #tpu.pipeline_mode<synchronous>, transform_indices = @transform_11, window_bounds = array<i64: 256, 640>}, {pipeline_mode = #tpu.pipeline_mode<synchronous>, transform_indices = @transform_12, window_bounds = array<i64: 1, 640>}, {pipeline_mode = #tpu.pipeline_mode<synchronous>, transform_indices = @transform_13, window_bounds = array<i64: 640, 320>}, {pipeline_mode = #tpu.pipeline_mode<synchronous>, transform_indices = @transform_14, window_bounds = array<i64: 1, 320>}, {pipeline_mode = #tpu.pipeline_mode<synchronous>, transform_indices = @transform_15, window_bounds = array<i64: 320, 128>}, {pipeline_mode = #tpu.pipeline_mode<synchronous>, transform_indices = @transform_16, window_bounds = array<i64: 1, 128>}, {transform_indices = @transform_17, window_bounds = array<i64: 8, 128>}]} {
    %c0_i32 = arith.constant 0 : i32
    %0 = arith.cmpi eq, %arg1, %c0_i32 : i32
    %1 = arith.extui %0 : i1 to i32
    %c0_i32_0 = arith.constant 0 : i32
    %2 = arith.cmpi ne, %1, %c0_i32_0 : i32
    scf.if %2 {
      %cst_9 = arith.constant 0.000000e+00 : f32
      %11 = vector.broadcast %cst_9 : f32 to vector<8x4xf32>
      %c0_10 = arith.constant 0 : index
      %c0_11 = arith.constant 0 : index
      %12 = vector.load %arg20[%c0_10, %c0_11] : memref<8x4xf32, #tpu.memory_space<vmem>>, vector<8x4xf32>
      tpu.vector_store %arg20[%c0_10, %c0_11], %11 {strides = array<i32>} : memref<8x4xf32, #tpu.memory_space<vmem>>, vector<8x4xf32>,
    } else {
    }
    %c0 = arith.constant 0 : index
    %c0_1 = arith.constant 0 : index
    %3 = vector.load %arg20[%c0, %c0_1] : memref<8x4xf32, #tpu.memory_space<vmem>>, vector<8x4xf32>
    %c0_2 = arith.constant 0 : index
    %c0_3 = arith.constant 0 : index
    %c0_4 = arith.constant 0 : index
    %4 = vector.load %arg2[%c0_2, %c0_3, %c0_4] : memref<8x4x256xf32, #tpu.memory_space<vmem>>, vector<8x4x256xf32>
    %cst = arith.constant dense<0.000000e+00> : vector<8x4xf32>
    %5 = vector.multi_reduction <add>, %4, %cst [2] : vector<8x4x256xf32> to vector<8x4xf32>
    %6 = arith.addf %3, %5 : vector<8x4xf32>
    %c0_5 = arith.constant 0 : index
    %c0_6 = arith.constant 0 : index
    %7 = vector.load %arg20[%c0_5, %c0_6] : memref<8x4xf32, #tpu.memory_space<vmem>>, vector<8x4xf32>
    tpu.vector_store %arg20[%c0_5, %c0_6], %6 {strides = array<i32>} : memref<8x4xf32, #tpu.memory_space<vmem>>, vector<8x4xf32>,
    %c0_i32_7 = arith.constant 0 : i32
    %8 = arith.cmpi eq, %arg1, %c0_i32_7 : i32
    %9 = arith.extui %8 : i1 to i32
    %c0_i32_8 = arith.constant 0 : i32
    %10 = arith.cmpi ne, %9, %c0_i32_8 : i32
    scf.if %10 {
      %c0_9 = arith.constant 0 : index
      %c0_10 = arith.constant 0 : index
      %11 = vector.load %arg20[%c0_9, %c0_10] : memref<8x4xf32, #tpu.memory_space<vmem>>, vector<8x4xf32>
      %cst_11 = arith.constant 3.906250e-03 : f32
      %12 = vector.broadcast %cst_11 : f32 to vector<8x4xf32>
      %13 = arith.mulf %11, %12 : vector<8x4xf32>
      %14 = vector.extract_strided_slice %13 {offsets = [0, 0], sizes = [8, 1], strides = [1, 1]} : vector<8x4xf32> to vector<8x1xf32>
      %c0_12 = arith.constant 0 : index
      %c0_13 = arith.constant 0 : index
      %15 = vector.load %arg4[%c0_12, %c0_13] : memref<4x1024xf32, #tpu.memory_space<vmem>>, vector<1x1024xf32>
      %16 = vector.broadcast %14 : vector<8x1xf32> to vector<8x1024xf32>
      %17 = vector.broadcast %15 : vector<1x1024xf32> to vector<8x1024xf32>
      %18 = arith.mulf %16, %17 : vector<8x1024xf32>
      %19 = vector.extract_strided_slice %13 {offsets = [0, 1], sizes = [8, 1], strides = [1, 1]} : vector<8x4xf32> to vector<8x1xf32>
      %c1 = arith.constant 1 : index
      %c0_14 = arith.constant 0 : index
      %20 = vector.load %arg4[%c1, %c0_14] : memref<4x1024xf32, #tpu.memory_space<vmem>>, vector<1x1024xf32>
      %21 = vector.broadcast %19 : vector<8x1xf32> to vector<8x1024xf32>
      %22 = vector.broadcast %20 : vector<1x1024xf32> to vector<8x1024xf32>
      %23 = arith.mulf %21, %22 : vector<8x1024xf32>
      %24 = arith.addf %18, %23 : vector<8x1024xf32>
      %25 = vector.extract_strided_slice %13 {offsets = [0, 2], sizes = [8, 1], strides = [1, 1]} : vector<8x4xf32> to vector<8x1xf32>
      %c2 = arith.constant 2 : index
      %c0_15 = arith.constant 0 : index
      %26 = vector.load %arg4[%c2, %c0_15] : memref<4x1024xf32, #tpu.memory_space<vmem>>, vector<1x1024xf32>
      %27 = vector.broadcast %25 : vector<8x1xf32> to vector<8x1024xf32>
      %28 = vector.broadcast %26 : vector<1x1024xf32> to vector<8x1024xf32>
      %29 = arith.mulf %27, %28 : vector<8x1024xf32>
      %30 = arith.addf %24, %29 : vector<8x1024xf32>
      %31 = vector.extract_strided_slice %13 {offsets = [0, 3], sizes = [8, 1], strides = [1, 1]} : vector<8x4xf32> to vector<8x1xf32>
      %c3 = arith.constant 3 : index
      %c0_16 = arith.constant 0 : index
      %32 = vector.load %arg4[%c3, %c0_16] : memref<4x1024xf32, #tpu.memory_space<vmem>>, vector<1x1024xf32>
      %33 = vector.broadcast %31 : vector<8x1xf32> to vector<8x1024xf32>
      %34 = vector.broadcast %32 : vector<1x1024xf32> to vector<8x1024xf32>
      %35 = arith.mulf %33, %34 : vector<8x1024xf32>
      %36 = arith.addf %30, %35 : vector<8x1024xf32>
      %c0_17 = arith.constant 0 : index
      %c0_18 = arith.constant 0 : index
      %37 = vector.load %arg5[%c0_17, %c0_18] : memref<1x1024xf32, #tpu.memory_space<vmem>>, vector<1x1024xf32>
      %38 = vector.broadcast %37 : vector<1x1024xf32> to vector<8x1024xf32>
      %39 = arith.addf %36, %38 : vector<8x1024xf32>
      %c0_19 = arith.constant 0 : index
      %c0_20 = arith.constant 0 : index
      %40 = vector.load %arg3[%c0_19, %c0_20] : memref<8x256xf32, #tpu.memory_space<vmem>>, vector<8x256xf32>
      %41 = arith.truncf %40 : vector<8x256xf32> to vector<8x256xbf16>
      %c0_21 = arith.constant 0 : index
      %c0_22 = arith.constant 0 : index
      %42 = vector.load %arg6[%c0_21, %c0_22] : memref<256x256xbf16, #tpu.memory_space<vmem>>, vector<256x256xbf16>
      %cst_23 = arith.constant dense<0.000000e+00> : vector<8x256xf32>
      %43 = tpu.matmul %41, %42, %cst_23 {dimension_numbers = #tpu.dot_dimension_numbers<[1], [0], [0], [1], [0, 0, 1, 1], [], []>} : vector<8x256xbf16>, vector<256x256xbf16>, vector<8x256xf32> -> vector<8x256xf32>
      %c0_24 = arith.constant 0 : index
      %c0_25 = arith.constant 0 : index
      %44 = vector.load %arg7[%c0_24, %c0_25] : memref<1x256xf32, #tpu.memory_space<vmem>>, vector<1x256xf32>
      %45 = vector.broadcast %44 : vector<1x256xf32> to vector<8x256xf32>
      %46 = arith.addf %43, %45 : vector<8x256xf32>
      %cst_26 = arith.constant 0.000000e+00 : f32
      %47 = vector.broadcast %cst_26 : f32 to vector<8x256xf32>
      %48 = arith.maximumf %46, %47 : vector<8x256xf32>
      %49 = arith.truncf %48 : vector<8x256xf32> to vector<8x256xbf16>
      %c0_27 = arith.constant 0 : index
      %c0_28 = arith.constant 0 : index
      %50 = vector.load %arg8[%c0_27, %c0_28] : memref<256x256xbf16, #tpu.memory_space<vmem>>, vector<256x256xbf16>
      %cst_29 = arith.constant dense<0.000000e+00> : vector<8x256xf32>
      %51 = tpu.matmul %49, %50, %cst_29 {dimension_numbers = #tpu.dot_dimension_numbers<[1], [0], [0], [1], [0, 0, 1, 1], [], []>} : vector<8x256xbf16>, vector<256x256xbf16>, vector<8x256xf32> -> vector<8x256xf32>
      %c0_30 = arith.constant 0 : index
      %c0_31 = arith.constant 0 : index
      %52 = vector.load %arg9[%c0_30, %c0_31] : memref<1x256xf32, #tpu.memory_space<vmem>>, vector<1x256xf32>
      %53 = vector.broadcast %52 : vector<1x256xf32> to vector<8x256xf32>
      %54 = arith.addf %51, %53 : vector<8x256xf32>
      %cst_32 = arith.constant 0.000000e+00 : f32
      %55 = vector.broadcast %cst_32 : f32 to vector<8x256xf32>
      %56 = arith.maximumf %54, %55 : vector<8x256xf32>
      %57 = arith.truncf %56 : vector<8x256xf32> to vector<8x256xbf16>
      %c0_33 = arith.constant 0 : index
      %c0_34 = arith.constant 0 : index
      %58 = vector.load %arg10[%c0_33, %c0_34] : memref<256x256xbf16, #tpu.memory_space<vmem>>, vector<256x256xbf16>
      %cst_35 = arith.constant dense<0.000000e+00> : vector<8x256xf32>
      %59 = tpu.matmul %57, %58, %cst_35 {dimension_numbers = #tpu.dot_dimension_numbers<[1], [0], [0], [1], [0, 0, 1, 1], [], []>} : vector<8x256xbf16>, vector<256x256xbf16>, vector<8x256xf32> -> vector<8x256xf32>
      %c0_36 = arith.constant 0 : index
      %c0_37 = arith.constant 0 : index
      %60 = vector.load %arg11[%c0_36, %c0_37] : memref<1x256xf32, #tpu.memory_space<vmem>>, vector<1x256xf32>
      %61 = vector.broadcast %60 : vector<1x256xf32> to vector<8x256xf32>
      %62 = arith.addf %59, %61 : vector<8x256xf32>
      %cst_38 = arith.constant 0.000000e+00 : f32
      %63 = vector.broadcast %cst_38 : f32 to vector<8x256xf32>
      %64 = arith.maximumf %62, %63 : vector<8x256xf32>
      %65 = arith.truncf %39 : vector<8x1024xf32> to vector<8x1024xbf16>
      %c0_39 = arith.constant 0 : index
      %c0_40 = arith.constant 0 : index
      %66 = vector.load %arg12[%c0_39, %c0_40] : memref<1024x640xbf16, #tpu.memory_space<vmem>>, vector<1024x640xbf16>
      %cst_41 = arith.constant dense<0.000000e+00> : vector<8x640xf32>
      %67 = tpu.matmul %65, %66, %cst_41 {dimension_numbers = #tpu.dot_dimension_numbers<[1], [0], [0], [1], [0, 0, 1, 1], [], []>} : vector<8x1024xbf16>, vector<1024x640xbf16>, vector<8x640xf32> -> vector<8x640xf32>
      %68 = arith.truncf %64 : vector<8x256xf32> to vector<8x256xbf16>
      %c0_42 = arith.constant 0 : index
      %c0_43 = arith.constant 0 : index
      %69 = vector.load %arg13[%c0_42, %c0_43] : memref<256x640xbf16, #tpu.memory_space<vmem>>, vector<256x640xbf16>
      %cst_44 = arith.constant dense<0.000000e+00> : vector<8x640xf32>
      %70 = tpu.matmul %68, %69, %cst_44 {dimension_numbers = #tpu.dot_dimension_numbers<[1], [0], [0], [1], [0, 0, 1, 1], [], []>} : vector<8x256xbf16>, vector<256x640xbf16>, vector<8x640xf32> -> vector<8x640xf32>
      %71 = arith.addf %67, %70 : vector<8x640xf32>
      %c0_45 = arith.constant 0 : index
      %c0_46 = arith.constant 0 : index
      %72 = vector.load %arg14[%c0_45, %c0_46] : memref<1x640xf32, #tpu.memory_space<vmem>>, vector<1x640xf32>
      %73 = vector.broadcast %72 : vector<1x640xf32> to vector<8x640xf32>
      %74 = arith.addf %71, %73 : vector<8x640xf32>
      %cst_47 = arith.constant 0.000000e+00 : f32
      %75 = vector.broadcast %cst_47 : f32 to vector<8x640xf32>
      %76 = arith.maximumf %74, %75 : vector<8x640xf32>
      %77 = arith.truncf %76 : vector<8x640xf32> to vector<8x640xbf16>
      %c0_48 = arith.constant 0 : index
      %c0_49 = arith.constant 0 : index
      %78 = vector.load %arg15[%c0_48, %c0_49] : memref<640x320xbf16, #tpu.memory_space<vmem>>, vector<640x320xbf16>
      %cst_50 = arith.constant dense<0.000000e+00> : vector<8x320xf32>
      %79 = tpu.matmul %77, %78, %cst_50 {dimension_numbers = #tpu.dot_dimension_numbers<[1], [0], [0], [1], [0, 0, 1, 1], [], []>} : vector<8x640xbf16>, vector<640x320xbf16>, vector<8x320xf32> -> vector<8x320xf32>
      %c0_51 = arith.constant 0 : index
      %c0_52 = arith.constant 0 : index
      %80 = vector.load %arg16[%c0_51, %c0_52] : memref<1x320xf32, #tpu.memory_space<vmem>>, vector<1x320xf32>
      %81 = vector.broadcast %80 : vector<1x320xf32> to vector<8x320xf32>
      %82 = arith.addf %79, %81 : vector<8x320xf32>
      %cst_53 = arith.constant 0.000000e+00 : f32
      %83 = vector.broadcast %cst_53 : f32 to vector<8x320xf32>
      %84 = arith.maximumf %82, %83 : vector<8x320xf32>
      %85 = arith.truncf %84 : vector<8x320xf32> to vector<8x320xbf16>
      %c0_54 = arith.constant 0 : index
      %c0_55 = arith.constant 0 : index
      %86 = vector.load %arg17[%c0_54, %c0_55] : memref<320x128xbf16, #tpu.memory_space<vmem>>, vector<320x128xbf16>
      %cst_56 = arith.constant dense<0.000000e+00> : vector<8x128xf32>
      %87 = tpu.matmul %85, %86, %cst_56 {dimension_numbers = #tpu.dot_dimension_numbers<[1], [0], [0], [1], [0, 0, 1, 1], [], []>} : vector<8x320xbf16>, vector<320x128xbf16>, vector<8x128xf32> -> vector<8x128xf32>
      %c0_57 = arith.constant 0 : index
      %c0_58 = arith.constant 0 : index
      %88 = vector.load %arg18[%c0_57, %c0_58] : memref<1x128xf32, #tpu.memory_space<vmem>>, vector<1x128xf32>
      %89 = vector.broadcast %88 : vector<1x128xf32> to vector<8x128xf32>
      %90 = arith.addf %87, %89 : vector<8x128xf32>
      %c0_59 = arith.constant 0 : index
      %c0_60 = arith.constant 0 : index
      %91 = vector.load %arg19[%c0_59, %c0_60] : memref<8x128xf32, #tpu.memory_space<vmem>>, vector<8x128xf32>
      tpu.vector_store %arg19[%c0_59, %c0_60], %90 {strides = array<i32>} : memref<8x128xf32, #tpu.memory_space<vmem>>, vector<8x128xf32>,
    } else {
    }
    return
  }
  func.func @transform_0(%arg0: i32, %arg1: i32) -> (i32, i32, i32) {
    %c0_i32 = arith.constant 0 : i32
    %c0_i32_0 = arith.constant 0 : i32
    return %arg0, %c0_i32, %arg1 : i32, i32, i32
  }
  func.func @transform_1(%arg0: i32, %arg1: i32) -> (i32, i32) {
    %c0_i32 = arith.constant 0 : i32
    %c0_i32_0 = arith.constant 0 : i32
    return %arg0, %c0_i32 : i32, i32
  }
  func.func @transform_2(%arg0: i32, %arg1: i32) -> (i32, i32) {
    %c0_i32 = arith.constant 0 : i32
    %c0_i32_0 = arith.constant 0 : i32
    %c0_i32_1 = arith.constant 0 : i32
    return %c0_i32, %c0_i32_0 : i32, i32
  }
  func.func @transform_3(%arg0: i32, %arg1: i32) -> (i32, i32) {
    %c0_i32 = arith.constant 0 : i32
    %c0_i32_0 = arith.constant 0 : i32
    %c0_i32_1 = arith.constant 0 : i32
    return %c0_i32, %c0_i32_0 : i32, i32
  }
  func.func @transform_4(%arg0: i32, %arg1: i32) -> (i32, i32) {
    %c0_i32 = arith.constant 0 : i32
    %c0_i32_0 = arith.constant 0 : i32
    %c0_i32_1 = arith.constant 0 : i32
    return %c0_i32, %c0_i32_0 : i32, i32
  }
  func.func @transform_5(%arg0: i32, %arg1: i32) -> (i32, i32) {
    %c0_i32 = arith.constant 0 : i32
    %c0_i32_0 = arith.constant 0 : i32
    %c0_i32_1 = arith.constant 0 : i32
    return %c0_i32, %c0_i32_0 : i32, i32
  }
  func.func @transform_6(%arg0: i32, %arg1: i32) -> (i32, i32) {
    %c0_i32 = arith.constant 0 : i32
    %c0_i32_0 = arith.constant 0 : i32
    %c0_i32_1 = arith.constant 0 : i32
    return %c0_i32, %c0_i32_0 : i32, i32
  }
  func.func @transform_7(%arg0: i32, %arg1: i32) -> (i32, i32) {
    %c0_i32 = arith.constant 0 : i32
    %c0_i32_0 = arith.constant 0 : i32
    %c0_i32_1 = arith.constant 0 : i32
    return %c0_i32, %c0_i32_0 : i32, i32
  }
  func.func @transform_8(%arg0: i32, %arg1: i32) -> (i32, i32) {
    %c0_i32 = arith.constant 0 : i32
    %c0_i32_0 = arith.constant 0 : i32
    %c0_i32_1 = arith.constant 0 : i32
    return %c0_i32, %c0_i32_0 : i32, i32
  }
  func.func @transform_9(%arg0: i32, %arg1: i32) -> (i32, i32) {
    %c0_i32 = arith.constant 0 : i32
    %c0_i32_0 = arith.constant 0 : i32
    %c0_i32_1 = arith.constant 0 : i32
    return %c0_i32, %c0_i32_0 : i32, i32
  }
  func.func @transform_10(%arg0: i32, %arg1: i32) -> (i32, i32) {
    %c0_i32 = arith.constant 0 : i32
    %c0_i32_0 = arith.constant 0 : i32
    %c0_i32_1 = arith.constant 0 : i32
    return %c0_i32, %c0_i32_0 : i32, i32
  }
  func.func @transform_11(%arg0: i32, %arg1: i32) -> (i32, i32) {
    %c0_i32 = arith.constant 0 : i32
    %c0_i32_0 = arith.constant 0 : i32
    %c0_i32_1 = arith.constant 0 : i32
    return %c0_i32, %c0_i32_0 : i32, i32
  }
  func.func @transform_12(%arg0: i32, %arg1: i32) -> (i32, i32) {
    %c0_i32 = arith.constant 0 : i32
    %c0_i32_0 = arith.constant 0 : i32
    %c0_i32_1 = arith.constant 0 : i32
    return %c0_i32, %c0_i32_0 : i32, i32
  }
  func.func @transform_13(%arg0: i32, %arg1: i32) -> (i32, i32) {
    %c0_i32 = arith.constant 0 : i32
    %c0_i32_0 = arith.constant 0 : i32
    %c0_i32_1 = arith.constant 0 : i32
    return %c0_i32, %c0_i32_0 : i32, i32
  }
  func.func @transform_14(%arg0: i32, %arg1: i32) -> (i32, i32) {
    %c0_i32 = arith.constant 0 : i32
    %c0_i32_0 = arith.constant 0 : i32
    %c0_i32_1 = arith.constant 0 : i32
    return %c0_i32, %c0_i32_0 : i32, i32
  }
  func.func @transform_15(%arg0: i32, %arg1: i32) -> (i32, i32) {
    %c0_i32 = arith.constant 0 : i32
    %c0_i32_0 = arith.constant 0 : i32
    %c0_i32_1 = arith.constant 0 : i32
    return %c0_i32, %c0_i32_0 : i32, i32
  }
  func.func @transform_16(%arg0: i32, %arg1: i32) -> (i32, i32) {
    %c0_i32 = arith.constant 0 : i32
    %c0_i32_0 = arith.constant 0 : i32
    %c0_i32_1 = arith.constant 0 : i32
    return %c0_i32, %c0_i32_0 : i32, i32
  }
  func.func @transform_17(%arg0: i32, %arg1: i32) -> (i32, i32) {
    %c0_i32 = arith.constant 0 : i32
    %c0_i32_0 = arith.constant 0 : i32
    return %arg0, %c0_i32 : i32, i32
  }
}

</mosaic_0001>

<llo_original>
// kernel: tpu_custom_call.1
$region0: #{tpu_custom_call.1}
  #allocation0 [shape = 'u32[]', space=smem, size = 0x4, offset = 0x4, fixed_abs, tag = 'smem constant byte address 0x4 - core index']
  #allocation1 [shape = 'u32[72,128]{1,0:T(1,128)}', space=vmem, size = 0x9000, scoped, tag = 'internal scratch']
  #allocation2 [shape = 'f32[8,4]{1,0:T(8,128)}', space=vmem, size = 0x1000, scoped, tag = 'scratch operand']
  %s0 = inlined_call_operand.hbm [shape: f32[8,4,256], index: 0, kind: input, shape index: {}]
  %s1 = inlined_call_operand.hbm [shape: f32[8,256], index: 1, kind: input, shape index: {}]
  %s2 = inlined_call_operand.hbm [shape: f32[4,1024], index: 2, kind: input, shape index: {}]
  %s3 = inlined_call_operand.hbm [shape: f32[1,1024], index: 3, kind: input, shape index: {}]
  %s4 = inlined_call_operand.hbm [shape: bf16[256,256], index: 4, kind: input, shape index: {}]
  %s5 = inlined_call_operand.hbm [shape: f32[1,256], index: 5, kind: input, shape index: {}]
  %s6 = inlined_call_operand.hbm [shape: bf16[256,256], index: 6, kind: input, shape index: {}]
  %s7 = inlined_call_operand.hbm [shape: f32[1,256], index: 7, kind: input, shape index: {}]
  %s8 = inlined_call_operand.hbm [shape: bf16[256,256], index: 8, kind: input, shape index: {}]
  %s9 = inlined_call_operand.hbm [shape: f32[1,256], index: 9, kind: input, shape index: {}]
  %s10 = inlined_call_operand.hbm [shape: bf16[1024,640], index: 10, kind: input, shape index: {}]
  %s11 = inlined_call_operand.hbm [shape: bf16[256,640], index: 11, kind: input, shape index: {}]
  %s12 = inlined_call_operand.hbm [shape: f32[1,640], index: 12, kind: input, shape index: {}]
  %s13 = inlined_call_operand.vmem [shape: bf16[640,320], index: 13, kind: input, shape index: {}]
  %s14 = inlined_call_operand.hbm [shape: f32[1,320], index: 14, kind: input, shape index: {}]
  %s15 = inlined_call_operand.hbm [shape: bf16[320,128], index: 15, kind: input, shape index: {}]
  %s16 = inlined_call_operand.hbm [shape: f32[1,128], index: 16, kind: input, shape index: {}]
  %s17 = inlined_call_operand.hbm [shape: f32[8,128], index: 17, kind: output, shape index: {}]
  %s18 = sld [smem:[#allocation0]]
  $region150: #{tpu_custom_call.1} parent=0
    _
  %s20 = ssub.s32 1, %s18
  %s21 = scalar_select 0, %s20, %s18
  $region1: #{tpu_custom_call.1} parent=0
    #allocation3 [shape = 'u8[32768]{0}', space=vmem, size = 0x8000, scoped, tag = 'input window, operand 0, single buffered']
    #allocation4 [shape = 's32[1]{0}', space=sflag, size = 0x4, scoped, tag = 'scoped memory for tpu_custom_call.1']
    #allocation5 [shape = 's32[1]{0}', space=sflag, size = 0x4, scoped, tag = 'scoped memory for tpu_custom_call.1']
    #allocation6 [shape = 'u8[8192]{0}', space=vmem, size = 0x2000, scoped, tag = 'input window, operand 1, single buffered']
    #allocation7 [shape = 's32[1]{0}', space=sflag, size = 0x4, scoped, tag = 'scoped memory for tpu_custom_call.1']
    #allocation8 [shape = 'u8[16384]{0}', space=vmem, size = 0x4000, scoped, tag = 'input window, operand 2, single buffered']
    #allocation9 [shape = 'u8[4096]{0}', space=vmem, size = 0x1000, scoped, tag = 'input window, operand 3, single buffered']
    #allocation10 [shape = 's32[1]{0}', space=sflag, size = 0x4, scoped, tag = 'scoped memory for tpu_custom_call.1']
    #allocation11 [shape = 'u8[131072]{0}', space=vmem, size = 0x20000, scoped, tag = 'input window, operand 4, single buffered']
    #allocation12 [shape = 'u8[1024]{0}', space=vmem, size = 0x400, scoped, tag = 'input window, operand 5, single buffered']
    #allocation13 [shape = 's32[1]{0}', space=sflag, size = 0x4, scoped, tag = 'scoped memory for tpu_custom_call.1']
    #allocation14 [shape = 'u8[131072]{0}', space=vmem, size = 0x20000, scoped, tag = 'input window, operand 6, single buffered']
    #allocation15 [shape = 'u8[1024]{0}', space=vmem, size = 0x400, scoped, tag = 'input window, operand 7, single buffered']
    #allocation16 [shape = 's32[1]{0}', space=sflag, size = 0x4, scoped, tag = 'scoped memory for tpu_custom_call.1']
    #allocation17 [shape = 'u8[131072]{0}', space=vmem, size = 0x20000, scoped, tag = 'input window, operand 8, single buffered']
    #allocation18 [shape = 'u8[1024]{0}', space=vmem, size = 0x400, scoped, tag = 'input window, operand 9, single buffered']
    #allocation19 [shape = 's32[1]{0}', space=sflag, size = 0x4, scoped, tag = 'scoped memory for tpu_custom_call.1']
    #allocation20 [shape = 'u8[1310720]{0}', space=vmem, size = 0x140000, scoped, tag = 'input window, operand 10, single buffered']
    #allocation21 [shape = 'u8[327680]{0}', space=vmem, size = 0x50000, scoped, tag = 'input window, operand 11, single buffered']
    #allocation22 [shape = 's32[1]{0}', space=sflag, size = 0x4, scoped, tag = 'scoped memory for tpu_custom_call.1']
    #allocation23 [shape = 'u8[2560]{0}', space=vmem, size = 0xc00, scoped, tag = 'input window, operand 12, single buffered']
    #allocation24 [shape = 'u8[1536]{0}', space=vmem, size = 0x800, scoped, tag = 'input window, operand 14, single buffered']
    #allocation25 [shape = 's32[1]{0}', space=sflag, size = 0x4, scoped, tag = 'scoped memory for tpu_custom_call.1']
    #allocation26 [shape = 'u8[81920]{0}', space=vmem, size = 0x14000, scoped, tag = 'input window, operand 15, single buffered']
    #allocation27 [shape = 'u8[512]{0}', space=vmem, size = 0x400, scoped, tag = 'input window, operand 16, single buffered']
    #allocation28 [shape = 's32[1]{0}', space=sflag, size = 0x4, scoped, tag = 'scoped memory for tpu_custom_call.1']
    #allocation29 [shape = 'u8[4096]{0}', space=vmem, size = 0x1000, scoped, tag = 'output window, operand 0, single buffered']
    %22 = vsyncpa [#allocation4], 0
    %23 = vsyncpa [#allocation7], 0
    %24 = vsyncpa [#allocation10], 0
    %25 = vsyncpa [#allocation13], 0
    %26 = vsyncpa [#allocation16], 0
    %27 = vsyncpa [#allocation19], 0
    %28 = vsyncpa [#allocation22], 0
    %29 = vsyncpa [#allocation25], 0
    %30 = vsyncpa [#allocation28], 0
    %31 = vsyncpa [#allocation5], 0
    // Predicated region
    $region2: #{tpu_custom_call.1} parent=1 // pred_check
      _
    $region3: #{tpu_custom_call.1} parent=1 // pred_check_branch
      %33 = sbr.rel (0) target = $region5
    $region4: #{tpu_custom_call.1} parent=1 // pred_region
      %35 = vsyncadd [#allocation4], 0
      %s36 = sshll.u32 %s0, 4
      %s37 = int_to_ptr.hbm [resolvable:$true] %s36
      %s38 = sshll.u32 [#allocation3], 4
      %s39 = int_to_ptr.vmem [resolvable:$true] %s38
      %44 = dma.hbm_to_vmem [thread:$0]  %s37, 1024, %s39, [#allocation4], 128, 128, 8
    $region5: #{tpu_custom_call.1} parent=1 // pred_fallthru
      _
    // Predicated region
    $region6: #{tpu_custom_call.1} parent=1 // pred_check
      _
    $region7: #{tpu_custom_call.1} parent=1 // pred_check_branch
      %46 = sbr.rel (0) target = $region9
    $region8: #{tpu_custom_call.1} parent=1 // pred_region
      %48 = vsyncadd [#allocation7], 0
      %s50 = sshll.u32 %s1, 4
      %s51 = int_to_ptr.hbm [resolvable:$true] %s50
      %s52 = sshll.u32 [#allocation6], 4
      %s53 = int_to_ptr.vmem [resolvable:$true] %s52
      %55 = dma.hbm_to_vmem [thread:$0]  %s51, 256, %s53, [#allocation7]
    $region9: #{tpu_custom_call.1} parent=1 // pred_fallthru
      _
    // Predicated region
    $region10: #{tpu_custom_call.1} parent=1 // pred_check
      _
    $region11: #{tpu_custom_call.1} parent=1 // pred_check_branch
      %57 = sbr.rel (0) target = $region13
    $region12: #{tpu_custom_call.1} parent=1 // pred_region
      %59 = vsyncadd [#allocation7], 0
      %s61 = sshll.u32 %s2, 4
      %s62 = int_to_ptr.hbm [resolvable:$true] %s61
      %s63 = sshll.u32 [#allocation8], 4
      %s64 = int_to_ptr.vmem [resolvable:$true] %s63
      %66 = dma.hbm_to_vmem [thread:$0]  %s62, 512, %s64, [#allocation7]
    $region13: #{tpu_custom_call.1} parent=1 // pred_fallthru
      _
    // Predicated region
    $region14: #{tpu_custom_call.1} parent=1 // pred_check
      _
    $region15: #{tpu_custom_call.1} parent=1 // pred_check_branch
      %68 = sbr.rel (0) target = $region17
    $region16: #{tpu_custom_call.1} parent=1 // pred_region
      %70 = vsyncadd [#allocation10], 0
      %s72 = sshll.u32 %s3, 4
      %s73 = int_to_ptr.hbm [resolvable:$true] %s72
      %s74 = sshll.u32 [#allocation9], 4
      %s75 = int_to_ptr.vmem [resolvable:$true] %s74
      %77 = dma.hbm_to_vmem [thread:$0]  %s73, 128, %s75, [#allocation10]
    $region17: #{tpu_custom_call.1} parent=1 // pred_fallthru
      _
    // Predicated region
    $region18: #{tpu_custom_call.1} parent=1 // pred_check
      _
    $region19: #{tpu_custom_call.1} parent=1 // pred_check_branch
      %79 = sbr.rel (0) target = $region21
    $region20: #{tpu_custom_call.1} parent=1 // pred_region
      %81 = vsyncadd [#allocation10], 0
      %s82 = sshll.u32 %s4, 4
      %s83 = int_to_ptr.hbm [resolvable:$true] %s82
      %s84 = sshll.u32 [#allocation11], 4
      %s85 = int_to_ptr.vmem [resolvable:$true] %s84
      %90 = dma.hbm_to_vmem [thread:$0]  %s83, 4096, %s85, [#allocation10], 128, 128, 8
    $region21: #{tpu_custom_call.1} parent=1 // pred_fallthru
      _
    // Predicated region
    $region22: #{tpu_custom_call.1} parent=1 // pred_check
      _
    $region23: #{tpu_custom_call.1} parent=1 // pred_check_branch
      %92 = sbr.rel (0) target = $region25
    $region24: #{tpu_custom_call.1} parent=1 // pred_region
      %94 = vsyncadd [#allocation13], 0
      %s96 = sshll.u32 %s5, 4
      %s97 = int_to_ptr.hbm [resolvable:$true] %s96
      %s98 = sshll.u32 [#allocation12], 4
      %s99 = int_to_ptr.vmem [resolvable:$true] %s98
      %101 = dma.hbm_to_vmem [thread:$0]  %s97, 32, %s99, [#allocation13]
    $region25: #{tpu_custom_call.1} parent=1 // pred_fallthru
      _
    // Predicated region
    $region26: #{tpu_custom_call.1} parent=1 // pred_check
      _
    $region27: #{tpu_custom_call.1} parent=1 // pred_check_branch
      %103 = sbr.rel (0) target = $region29
    $region28: #{tpu_custom_call.1} parent=1 // pred_region
      %105 = vsyncadd [#allocation13], 0
      %s106 = sshll.u32 %s6, 4
      %s107 = int_to_ptr.hbm [resolvable:$true] %s106
      %s108 = sshll.u32 [#allocation14], 4
      %s109 = int_to_ptr.vmem [resolvable:$true] %s108
      %114 = dma.hbm_to_vmem [thread:$0]  %s107, 4096, %s109, [#allocation13], 128, 128, 8
    $region29: #{tpu_custom_call.1} parent=1 // pred_fallthru
      _
    // Predicated region
    $region30: #{tpu_custom_call.1} parent=1 // pred_check
      _
    $region31: #{tpu_custom_call.1} parent=1 // pred_check_branch
      %116 = sbr.rel (0) target = $region33
    $region32: #{tpu_custom_call.1} parent=1 // pred_region
      %118 = vsyncadd [#allocation16], 0
      %s120 = sshll.u32 %s7, 4
      %s121 = int_to_ptr.hbm [resolvable:$true] %s120
      %s122 = sshll.u32 [#allocation15], 4
      %s123 = int_to_ptr.vmem [resolvable:$true] %s122
      %125 = dma.hbm_to_vmem [thread:$0]  %s121, 32, %s123, [#allocation16]
    $region33: #{tpu_custom_call.1} parent=1 // pred_fallthru
      _
    // Predicated region
    $region34: #{tpu_custom_call.1} parent=1 // pred_check
      _
    $region35: #{tpu_custom_call.1} parent=1 // pred_check_branch
      %127 = sbr.rel (0) target = $region37
    $region36: #{tpu_custom_call.1} parent=1 // pred_region
      %129 = vsyncadd [#allocation16], 0
      %s130 = sshll.u32 %s8, 4
      %s131 = int_to_ptr.hbm [resolvable:$true] %s130
      %s132 = sshll.u32 [#allocation17], 4
      %s133 = int_to_ptr.vmem [resolvable:$true] %s132
      %138 = dma.hbm_to_vmem [thread:$0]  %s131, 4096, %s133, [#allocation16], 128, 128, 8
    $region37: #{tpu_custom_call.1} parent=1 // pred_fallthru
      _
    // Predicated region
    $region38: #{tpu_custom_call.1} parent=1 // pred_check
      _
    $region39: #{tpu_custom_call.1} parent=1 // pred_check_branch
      %140 = sbr.rel (0) target = $region41
    $region40: #{tpu_custom_call.1} parent=1 // pred_region
      %142 = vsyncadd [#allocation19], 0
      %s144 = sshll.u32 %s9, 4
      %s145 = int_to_ptr.hbm [resolvable:$true] %s144
      %s146 = sshll.u32 [#allocation18], 4
      %s147 = int_to_ptr.vmem [resolvable:$true] %s146
      %149 = dma.hbm_to_vmem [thread:$0]  %s145, 32, %s147, [#allocation19]
    $region41: #{tpu_custom_call.1} parent=1 // pred_fallthru
      _
    // Predicated region
    $region42: #{tpu_custom_call.1} parent=1 // pred_check
      _
    $region43: #{tpu_custom_call.1} parent=1 // pred_check_branch
      %151 = sbr.rel (0) target = $region45
    $region44: #{tpu_custom_call.1} parent=1 // pred_region
      %153 = vsyncadd [#allocation19], 0
      %s154 = sshll.u32 %s10, 4
      %s155 = int_to_ptr.hbm [resolvable:$true] %s154
      %s156 = sshll.u32 [#allocation20], 4
      %s157 = int_to_ptr.vmem [resolvable:$true] %s156
      %162 = dma.hbm_to_vmem [thread:$0]  %s155, 40960, %s157, [#allocation19], 320, 320, 20
    $region45: #{tpu_custom_call.1} parent=1 // pred_fallthru
      _
    // Predicated region
    $region46: #{tpu_custom_call.1} parent=1 // pred_check
      _
    $region47: #{tpu_custom_call.1} parent=1 // pred_check_branch
      %164 = sbr.rel (0) target = $region49
    $region48: #{tpu_custom_call.1} parent=1 // pred_region
      %166 = vsyncadd [#allocation22], 0
      %s167 = sshll.u32 %s11, 4
      %s168 = int_to_ptr.hbm [resolvable:$true] %s167
      %s169 = sshll.u32 [#allocation21], 4
      %s170 = int_to_ptr.vmem [resolvable:$true] %s169
      %175 = dma.hbm_to_vmem [thread:$0]  %s168, 10240, %s170, [#allocation22], 320, 320, 20
    $region49: #{tpu_custom_call.1} parent=1 // pred_fallthru
      _
    // Predicated region
    $region50: #{tpu_custom_call.1} parent=1 // pred_check
      _
    $region51: #{tpu_custom_call.1} parent=1 // pred_check_branch
      %177 = sbr.rel (0) target = $region53
    $region52: #{tpu_custom_call.1} parent=1 // pred_region
      %179 = vsyncadd [#allocation22], 0
      %s181 = sshll.u32 %s12, 4
      %s182 = int_to_ptr.hbm [resolvable:$true] %s181
      %s183 = sshll.u32 [#allocation23], 4
      %s184 = int_to_ptr.vmem [resolvable:$true] %s183
      %186 = dma.hbm_to_vmem [thread:$0]  %s182, 80, %s184, [#allocation22]
    $region53: #{tpu_custom_call.1} parent=1 // pred_fallthru
      _
    // Predicated region
    $region54: #{tpu_custom_call.1} parent=1 // pred_check
      _
    $region55: #{tpu_custom_call.1} parent=1 // pred_check_branch
      %188 = sbr.rel (0) target = $region57
    $region56: #{tpu_custom_call.1} parent=1 // pred_region
      _
    $region57: #{tpu_custom_call.1} parent=1 // pred_fallthru
      _
    // Predicated region
    $region58: #{tpu_custom_call.1} parent=1 // pred_check
      _
    $region59: #{tpu_custom_call.1} parent=1 // pred_check_branch
      %190 = sbr.rel (0) target = $region61
    $region60: #{tpu_custom_call.1} parent=1 // pred_region
      %192 = vsyncadd [#allocation25], 0
      %s194 = sshll.u32 %s14, 4
      %s195 = int_to_ptr.hbm [resolvable:$true] %s194
      %s196 = sshll.u32 [#allocation24], 4
      %s197 = int_to_ptr.vmem [resolvable:$true] %s196
      %199 = dma.hbm_to_vmem [thread:$0]  %s195, 48, %s197, [#allocation25]
    $region61: #{tpu_custom_call.1} parent=1 // pred_fallthru
      _
    // Predicated region
    $region62: #{tpu_custom_call.1} parent=1 // pred_check
      _
    $region63: #{tpu_custom_call.1} parent=1 // pred_check_branch
      %201 = sbr.rel (0) target = $region65
    $region64: #{tpu_custom_call.1} parent=1 // pred_region
      %203 = vsyncadd [#allocation25], 0
      %s204 = sshll.u32 %s15, 4
      %s205 = int_to_ptr.hbm [resolvable:$true] %s204
      %s206 = sshll.u32 [#allocation26], 4
      %s207 = int_to_ptr.vmem [resolvable:$true] %s206
      %212 = dma.hbm_to_vmem [thread:$0]  %s205, 2560, %s207, [#allocation25], 64, 64, 4
    $region65: #{tpu_custom_call.1} parent=1 // pred_fallthru
      _
    // Predicated region
    $region66: #{tpu_custom_call.1} parent=1 // pred_check
      _
    $region67: #{tpu_custom_call.1} parent=1 // pred_check_branch
      %214 = sbr.rel (0) target = $region69
    $region68: #{tpu_custom_call.1} parent=1 // pred_region
      %216 = vsyncadd [#allocation28], 0
      %s218 = sshll.u32 %s16, 4
      %s219 = int_to_ptr.hbm [resolvable:$true] %s218
      %s220 = sshll.u32 [#allocation27], 4
      %s221 = int_to_ptr.vmem [resolvable:$true] %s220
      %223 = dma.hbm_to_vmem [thread:$0]  %s219, 16, %s221, [#allocation28]
    $region69: #{tpu_custom_call.1} parent=1 // pred_fallthru
      _
    // Predicated region
    $region70: #{tpu_custom_call.1} parent=1 // pred_check
      _
    $region71: #{tpu_custom_call.1} parent=1 // pred_check_branch
      %225 = sbr.rel (0) target = $region73
    $region72: #{tpu_custom_call.1} parent=1 // pred_region
      %227 = dma.done [#allocation4], 1024
    $region73: #{tpu_custom_call.1} parent=1 // pred_fallthru
      _
    // Predicated region
    $region74: #{tpu_custom_call.1} parent=1 // pred_check
      _
    $region75: #{tpu_custom_call.1} parent=1 // pred_check_branch
      %229 = sbr.rel (0) target = $region77
    $region76: #{tpu_custom_call.1} parent=1 // pred_region
      %231 = dma.done [#allocation7], 256
    $region77: #{tpu_custom_call.1} parent=1 // pred_fallthru
      _
    // Predicated region
    $region78: #{tpu_custom_call.1} parent=1 // pred_check
      _
    $region79: #{tpu_custom_call.1} parent=1 // pred_check_branch
      %233 = sbr.rel (0) target = $region81
    $region80: #{tpu_custom_call.1} parent=1 // pred_region
      %235 = dma.done [#allocation7], 512
    $region81: #{tpu_custom_call.1} parent=1 // pred_fallthru
      _
    // Predicated region
    $region82: #{tpu_custom_call.1} parent=1 // pred_check
      _
    $region83: #{tpu_custom_call.1} parent=1 // pred_check_branch
      %237 = sbr.rel (0) target = $region85
    $region84: #{tpu_custom_call.1} parent=1 // pred_region
      %239 = dma.done [#allocation10], 128
    $region85: #{tpu_custom_call.1} parent=1 // pred_fallthru
      _
    // Predicated region
    $region86: #{tpu_custom_call.1} parent=1 // pred_check
      _
    $region87: #{tpu_custom_call.1} parent=1 // pred_check_branch
      %241 = sbr.rel (0) target = $region89
    $region88: #{tpu_custom_call.1} parent=1 // pred_region
      %243 = dma.done [#allocation10], 4096
    $region89: #{tpu_custom_call.1} parent=1 // pred_fallthru
      _
    // Predicated region
    $region90: #{tpu_custom_call.1} parent=1 // pred_check
      _
    $region91: #{tpu_custom_call.1} parent=1 // pred_check_branch
      %245 = sbr.rel (0) target = $region93
    $region92: #{tpu_custom_call.1} parent=1 // pred_region
      %247 = dma.done [#allocation13], 32
    $region93: #{tpu_custom_call.1} parent=1 // pred_fallthru
      _
    // Predicated region
    $region94: #{tpu_custom_call.1} parent=1 // pred_check
      _
    $region95: #{tpu_custom_call.1} parent=1 // pred_check_branch
      %249 = sbr.rel (0) target = $region97
    $region96: #{tpu_custom_call.1} parent=1 // pred_region
      %251 = dma.done [#allocation13], 4096
    $region97: #{tpu_custom_call.1} parent=1 // pred_fallthru
      _
    // Predicated region
    $region98: #{tpu_custom_call.1} parent=1 // pred_check
      _
    $region99: #{tpu_custom_call.1} parent=1 // pred_check_branch
      %253 = sbr.rel (0) target = $region101
    $region100: #{tpu_custom_call.1} parent=1 // pred_region
      %255 = dma.done [#allocation16], 32
    $region101: #{tpu_custom_call.1} parent=1 // pred_fallthru
      _
    // Predicated region
    $region102: #{tpu_custom_call.1} parent=1 // pred_check
      _
    $region103: #{tpu_custom_call.1} parent=1 // pred_check_branch
      %257 = sbr.rel (0) target = $region105
    $region104: #{tpu_custom_call.1} parent=1 // pred_region
      %259 = dma.done [#allocation16], 4096
    $region105: #{tpu_custom_call.1} parent=1 // pred_fallthru
      _
    // Predicated region
    $region106: #{tpu_custom_call.1} parent=1 // pred_check
      _
    $region107: #{tpu_custom_call.1} parent=1 // pred_check_branch
      %261 = sbr.rel (0) target = $region109
    $region108: #{tpu_custom_call.1} parent=1 // pred_region
      %263 = dma.done [#allocation19], 32
    $region109: #{tpu_custom_call.1} parent=1 // pred_fallthru
      _
    // Predicated region
    $region110: #{tpu_custom_call.1} parent=1 // pred_check
      _
    $region111: #{tpu_custom_call.1} parent=1 // pred_check_branch
      %265 = sbr.rel (0) target = $region113
    $region112: #{tpu_custom_call.1} parent=1 // pred_region
      %267 = dma.done [#allocation19], 40960
    $region113: #{tpu_custom_call.1} parent=1 // pred_fallthru
      _
    // Predicated region
    $region114: #{tpu_custom_call.1} parent=1 // pred_check
      _
    $region115: #{tpu_custom_call.1} parent=1 // pred_check_branch
      %269 = sbr.rel (0) target = $region117
    $region116: #{tpu_custom_call.1} parent=1 // pred_region
      %271 = dma.done [#allocation22], 10240
    $region117: #{tpu_custom_call.1} parent=1 // pred_fallthru
      _
    // Predicated region
    $region118: #{tpu_custom_call.1} parent=1 // pred_check
      _
    $region119: #{tpu_custom_call.1} parent=1 // pred_check_branch
      %273 = sbr.rel (0) target = $region121
    $region120: #{tpu_custom_call.1} parent=1 // pred_region
      %275 = dma.done [#allocation22], 80
    $region121: #{tpu_custom_call.1} parent=1 // pred_fallthru
      _
    // Predicated region
    $region122: #{tpu_custom_call.1} parent=1 // pred_check
      _
    $region123: #{tpu_custom_call.1} parent=1 // pred_check_branch
      %277 = sbr.rel (0) target = $region125
    $region124: #{tpu_custom_call.1} parent=1 // pred_region
      %279 = dma.done [#allocation25], 48
    $region125: #{tpu_custom_call.1} parent=1 // pred_fallthru
      _
    // Predicated region
    $region126: #{tpu_custom_call.1} parent=1 // pred_check
      _
    $region127: #{tpu_custom_call.1} parent=1 // pred_check_branch
      %281 = sbr.rel (0) target = $region129
    $region128: #{tpu_custom_call.1} parent=1 // pred_region
      %283 = dma.done [#allocation25], 2560
    $region129: #{tpu_custom_call.1} parent=1 // pred_fallthru
      _
    // Predicated region
    $region130: #{tpu_custom_call.1} parent=1 // pred_check
      _
    $region131: #{tpu_custom_call.1} parent=1 // pred_check_branch
      %285 = sbr.rel (0) target = $region133
    $region132: #{tpu_custom_call.1} parent=1 // pred_region
      %287 = dma.done [#allocation28], 16
    $region133: #{tpu_custom_call.1} parent=1 // pred_fallthru
      _
    %p289 = scmp.eq.s32.totalorder 0, 0
    // Predicated region
    $region134: #{tpu_custom_call.1} parent=1 // pred_check
      %p290 = pneg %p289
    $region135: #{tpu_custom_call.1} parent=1 // pred_check_branch
      %292 = sbr.rel (%p290) target = $region137
    $region136: #{tpu_custom_call.1} parent=1 // pred_region
      %vm293 = vcmask 31744
      %294 = vst.msk [vmem:[#allocation2] sm:$0xff] %vm293, 0.0
    $region137: #{tpu_custom_call.1} parent=1 // pred_fallthru
      _
    %v295 = vld [vmem:[#allocation2] sm:$0xff]
    %v296 = vld [vmem:[#allocation3] sm:$0xff]
    %v297 = vld [vmem:[#allocation3 + $0x8] sm:$0xff]
    %v298 = vld [vmem:[#allocation3 + $0x10] sm:$0xff]
    %v299 = vld [vmem:[#allocation3 + $0x18] sm:$0xff]
    %v300 = vld [vmem:[#allocation3 + $0x20] sm:$0xff]
    %v301 = vld [vmem:[#allocation3 + $0x28] sm:$0xff]
    %v302 = vld [vmem:[#allocation3 + $0x30] sm:$0xff]
    %v303 = vld [vmem:[#allocation3 + $0x38] sm:$0xff]
    %312 = vst [vmem:[#allocation1] ss:$2 sm:$0xff] %v296
    %v313 = vld.sshfl [vmem:[#allocation1] sm:$0xff pattern:$0x75316420]
    %v314 = vld.sshfl [vmem:[#allocation1 + $0x8] sm:$0xff pattern:$0x75316420]
    %s315 = scalar_lea.vmem [#allocation1], 16
    %316 = vst [vmem:[%s315] ss:$2 sm:$0xff] %v297
    %v317 = vld.sshfl [vmem:[#allocation1 + $0x10] sm:$0xff pattern:$0x75316420]
    %v318 = vld.sshfl [vmem:[#allocation1 + $0x18] sm:$0xff pattern:$0x75316420]
    %s319 = scalar_lea.vmem [#allocation1], 32
    %320 = vst [vmem:[%s319] ss:$2 sm:$0xff] %v298
    %v321 = vld.sshfl [vmem:[#allocation1 + $0x20] sm:$0xff pattern:$0x75316420]
    %v322 = vld.sshfl [vmem:[#allocation1 + $0x28] sm:$0xff pattern:$0x75316420]
    %s323 = scalar_lea.vmem [#allocation1], 48
    %324 = vst [vmem:[%s323] ss:$2 sm:$0xff] %v299
    %v325 = vld.sshfl [vmem:[#allocation1 + $0x30] sm:$0xff pattern:$0x75316420]
    %v326 = vld.sshfl [vmem:[#allocation1 + $0x38] sm:$0xff pattern:$0x75316420]
    %327 = vst [vmem:[#allocation1] ss:$2 sm:$0xff] %v300
    %v328 = vld.sshfl [vmem:[#allocation1] sm:$0xff pattern:$0x75316420]
    %v329 = vld.sshfl [vmem:[#allocation1 + $0x8] sm:$0xff pattern:$0x75316420]
    %330 = vst [vmem:[%s315] ss:$2 sm:$0xff] %v301
    %v331 = vld.sshfl [vmem:[#allocation1 + $0x10] sm:$0xff pattern:$0x75316420]
    %v332 = vld.sshfl [vmem:[#allocation1 + $0x18] sm:$0xff pattern:$0x75316420]
    %333 = vst [vmem:[%s319] ss:$2 sm:$0xff] %v302
    %v334 = vld.sshfl [vmem:[#allocation1 + $0x20] sm:$0xff pattern:$0x75316420]
    %v335 = vld.sshfl [vmem:[#allocation1 + $0x28] sm:$0xff pattern:$0x75316420]
    %336 = vst [vmem:[%s323] ss:$2 sm:$0xff] %v303
    %v337 = vld.sshfl [vmem:[#allocation1 + $0x30] sm:$0xff pattern:$0x75316420]
    %v338 = vld.sshfl [vmem:[#allocation1 + $0x38] sm:$0xff pattern:$0x75316420]
    %vm355 = vcmask 1043456
    %v356 = vsel %vm355, %v313, 0.0
    %v357 = vsel %vm355, %v314, 0.0
    %v358 = vadd.f32 %v356, %v357
    %359 = vadd.xlane.f32.xlu0 %v358
    %v360 = vpop.xlane.xlu0 %359
    %v361 = vsel %vm355, %v317, 0.0
    %v362 = vsel %vm355, %v318, 0.0
    %v363 = vadd.f32 %v361, %v362
    %364 = vadd.xlane.f32.xlu0 %v363
    %v365 = vpop.xlane.xlu0 %364
    %v366 = vsel %vm355, %v321, 0.0
    %v367 = vsel %vm355, %v322, 0.0
    %v368 = vadd.f32 %v366, %v367
    %369 = vadd.xlane.f32.xlu0 %v368
    %v370 = vpop.xlane.xlu0 %369
    %v371 = vsel %vm355, %v325, 0.0
    %v372 = vsel %vm355, %v326, 0.0
    %v373 = vadd.f32 %v371, %v372
    %374 = vadd.xlane.f32.xlu0 %v373
    %v375 = vpop.xlane.xlu0 %374
    %v376 = vsel %vm355, %v328, 0.0
    %v377 = vsel %vm355, %v329, 0.0
    %v378 = vadd.f32 %v376, %v377
    %379 = vadd.xlane.f32.xlu0 %v378
    %v380 = vpop.xlane.xlu0 %379
    %v381 = vsel %vm355, %v331, 0.0
    %v382 = vsel %vm355, %v332, 0.0
    %v383 = vadd.f32 %v381, %v382
    %384 = vadd.xlane.f32.xlu0 %v383
    %v385 = vpop.xlane.xlu0 %384
    %v386 = vsel %vm355, %v334, 0.0
    %v387 = vsel %vm355, %v335, 0.0
    %v388 = vadd.f32 %v386, %v387
    %389 = vadd.xlane.f32.xlu0 %v388
    %v390 = vpop.xlane.xlu0 %389
    %v391 = vsel %vm355, %v337, 0.0
    %v392 = vsel %vm355, %v338, 0.0
    %v393 = vadd.f32 %v391, %v392
    %394 = vadd.xlane.f32.xlu0 %v393
    %v395 = vpop.xlane.xlu0 %394
    %v404 = vlaneseq
    %v405 = vand.u32 %v404, 127
    %v406 = vperm.slane %v360, %v405
    %v407 = vperm.slane %v365, %v405
    %v408 = vperm.slane %v370, %v405
    %v409 = vperm.slane %v375, %v405
    %v410 = vperm.slane %v380, %v405
    %v411 = vperm.slane %v385, %v405
    %v412 = vperm.slane %v390, %v405
    %v413 = vperm.slane %v395, %v405
    %vm414 = vcmask 1041409
    %v415 = vsel %vm414, %v407, %v406
    %vm416 = vcmask 1042434
    %v417 = vsel %vm416, %v408, %v415
    %vm418 = vcmask 1043459
    %v419 = vsel %vm418, %v409, %v417
    %vm420 = vcmask 1044484
    %v421 = vsel %vm420, %v410, %v419
    %vm422 = vcmask 1045509
    %v423 = vsel %vm422, %v411, %v421
    %vm424 = vcmask 1046534
    %v425 = vsel %vm424, %v412, %v423
    %vm426 = vcmask 1047559
    %v427 = vsel %vm426, %v413, %v425
    %v429 = vadd.f32 %v295, %v427
    %vm430 = vcmask 31744
    %431 = vst.msk [vmem:[#allocation2] sm:$0xff] %vm430, %v429
    // Predicated region
    $region138: #{tpu_custom_call.1} parent=1 // pred_check
      %p432 = pneg %p289
    $region139: #{tpu_custom_call.1} parent=1 // pred_check_branch
      %434 = sbr.rel (%p432) target = $region141
    $region140: #{tpu_custom_call.1} parent=1 // pred_region
      %v435 = vld [vmem:[#allocation2] sm:$0xff]
      %v436 = vmul.f32 %v435, 0.00390625
      %v437 = vld [vmem:[#allocation8] ss:$4 sm:$0xff]
      %439 = vset.pattern.permute.xlu0 0
      %440 = vperm.xlu0 %439, %v436
      %v441 = vpop.permute.xlu0 %440
      %v444 = vperm.slane %v437, 0
      %v445 = vperm.slane %v437, 1
      %v446 = vperm.slane %v437, 2
      %v447 = vperm.slane %v437, 3
      %v448 = vperm.slane %v437, 4
      %v449 = vperm.slane %v437, 5
      %v450 = vperm.slane %v437, 6
      %v451 = vperm.slane %v437, 7
      %v460 = vmul.f32 %v441, %v444
      %v461 = vmul.f32 %v441, %v445
      %v462 = vmul.f32 %v441, %v446
      %v463 = vmul.f32 %v441, %v447
      %v464 = vmul.f32 %v441, %v448
      %v465 = vmul.f32 %v441, %v449
      %v466 = vmul.f32 %v441, %v450
      %v467 = vmul.f32 %v441, %v451
      %s468 = scalar_lea.vmem [#allocation8], 1
      %v469 = vld [vmem:[%s468] ss:$4 sm:$0xff]
      %470 = vset.pattern.permute.xlu0 1
      %471 = vperm.xlu0 %470, %v436
      %v472 = vpop.permute.xlu0 %471
      %v475 = vperm.slane %v469, 0
      %v476 = vperm.slane %v469, 1
      %v477 = vperm.slane %v469, 2
      %v478 = vperm.slane %v469, 3
      %v479 = vperm.slane %v469, 4
      %v480 = vperm.slane %v469, 5
      %v481 = vperm.slane %v469, 6
      %v482 = vperm.slane %v469, 7
      %v491 = vmul.f32 %v472, %v475
      %v492 = vmul.f32 %v472, %v476
      %v493 = vmul.f32 %v472, %v477
      %v494 = vmul.f32 %v472, %v478
      %v495 = vmul.f32 %v472, %v479
      %v496 = vmul.f32 %v472, %v480
      %v497 = vmul.f32 %v472, %v481
      %v498 = vmul.f32 %v472, %v482
      %v499 = vadd.f32 %v460, %v491
      %v500 = vadd.f32 %v461, %v492
      %v501 = vadd.f32 %v462, %v493
      %v502 = vadd.f32 %v463, %v494
      %v503 = vadd.f32 %v464, %v495
      %v504 = vadd.f32 %v465, %v496
      %v505 = vadd.f32 %v466, %v497
      %v506 = vadd.f32 %v467, %v498
      %s507 = scalar_lea.vmem [#allocation8], 2
      %v508 = vld [vmem:[%s507] ss:$4 sm:$0xff]
      %509 = vset.pattern.permute.xlu0 2
      %510 = vperm.xlu0 %509, %v436
      %v511 = vpop.permute.xlu0 %510
      %v514 = vperm.slane %v508, 0
      %v515 = vperm.slane %v508, 1
      %v516 = vperm.slane %v508, 2
      %v517 = vperm.slane %v508, 3
      %v518 = vperm.slane %v508, 4
      %v519 = vperm.slane %v508, 5
      %v520 = vperm.slane %v508, 6
      %v521 = vperm.slane %v508, 7
      %v530 = vmul.f32 %v511, %v514
      %v531 = vmul.f32 %v511, %v515
      %v532 = vmul.f32 %v511, %v516
      %v533 = vmul.f32 %v511, %v517
      %v534 = vmul.f32 %v511, %v518
      %v535 = vmul.f32 %v511, %v519
      %v536 = vmul.f32 %v511, %v520
      %v537 = vmul.f32 %v511, %v521
      %v538 = vadd.f32 %v499, %v530
      %v539 = vadd.f32 %v500, %v531
      %v540 = vadd.f32 %v501, %v532
      %v541 = vadd.f32 %v502, %v533
      %v542 = vadd.f32 %v503, %v534
      %v543 = vadd.f32 %v504, %v535
      %v544 = vadd.f32 %v505, %v536
      %v545 = vadd.f32 %v506, %v537
      %s546 = scalar_lea.vmem [#allocation8], 3
      %v547 = vld [vmem:[%s546] ss:$4 sm:$0xff]
      %548 = vset.pattern.permute.xlu0 3
      %549 = vperm.xlu0 %548, %v436
      %v550 = vpop.permute.xlu0 %549
      %v553 = vperm.slane %v547, 0
      %v554 = vperm.slane %v547, 1
      %v555 = vperm.slane %v547, 2
      %v556 = vperm.slane %v547, 3
      %v557 = vperm.slane %v547, 4
      %v558 = vperm.slane %v547, 5
      %v559 = vperm.slane %v547, 6
      %v560 = vperm.slane %v547, 7
      %v569 = vmul.f32 %v550, %v553
      %v570 = vmul.f32 %v550, %v554
      %v571 = vmul.f32 %v550, %v555
      %v572 = vmul.f32 %v550, %v556
      %v573 = vmul.f32 %v550, %v557
      %v574 = vmul.f32 %v550, %v558
      %v575 = vmul.f32 %v550, %v559
      %v576 = vmul.f32 %v550, %v560
      %v577 = vadd.f32 %v538, %v569
      %v578 = vadd.f32 %v539, %v570
      %v579 = vadd.f32 %v540, %v571
      %v580 = vadd.f32 %v541, %v572
      %v581 = vadd.f32 %v542, %v573
      %v582 = vadd.f32 %v543, %v574
      %v583 = vadd.f32 %v544, %v575
      %v584 = vadd.f32 %v545, %v576
      %v585 = vld [vmem:[#allocation9] sm:$0xff]
      %v587 = vperm.slane %v585, 0
      %v588 = vperm.slane %v585, 1
      %v589 = vperm.slane %v585, 2
      %v590 = vperm.slane %v585, 3
      %v591 = vperm.slane %v585, 4
      %v592 = vperm.slane %v585, 5
      %v593 = vperm.slane %v585, 6
      %v594 = vperm.slane %v585, 7
      %v603 = vadd.f32 %v577, %v587
      %v604 = vadd.f32 %v578, %v588
      %v605 = vadd.f32 %v579, %v589
      %v606 = vadd.f32 %v580, %v590
      %v607 = vadd.f32 %v581, %v591
      %v608 = vadd.f32 %v582, %v592
      %v609 = vadd.f32 %v583, %v593
      %v610 = vadd.f32 %v584, %v594
      %v611 = vld [vmem:[#allocation6] sm:$0xff]
      %v612 = vld [vmem:[#allocation6 + $0x8] sm:$0xff]
      %v613 = vpack.c.bf16 %v611, %v611
      %v614 = vpack.c.bf16 %v612, %v612
      %v615 = vld [vmem:[#allocation11] sm:$0xff]
      %v616 = vld [vmem:[#allocation11 + $0x8] sm:$0xff]
      %v617 = vld [vmem:[#allocation11 + $0x10] sm:$0xff]
      %v618 = vld [vmem:[#allocation11 + $0x18] sm:$0xff]
      %v619 = vld [vmem:[#allocation11 + $0x20] sm:$0xff]
      %v620 = vld [vmem:[#allocation11 + $0x28] sm:$0xff]
      %v621 = vld [vmem:[#allocation11 + $0x30] sm:$0xff]
      %v622 = vld [vmem:[#allocation11 + $0x38] sm:$0xff]
      %v623 = vld [vmem:[#allocation11 + $0x40] sm:$0xff]
      %v624 = vld [vmem:[#allocation11 + $0x48] sm:$0xff]
      %v625 = vld [vmem:[#allocation11 + $0x50] sm:$0xff]
      %v626 = vld [vmem:[#allocation11 + $0x58] sm:$0xff]
      %v627 = vld [vmem:[#allocation11 + $0x60] sm:$0xff]
      %v628 = vld [vmem:[#allocation11 + $0x68] sm:$0xff]
      %v629 = vld [vmem:[#allocation11 + $0x70] sm:$0xff]
      %v630 = vld [vmem:[#allocation11 + $0x78] sm:$0xff]
      %v631 = vld [vmem:[#allocation11 + $0x80] sm:$0xff]
      %v632 = vld [vmem:[#allocation11 + $0x88] sm:$0xff]
      %v633 = vld [vmem:[#allocation11 + $0x90] sm:$0xff]
      %v634 = vld [vmem:[#allocation11 + $0x98] sm:$0xff]
      %v635 = vld [vmem:[#allocation11 + $0xa0] sm:$0xff]
      %v636 = vld [vmem:[#allocation11 + $0xa8] sm:$0xff]
      %v637 = vld [vmem:[#allocation11 + $0xb0] sm:$0xff]
      %v638 = vld [vmem:[#allocation11 + $0xb8] sm:$0xff]
      %v639 = vld [vmem:[#allocation11 + $0xc0] sm:$0xff]
      %v640 = vld [vmem:[#allocation11 + $0xc8] sm:$0xff]
      %v641 = vld [vmem:[#allocation11 + $0xd0] sm:$0xff]
      %v642 = vld [vmem:[#allocation11 + $0xd8] sm:$0xff]
      %v643 = vld [vmem:[#allocation11 + $0xe0] sm:$0xff]
      %v644 = vld [vmem:[#allocation11 + $0xe8] sm:$0xff]
      %v645 = vld [vmem:[#allocation11 + $0xf0] sm:$0xff]
      %v646 = vld [vmem:[#allocation11 + $0xf8] sm:$0xff]
      %v647 = vld [vmem:[#allocation12] sm:$0x3]
      %v649 = vperm.slane %v647, 0
      %v650 = vperm.slane %v647, 1
      %v685 = vunpack.c.l.b16 %v615
      %v686 = vunpack.c.h.b16 %v615
      %v687 = vunpack.c.l.b16 %v616
      %v688 = vunpack.c.h.b16 %v616
      %v689 = vunpack.c.l.b16 %v617
      %v690 = vunpack.c.h.b16 %v617
      %v691 = vunpack.c.l.b16 %v618
      %v692 = vunpack.c.h.b16 %v618
      %v693 = vunpack.c.l.b16 %v619
      %v694 = vunpack.c.h.b16 %v619
      %v695 = vunpack.c.l.b16 %v620
      %v696 = vunpack.c.h.b16 %v620
      %v697 = vunpack.c.l.b16 %v621
      %v698 = vunpack.c.h.b16 %v621
      %v699 = vunpack.c.l.b16 %v622
      %v700 = vunpack.c.h.b16 %v622
      %v701 = vunpack.c.l.b16 %v623
      %v702 = vunpack.c.h.b16 %v623
      %v703 = vunpack.c.l.b16 %v624
      %v704 = vunpack.c.h.b16 %v624
      %v705 = vunpack.c.l.b16 %v625
      %v706 = vunpack.c.h.b16 %v625
      %v707 = vunpack.c.l.b16 %v626
      %v708 = vunpack.c.h.b16 %v626
      %v709 = vunpack.c.l.b16 %v627
      %v710 = vunpack.c.h.b16 %v627
      %v711 = vunpack.c.l.b16 %v628
      %v712 = vunpack.c.h.b16 %v628
      %v713 = vunpack.c.l.b16 %v629
      %v714 = vunpack.c.h.b16 %v629
      %v715 = vunpack.c.l.b16 %v630
      %v716 = vunpack.c.h.b16 %v630
      %v717 = vunpack.c.l.b16 %v631
      %v718 = vunpack.c.h.b16 %v631
      %v719 = vunpack.c.l.b16 %v632
      %v720 = vunpack.c.h.b16 %v632
      %v721 = vunpack.c.l.b16 %v633
      %v722 = vunpack.c.h.b16 %v633
      %v723 = vunpack.c.l.b16 %v634
      %v724 = vunpack.c.h.b16 %v634
      %v725 = vunpack.c.l.b16 %v635
      %v726 = vunpack.c.h.b16 %v635
      %v727 = vunpack.c.l.b16 %v636
      %v728 = vunpack.c.h.b16 %v636
      %v729 = vunpack.c.l.b16 %v637
      %v730 = vunpack.c.h.b16 %v637
      %v731 = vunpack.c.l.b16 %v638
      %v732 = vunpack.c.h.b16 %v638
      %v733 = vunpack.c.l.b16 %v639
      %v734 = vunpack.c.h.b16 %v639
      %v735 = vunpack.c.l.b16 %v640
      %v736 = vunpack.c.h.b16 %v640
      %v737 = vunpack.c.l.b16 %v641
      %v738 = vunpack.c.h.b16 %v641
      %v739 = vunpack.c.l.b16 %v642
      %v740 = vunpack.c.h.b16 %v642
      %v741 = vunpack.c.l.b16 %v643
      %v742 = vunpack.c.h.b16 %v643
      %v743 = vunpack.c.l.b16 %v644
      %v744 = vunpack.c.h.b16 %v644
      %v745 = vunpack.c.l.b16 %v645
      %v746 = vunpack.c.h.b16 %v645
      %v747 = vunpack.c.l.b16 %v646
      %v748 = vunpack.c.h.b16 %v646
      %v749 = vpack.c.b16 %v687, %v685
      %v750 = vpack.c.b16 %v688, %v686
      %v751 = vpack.c.b16 %v691, %v689
      %v752 = vpack.c.b16 %v692, %v690
      %v753 = vpack.c.b16 %v695, %v693
      %v754 = vpack.c.b16 %v696, %v694
      %v755 = vpack.c.b16 %v699, %v697
      %v756 = vpack.c.b16 %v700, %v698
      %v757 = vpack.c.b16 %v703, %v701
      %v758 = vpack.c.b16 %v704, %v702
      %v759 = vpack.c.b16 %v707, %v705
      %v760 = vpack.c.b16 %v708, %v706
      %v761 = vpack.c.b16 %v711, %v709
      %v762 = vpack.c.b16 %v712, %v710
      %v763 = vpack.c.b16 %v715, %v713
      %v764 = vpack.c.b16 %v716, %v714
      %v765 = vpack.c.b16 %v719, %v717
      %v766 = vpack.c.b16 %v720, %v718
      %v767 = vpack.c.b16 %v723, %v721
      %v768 = vpack.c.b16 %v724, %v722
      %v769 = vpack.c.b16 %v727, %v725
      %v770 = vpack.c.b16 %v728, %v726
      %v771 = vpack.c.b16 %v731, %v729
      %v772 = vpack.c.b16 %v732, %v730
      %v773 = vpack.c.b16 %v735, %v733
      %v774 = vpack.c.b16 %v736, %v734
      %v775 = vpack.c.b16 %v739, %v737
      %v776 = vpack.c.b16 %v740, %v738
      %v777 = vpack.c.b16 %v743, %v741
      %v778 = vpack.c.b16 %v744, %v742
      %v779 = vpack.c.b16 %v747, %v745
      %v780 = vpack.c.b16 %v748, %v746
      %813 = vmatpush.bf16.msra.mxu0 %v763
      %814 = vmatpush.bf16.msra.mxu0 %v761
      %815 = vmatpush.bf16.msra.mxu0 %v759
      %816 = vmatpush.bf16.msra.mxu0 %v757
      %817 = vmatpush.bf16.msra.mxu0 %v755
      %818 = vmatpush.bf16.msra.mxu0 %v753
      %819 = vmatpush.bf16.msra.mxu0 %v751
      %820 = vmatpush.bf16.msra.mxu0 %v749
      %821 = vmatmul.bf16.gmra.mxu0 %v613
      %v822 = vpop.f32.mrf.mxu0
      %v823 = vadd.f32 %v649, %v822
      %v824 = vpop.f32.mrf.mxu0
      %825 = vdwg.mxu0
      %826 = vmatpush.bf16.msra.mxu0 %v779
      %827 = vmatpush.bf16.msra.mxu0 %v777
      %828 = vmatpush.bf16.msra.mxu0 %v775
      %829 = vmatpush.bf16.msra.mxu0 %v773
      %830 = vmatpush.bf16.msra.mxu0 %v771
      %831 = vmatpush.bf16.msra.mxu0 %v769
      %832 = vmatpush.bf16.msra.mxu0 %v767
      %833 = vmatpush.bf16.msra.mxu0 %v765
      %834 = vmatmul.bf16.gmra.mxu0 %v614
      %v835 = vpop.f32.mrf.mxu0
      %v836 = vadd.f32 %v823, %v835
      %v837 = vpop.f32.mrf.mxu0
      %838 = vdwg.mxu0
      %839 = vmatpush.bf16.msra.mxu0 %v764
      %840 = vmatpush.bf16.msra.mxu0 %v762
      %841 = vmatpush.bf16.msra.mxu0 %v760
      %842 = vmatpush.bf16.msra.mxu0 %v758
      %843 = vmatpush.bf16.msra.mxu0 %v756
      %844 = vmatpush.bf16.msra.mxu0 %v754
      %845 = vmatpush.bf16.msra.mxu0 %v752
      %846 = vmatpush.bf16.msra.mxu0 %v750
      %847 = vmatmul.bf16.gmra.mxu0 %v613
      %v848 = vpop.f32.mrf.mxu0
      %v849 = vadd.f32 %v650, %v848
      %v850 = vpop.f32.mrf.mxu0
      %851 = vdwg.mxu0
      %852 = vmatpush.bf16.msra.mxu0 %v780
      %853 = vmatpush.bf16.msra.mxu0 %v778
      %854 = vmatpush.bf16.msra.mxu0 %v776
      %855 = vmatpush.bf16.msra.mxu0 %v774
      %856 = vmatpush.bf16.msra.mxu0 %v772
      %857 = vmatpush.bf16.msra.mxu0 %v770
      %858 = vmatpush.bf16.msra.mxu0 %v768
      %859 = vmatpush.bf16.msra.mxu0 %v766
      %860 = vmatmul.bf16.gmra.mxu0 %v614
      %v861 = vpop.f32.mrf.mxu0
      %v862 = vadd.f32 %v849, %v861
      %v863 = vpop.f32.mrf.mxu0
      %864 = vdwg.mxu0
      %v865 = vmax.f32 %v836, 0.0
      %v866 = vmax.f32 %v862, 0.0
      %v867 = vpack.c.bf16 %v865, %v865
      %v868 = vpack.c.bf16 %v866, %v866
      %v869 = vld [vmem:[#allocation14] sm:$0xff]
      %v870 = vld [vmem:[#allocation14 + $0x8] sm:$0xff]
      %v871 = vld [vmem:[#allocation14 + $0x10] sm:$0xff]
      %v872 = vld [vmem:[#allocation14 + $0x18] sm:$0xff]
      %v873 = vld [vmem:[#allocation14 + $0x20] sm:$0xff]
      %v874 = vld [vmem:[#allocation14 + $0x28] sm:$0xff]
      %v875 = vld [vmem:[#allocation14 + $0x30] sm:$0xff]
      %v876 = vld [vmem:[#allocation14 + $0x38] sm:$0xff]
      %v877 = vld [vmem:[#allocation14 + $0x40] sm:$0xff]
      %v878 = vld [vmem:[#allocation14 + $0x48] sm:$0xff]
      %v879 = vld [vmem:[#allocation14 + $0x50] sm:$0xff]
      %v880 = vld [vmem:[#allocation14 + $0x58] sm:$0xff]
      %v881 = vld [vmem:[#allocation14 + $0x60] sm:$0xff]
      %v882 = vld [vmem:[#allocation14 + $0x68] sm:$0xff]
      %v883 = vld [vmem:[#allocation14 + $0x70] sm:$0xff]
      %v884 = vld [vmem:[#allocation14 + $0x78] sm:$0xff]
      %v885 = vld [vmem:[#allocation14 + $0x80] sm:$0xff]
      %v886 = vld [vmem:[#allocation14 + $0x88] sm:$0xff]
      %v887 = vld [vmem:[#allocation14 + $0x90] sm:$0xff]
      %v888 = vld [vmem:[#allocation14 + $0x98] sm:$0xff]
      %v889 = vld [vmem:[#allocation14 + $0xa0] sm:$0xff]
      %v890 = vld [vmem:[#allocation14 + $0xa8] sm:$0xff]
      %v891 = vld [vmem:[#allocation14 + $0xb0] sm:$0xff]
      %v892 = vld [vmem:[#allocation14 + $0xb8] sm:$0xff]
      %v893 = vld [vmem:[#allocation14 + $0xc0] sm:$0xff]
      %v894 = vld [vmem:[#allocation14 + $0xc8] sm:$0xff]
      %v895 = vld [vmem:[#allocation14 + $0xd0] sm:$0xff]
      %v896 = vld [vmem:[#allocation14 + $0xd8] sm:$0xff]
      %v897 = vld [vmem:[#allocation14 + $0xe0] sm:$0xff]
      %v898 = vld [vmem:[#allocation14 + $0xe8] sm:$0xff]
      %v899 = vld [vmem:[#allocation14 + $0xf0] sm:$0xff]
      %v900 = vld [vmem:[#allocation14 + $0xf8] sm:$0xff]
      %v901 = vld [vmem:[#allocation15] sm:$0x3]
      %v903 = vperm.slane %v901, 0
      %v904 = vperm.slane %v901, 1
      %v939 = vunpack.c.l.b16 %v869
      %v940 = vunpack.c.h.b16 %v869
      %v941 = vunpack.c.l.b16 %v870
      %v942 = vunpack.c.h.b16 %v870
      %v943 = vunpack.c.l.b16 %v871
      %v944 = vunpack.c.h.b16 %v871
      %v945 = vunpack.c.l.b16 %v872
      %v946 = vunpack.c.h.b16 %v872
      %v947 = vunpack.c.l.b16 %v873
      %v948 = vunpack.c.h.b16 %v873
      %v949 = vunpack.c.l.b16 %v874
      %v950 = vunpack.c.h.b16 %v874
      %v951 = vunpack.c.l.b16 %v875
      %v952 = vunpack.c.h.b16 %v875
      %v953 = vunpack.c.l.b16 %v876
      %v954 = vunpack.c.h.b16 %v876
      %v955 = vunpack.c.l.b16 %v877
      %v956 = vunpack.c.h.b16 %v877
      %v957 = vunpack.c.l.b16 %v878
      %v958 = vunpack.c.h.b16 %v878
      %v959 = vunpack.c.l.b16 %v879
      %v960 = vunpack.c.h.b16 %v879
      %v961 = vunpack.c.l.b16 %v880
      %v962 = vunpack.c.h.b16 %v880
      %v963 = vunpack.c.l.b16 %v881
      %v964 = vunpack.c.h.b16 %v881
      %v965 = vunpack.c.l.b16 %v882
      %v966 = vunpack.c.h.b16 %v882
      %v967 = vunpack.c.l.b16 %v883
      %v968 = vunpack.c.h.b16 %v883
      %v969 = vunpack.c.l.b16 %v884
      %v970 = vunpack.c.h.b16 %v884
      %v971 = vunpack.c.l.b16 %v885
      %v972 = vunpack.c.h.b16 %v885
      %v973 = vunpack.c.l.b16 %v886
      %v974 = vunpack.c.h.b16 %v886
      %v975 = vunpack.c.l.b16 %v887
      %v976 = vunpack.c.h.b16 %v887
      %v977 = vunpack.c.l.b16 %v888
      %v978 = vunpack.c.h.b16 %v888
      %v979 = vunpack.c.l.b16 %v889
      %v980 = vunpack.c.h.b16 %v889
      %v981 = vunpack.c.l.b16 %v890
      %v982 = vunpack.c.h.b16 %v890
      %v983 = vunpack.c.l.b16 %v891
      %v984 = vunpack.c.h.b16 %v891
      %v985 = vunpack.c.l.b16 %v892
      %v986 = vunpack.c.h.b16 %v892
      %v987 = vunpack.c.l.b16 %v893
      %v988 = vunpack.c.h.b16 %v893
      %v989 = vunpack.c.l.b16 %v894
      %v990 = vunpack.c.h.b16 %v894
      %v991 = vunpack.c.l.b16 %v895
      %v992 = vunpack.c.h.b16 %v895
      %v993 = vunpack.c.l.b16 %v896
      %v994 = vunpack.c.h.b16 %v896
      %v995 = vunpack.c.l.b16 %v897
      %v996 = vunpack.c.h.b16 %v897
      %v997 = vunpack.c.l.b16 %v898
      %v998 = vunpack.c.h.b16 %v898
      %v999 = vunpack.c.l.b16 %v899
      %v1000 = vunpack.c.h.b16 %v899
      %v1001 = vunpack.c.l.b16 %v900
      %v1002 = vunpack.c.h.b16 %v900
      %v1003 = vpack.c.b16 %v941, %v939
      %v1004 = vpack.c.b16 %v942, %v940
      %v1005 = vpack.c.b16 %v945, %v943
      %v1006 = vpack.c.b16 %v946, %v944
      %v1007 = vpack.c.b16 %v949, %v947
      %v1008 = vpack.c.b16 %v950, %v948
      %v1009 = vpack.c.b16 %v953, %v951
      %v1010 = vpack.c.b16 %v954, %v952
      %v1011 = vpack.c.b16 %v957, %v955
      %v1012 = vpack.c.b16 %v958, %v956
      %v1013 = vpack.c.b16 %v961, %v959
      %v1014 = vpack.c.b16 %v962, %v960
      %v1015 = vpack.c.b16 %v965, %v963
      %v1016 = vpack.c.b16 %v966, %v964
      %v1017 = vpack.c.b16 %v969, %v967
      %v1018 = vpack.c.b16 %v970, %v968
      %v1019 = vpack.c.b16 %v973, %v971
      %v1020 = vpack.c.b16 %v974, %v972
      %v1021 = vpack.c.b16 %v977, %v975
      %v1022 = vpack.c.b16 %v978, %v976
      %v1023 = vpack.c.b16 %v981, %v979
      %v1024 = vpack.c.b16 %v982, %v980
      %v1025 = vpack.c.b16 %v985, %v983
      %v1026 = vpack.c.b16 %v986, %v984
      %v1027 = vpack.c.b16 %v989, %v987
      %v1028 = vpack.c.b16 %v990, %v988
      %v1029 = vpack.c.b16 %v993, %v991
      %v1030 = vpack.c.b16 %v994, %v992
      %v1031 = vpack.c.b16 %v997, %v995
      %v1032 = vpack.c.b16 %v998, %v996
      %v1033 = vpack.c.b16 %v1001, %v999
      %v1034 = vpack.c.b16 %v1002, %v1000
      %1067 = vmatpush.bf16.msra.mxu0 %v1017
      %1068 = vmatpush.bf16.msra.mxu0 %v1015
      %1069 = vmatpush.bf16.msra.mxu0 %v1013
      %1070 = vmatpush.bf16.msra.mxu0 %v1011
      %1071 = vmatpush.bf16.msra.mxu0 %v1009
      %1072 = vmatpush.bf16.msra.mxu0 %v1007
      %1073 = vmatpush.bf16.msra.mxu0 %v1005
      %1074 = vmatpush.bf16.msra.mxu0 %v1003
      %1075 = vmatmul.bf16.gmra.mxu0 %v867
      %v1076 = vpop.f32.mrf.mxu0
      %v1077 = vadd.f32 %v903, %v1076
      %v1078 = vpop.f32.mrf.mxu0
      %1079 = vdwg.mxu0
      %1080 = vmatpush.bf16.msra.mxu0 %v1033
      %1081 = vmatpush.bf16.msra.mxu0 %v1031
      %1082 = vmatpush.bf16.msra.mxu0 %v1029
      %1083 = vmatpush.bf16.msra.mxu0 %v1027
      %1084 = vmatpush.bf16.msra.mxu0 %v1025
      %1085 = vmatpush.bf16.msra.mxu0 %v1023
      %1086 = vmatpush.bf16.msra.mxu0 %v1021
      %1087 = vmatpush.bf16.msra.mxu0 %v1019
      %1088 = vmatmul.bf16.gmra.mxu0 %v868
      %v1089 = vpop.f32.mrf.mxu0
      %v1090 = vadd.f32 %v1077, %v1089
      %v1091 = vpop.f32.mrf.mxu0
      %1092 = vdwg.mxu0
      %1093 = vmatpush.bf16.msra.mxu0 %v1018
      %1094 = vmatpush.bf16.msra.mxu0 %v1016
      %1095 = vmatpush.bf16.msra.mxu0 %v1014
      %1096 = vmatpush.bf16.msra.mxu0 %v1012
      %1097 = vmatpush.bf16.msra.mxu0 %v1010
      %1098 = vmatpush.bf16.msra.mxu0 %v1008
      %1099 = vmatpush.bf16.msra.mxu0 %v1006
      %1100 = vmatpush.bf16.msra.mxu0 %v1004
      %1101 = vmatmul.bf16.gmra.mxu0 %v867
      %v1102 = vpop.f32.mrf.mxu0
      %v1103 = vadd.f32 %v904, %v1102
      %v1104 = vpop.f32.mrf.mxu0
      %1105 = vdwg.mxu0
      %1106 = vmatpush.bf16.msra.mxu0 %v1034
      %1107 = vmatpush.bf16.msra.mxu0 %v1032
      %1108 = vmatpush.bf16.msra.mxu0 %v1030
      %1109 = vmatpush.bf16.msra.mxu0 %v1028
      %1110 = vmatpush.bf16.msra.mxu0 %v1026
      %1111 = vmatpush.bf16.msra.mxu0 %v1024
      %1112 = vmatpush.bf16.msra.mxu0 %v1022
      %1113 = vmatpush.bf16.msra.mxu0 %v1020
      %1114 = vmatmul.bf16.gmra.mxu0 %v868
      %v1115 = vpop.f32.mrf.mxu0
      %v1116 = vadd.f32 %v1103, %v1115
      %v1117 = vpop.f32.mrf.mxu0
      %1118 = vdwg.mxu0
      %v1119 = vmax.f32 %v1090, 0.0
      %v1120 = vmax.f32 %v1116, 0.0
      %v1121 = vpack.c.bf16 %v1119, %v1119
      %v1122 = vpack.c.bf16 %v1120, %v1120
      %v1123 = vld [vmem:[#allocation17] sm:$0xff]
      %v1124 = vld [vmem:[#allocation17 + $0x8] sm:$0xff]
      %v1125 = vld [vmem:[#allocation17 + $0x10] sm:$0xff]
      %v1126 = vld [vmem:[#allocation17 + $0x18] sm:$0xff]
      %v1127 = vld [vmem:[#allocation17 + $0x20] sm:$0xff]
      %v1128 = vld [vmem:[#allocation17 + $0x28] sm:$0xff]
      %v1129 = vld [vmem:[#allocation17 + $0x30] sm:$0xff]
      %v1130 = vld [vmem:[#allocation17 + $0x38] sm:$0xff]
      %v1131 = vld [vmem:[#allocation17 + $0x40] sm:$0xff]
      %v1132 = vld [vmem:[#allocation17 + $0x48] sm:$0xff]
      %v1133 = vld [vmem:[#allocation17 + $0x50] sm:$0xff]
      %v1134 = vld [vmem:[#allocation17 + $0x58] sm:$0xff]
      %v1135 = vld [vmem:[#allocation17 + $0x60] sm:$0xff]
      %v1136 = vld [vmem:[#allocation17 + $0x68] sm:$0xff]
      %v1137 = vld [vmem:[#allocation17 + $0x70] sm:$0xff]
      %v1138 = vld [vmem:[#allocation17 + $0x78] sm:$0xff]
      %v1139 = vld [vmem:[#allocation17 + $0x80] sm:$0xff]
      %v1140 = vld [vmem:[#allocation17 + $0x88] sm:$0xff]
      %v1141 = vld [vmem:[#allocation17 + $0x90] sm:$0xff]
      %v1142 = vld [vmem:[#allocation17 + $0x98] sm:$0xff]
      %v1143 = vld [vmem:[#allocation17 + $0xa0] sm:$0xff]
      %v1144 = vld [vmem:[#allocation17 + $0xa8] sm:$0xff]
      %v1145 = vld [vmem:[#allocation17 + $0xb0] sm:$0xff]
      %v1146 = vld [vmem:[#allocation17 + $0xb8] sm:$0xff]
      %v1147 = vld [vmem:[#allocation17 + $0xc0] sm:$0xff]
      %v1148 = vld [vmem:[#allocation17 + $0xc8] sm:$0xff]
      %v1149 = vld [vmem:[#allocation17 + $0xd0] sm:$0xff]
      %v1150 = vld [vmem:[#allocation17 + $0xd8] sm:$0xff]
      %v1151 = vld [vmem:[#allocation17 + $0xe0] sm:$0xff]
      %v1152 = vld [vmem:[#allocation17 + $0xe8] sm:$0xff]
      %v1153 = vld [vmem:[#allocation17 + $0xf0] sm:$0xff]
      %v1154 = vld [vmem:[#allocation17 + $0xf8] sm:$0xff]
      %v1155 = vld [vmem:[#allocation18] sm:$0x3]
      %v1157 = vperm.slane %v1155, 0
      %v1158 = vperm.slane %v1155, 1
      %v1193 = vunpack.c.l.b16 %v1123
      %v1194 = vunpack.c.h.b16 %v1123
      %v1195 = vunpack.c.l.b16 %v1124
      %v1196 = vunpack.c.h.b16 %v1124
      %v1197 = vunpack.c.l.b16 %v1125
      %v1198 = vunpack.c.h.b16 %v1125
      %v1199 = vunpack.c.l.b16 %v1126
      %v1200 = vunpack.c.h.b16 %v1126
      %v1201 = vunpack.c.l.b16 %v1127
      %v1202 = vunpack.c.h.b16 %v1127
      %v1203 = vunpack.c.l.b16 %v1128
      %v1204 = vunpack.c.h.b16 %v1128
      %v1205 = vunpack.c.l.b16 %v1129
      %v1206 = vunpack.c.h.b16 %v1129
      %v1207 = vunpack.c.l.b16 %v1130
      %v1208 = vunpack.c.h.b16 %v1130
      %v1209 = vunpack.c.l.b16 %v1131
      %v1210 = vunpack.c.h.b16 %v1131
      %v1211 = vunpack.c.l.b16 %v1132
      %v1212 = vunpack.c.h.b16 %v1132
      %v1213 = vunpack.c.l.b16 %v1133
      %v1214 = vunpack.c.h.b16 %v1133
      %v1215 = vunpack.c.l.b16 %v1134
      %v1216 = vunpack.c.h.b16 %v1134
      %v1217 = vunpack.c.l.b16 %v1135
      %v1218 = vunpack.c.h.b16 %v1135
      %v1219 = vunpack.c.l.b16 %v1136
      %v1220 = vunpack.c.h.b16 %v1136
      %v1221 = vunpack.c.l.b16 %v1137
      %v1222 = vunpack.c.h.b16 %v1137
      %v1223 = vunpack.c.l.b16 %v1138
      %v1224 = vunpack.c.h.b16 %v1138
      %v1225 = vunpack.c.l.b16 %v1139
      %v1226 = vunpack.c.h.b16 %v1139
      %v1227 = vunpack.c.l.b16 %v1140
      %v1228 = vunpack.c.h.b16 %v1140
      %v1229 = vunpack.c.l.b16 %v1141
      %v1230 = vunpack.c.h.b16 %v1141
      %v1231 = vunpack.c.l.b16 %v1142
      %v1232 = vunpack.c.h.b16 %v1142
      %v1233 = vunpack.c.l.b16 %v1143
      %v1234 = vunpack.c.h.b16 %v1143
      %v1235 = vunpack.c.l.b16 %v1144
      %v1236 = vunpack.c.h.b16 %v1144
      %v1237 = vunpack.c.l.b16 %v1145
      %v1238 = vunpack.c.h.b16 %v1145
      %v1239 = vunpack.c.l.b16 %v1146
      %v1240 = vunpack.c.h.b16 %v1146
      %v1241 = vunpack.c.l.b16 %v1147
      %v1242 = vunpack.c.h.b16 %v1147
      %v1243 = vunpack.c.l.b16 %v1148
      %v1244 = vunpack.c.h.b16 %v1148
      %v1245 = vunpack.c.l.b16 %v1149
      %v1246 = vunpack.c.h.b16 %v1149
      %v1247 = vunpack.c.l.b16 %v1150
      %v1248 = vunpack.c.h.b16 %v1150
      %v1249 = vunpack.c.l.b16 %v1151
      %v1250 = vunpack.c.h.b16 %v1151
      %v1251 = vunpack.c.l.b16 %v1152
      %v1252 = vunpack.c.h.b16 %v1152
      %v1253 = vunpack.c.l.b16 %v1153
      %v1254 = vunpack.c.h.b16 %v1153
      %v1255 = vunpack.c.l.b16 %v1154
      %v1256 = vunpack.c.h.b16 %v1154
      %v1257 = vpack.c.b16 %v1195, %v1193
      %v1258 = vpack.c.b16 %v1196, %v1194
      %v1259 = vpack.c.b16 %v1199, %v1197
      %v1260 = vpack.c.b16 %v1200, %v1198
      %v1261 = vpack.c.b16 %v1203, %v1201
      %v1262 = vpack.c.b16 %v1204, %v1202
      %v1263 = vpack.c.b16 %v1207, %v1205
      %v1264 = vpack.c.b16 %v1208, %v1206
      %v1265 = vpack.c.b16 %v1211, %v1209
      %v1266 = vpack.c.b16 %v1212, %v1210
      %v1267 = vpack.c.b16 %v1215, %v1213
      %v1268 = vpack.c.b16 %v1216, %v1214
      %v1269 = vpack.c.b16 %v1219, %v1217
      %v1270 = vpack.c.b16 %v1220, %v1218
      %v1271 = vpack.c.b16 %v1223, %v1221
      %v1272 = vpack.c.b16 %v1224, %v1222
      %v1273 = vpack.c.b16 %v1227, %v1225
      %v1274 = vpack.c.b16 %v1228, %v1226
      %v1275 = vpack.c.b16 %v1231, %v1229
      %v1276 = vpack.c.b16 %v1232, %v1230
      %v1277 = vpack.c.b16 %v1235, %v1233
      %v1278 = vpack.c.b16 %v1236, %v1234
      %v1279 = vpack.c.b16 %v1239, %v1237
      %v1280 = vpack.c.b16 %v1240, %v1238
      %v1281 = vpack.c.b16 %v1243, %v1241
      %v1282 = vpack.c.b16 %v1244, %v1242
      %v1283 = vpack.c.b16 %v1247, %v1245
      %v1284 = vpack.c.b16 %v1248, %v1246
      %v1285 = vpack.c.b16 %v1251, %v1249
      %v1286 = vpack.c.b16 %v1252, %v1250
      %v1287 = vpack.c.b16 %v1255, %v1253
      %v1288 = vpack.c.b16 %v1256, %v1254
      %1321 = vmatpush.bf16.msra.mxu0 %v1271
      %1322 = vmatpush.bf16.msra.mxu0 %v1269
      %1323 = vmatpush.bf16.msra.mxu0 %v1267
      %1324 = vmatpush.bf16.msra.mxu0 %v1265
      %1325 = vmatpush.bf16.msra.mxu0 %v1263
      %1326 = vmatpush.bf16.msra.mxu0 %v1261
      %1327 = vmatpush.bf16.msra.mxu0 %v1259
      %1328 = vmatpush.bf16.msra.mxu0 %v1257
      %1329 = vmatmul.bf16.gmra.mxu0 %v1121
      %v1330 = vpop.f32.mrf.mxu0
      %v1331 = vadd.f32 %v1157, %v1330
      %v1332 = vpop.f32.mrf.mxu0
      %1333 = vdwg.mxu0
      %1334 = vmatpush.bf16.msra.mxu0 %v1287
      %1335 = vmatpush.bf16.msra.mxu0 %v1285
      %1336 = vmatpush.bf16.msra.mxu0 %v1283
      %1337 = vmatpush.bf16.msra.mxu0 %v1281
      %1338 = vmatpush.bf16.msra.mxu0 %v1279
      %1339 = vmatpush.bf16.msra.mxu0 %v1277
      %1340 = vmatpush.bf16.msra.mxu0 %v1275
      %1341 = vmatpush.bf16.msra.mxu0 %v1273
      %1342 = vmatmul.bf16.gmra.mxu0 %v1122
      %v1343 = vpop.f32.mrf.mxu0
      %v1344 = vadd.f32 %v1331, %v1343
      %v1345 = vpop.f32.mrf.mxu0
      %1346 = vdwg.mxu0
      %1347 = vmatpush.bf16.msra.mxu0 %v1272
      %1348 = vmatpush.bf16.msra.mxu0 %v1270
      %1349 = vmatpush.bf16.msra.mxu0 %v1268
      %1350 = vmatpush.bf16.msra.mxu0 %v1266
      %1351 = vmatpush.bf16.msra.mxu0 %v1264
      %1352 = vmatpush.bf16.msra.mxu0 %v1262
      %1353 = vmatpush.bf16.msra.mxu0 %v1260
      %1354 = vmatpush.bf16.msra.mxu0 %v1258
      %1355 = vmatmul.bf16.gmra.mxu0 %v1121
      %v1356 = vpop.f32.mrf.mxu0
      %v1357 = vadd.f32 %v1158, %v1356
      %v1358 = vpop.f32.mrf.mxu0
      %1359 = vdwg.mxu0
      %1360 = vmatpush.bf16.msra.mxu0 %v1288
      %1361 = vmatpush.bf16.msra.mxu0 %v1286
      %1362 = vmatpush.bf16.msra.mxu0 %v1284
      %1363 = vmatpush.bf16.msra.mxu0 %v1282
      %1364 = vmatpush.bf16.msra.mxu0 %v1280
      %1365 = vmatpush.bf16.msra.mxu0 %v1278
      %1366 = vmatpush.bf16.msra.mxu0 %v1276
      %1367 = vmatpush.bf16.msra.mxu0 %v1274
      %1368 = vmatmul.bf16.gmra.mxu0 %v1122
      %v1369 = vpop.f32.mrf.mxu0
      %v1370 = vadd.f32 %v1357, %v1369
      %v1371 = vpop.f32.mrf.mxu0
      %1372 = vdwg.mxu0
      %v1373 = vmax.f32 %v1344, 0.0
      %v1374 = vmax.f32 %v1370, 0.0
      %v1375 = vpack.c.bf16 %v603, %v603
      %v1376 = vpack.c.bf16 %v604, %v604
      %v1377 = vpack.c.bf16 %v605, %v605
      %v1378 = vpack.c.bf16 %v606, %v606
      %v1379 = vpack.c.bf16 %v607, %v607
      %v1380 = vpack.c.bf16 %v608, %v608
      %v1381 = vpack.c.bf16 %v609, %v609
      %v1382 = vpack.c.bf16 %v610, %v610
      %v1383 = vld [vmem:[#allocation20] sm:$0xff]
      %v1384 = vld [vmem:[#allocation20 + $0x8] sm:$0xff]
      %v1385 = vld [vmem:[#allocation20 + $0x10] sm:$0xf]
      %v1386 = vld [vmem:[#allocation20 + $0x14] sm:$0xff]
      %v1387 = vld [vmem:[#allocation20 + $0x1c] sm:$0xff]
      %v1388 = vld [vmem:[#allocation20 + $0x24] sm:$0xf]
      %v1389 = vld [vmem:[#allocation20 + $0x28] sm:$0xff]
      %v1390 = vld [vmem:[#allocation20 + $0x30] sm:$0xff]
      %v1391 = vld [vmem:[#allocation20 + $0x38] sm:$0xf]
      %v1392 = vld [vmem:[#allocation20 + $0x3c] sm:$0xff]
      %v1393 = vld [vmem:[#allocation20 + $0x44] sm:$0xff]
      %v1394 = vld [vmem:[#allocation20 + $0x4c] sm:$0xf]
      %v1395 = vld [vmem:[#allocation20 + $0x50] sm:$0xff]
      %v1396 = vld [vmem:[#allocation20 + $0x58] sm:$0xff]
      %v1397 = vld [vmem:[#allocation20 + $0x60] sm:$0xf]
      %v1398 = vld [vmem:[#allocation20 + $0x64] sm:$0xff]
      %v1399 = vld [vmem:[#allocation20 + $0x6c] sm:$0xff]
      %v1400 = vld [vmem:[#allocation20 + $0x74] sm:$0xf]
      %v1401 = vld [vmem:[#allocation20 + $0x78] sm:$0xff]
      %v1402 = vld [vmem:[#allocation20 + $0x80] sm:$0xff]
      %v1403 = vld [vmem:[#allocation20 + $0x88] sm:$0xf]
      %v1404 = vld [vmem:[#allocation20 + $0x8c] sm:$0xff]
      %v1405 = vld [vmem:[#allocation20 + $0x94] sm:$0xff]
      %v1406 = vld [vmem:[#allocation20 + $0x9c] sm:$0xf]
      %v1407 = vld [vmem:[#allocation20 + $0xa0] sm:$0xff]
      %v1408 = vld [vmem:[#allocation20 + $0xa8] sm:$0xff]
      %v1409 = vld [vmem:[#allocation20 + $0xb0] sm:$0xf]
      %v1410 = vld [vmem:[#allocation20 + $0xb4] sm:$0xff]
      %v1411 = vld [vmem:[#allocation20 + $0xbc] sm:$0xff]
      %v1412 = vld [vmem:[#allocation20 + $0xc4] sm:$0xf]
      %v1413 = vld [vmem:[#allocation20 + $0xc8] sm:$0xff]
      %v1414 = vld [vmem:[#allocation20 + $0xd0] sm:$0xff]
      %v1415 = vld [vmem:[#allocation20 + $0xd8] sm:$0xf]
      %v1416 = vld [vmem:[#allocation20 + $0xdc] sm:$0xff]
      %v1417 = vld [vmem:[#allocation20 + $0xe4] sm:$0xff]
      %v1418 = vld [vmem:[#allocation20 + $0xec] sm:$0xf]
      %v1419 = vld [vmem:[#allocation20 + $0xf0] sm:$0xff]
      %v1420 = vld [vmem:[#allocation20 + $0xf8] sm:$0xff]
      %v1421 = vld [vmem:[#allocation20 + $0x100] sm:$0xf]
      %v1422 = vld [vmem:[#allocation20 + $0x104] sm:$0xff]
      %v1423 = vld [vmem:[#allocation20 + $0x10c] sm:$0xff]
      %v1424 = vld [vmem:[#allocation20 + $0x114] sm:$0xf]
      %v1425 = vld [vmem:[#allocation20 + $0x118] sm:$0xff]
      %v1426 = vld [vmem:[#allocation20 + $0x120] sm:$0xff]
      %v1427 = vld [vmem:[#allocation20 + $0x128] sm:$0xf]
      %v1428 = vld [vmem:[#allocation20 + $0x12c] sm:$0xff]
      %v1429 = vld [vmem:[#allocation20 + $0x134] sm:$0xff]
      %v1430 = vld [vmem:[#allocation20 + $0x13c] sm:$0xf]
      %v1431 = vld [vmem:[#allocation20 + $0x140] sm:$0xff]
      %v1432 = vld [vmem:[#allocation20 + $0x148] sm:$0xff]
      %v1433 = vld [vmem:[#allocation20 + $0x150] sm:$0xf]
      %v1434 = vld [vmem:[#allocation20 + $0x154] sm:$0xff]
      %v1435 = vld [vmem:[#allocation20 + $0x15c] sm:$0xff]
      %v1436 = vld [vmem:[#allocation20 + $0x164] sm:$0xf]
      %v1437 = vld [vmem:[#allocation20 + $0x168] sm:$0xff]
      %v1438 = vld [vmem:[#allocation20 + $0x170] sm:$0xff]
      %v1439 = vld [vmem:[#allocation20 + $0x178] sm:$0xf]
      %v1440 = vld [vmem:[#allocation20 + $0x17c] sm:$0xff]
      %v1441 = vld [vmem:[#allocation20 + $0x184] sm:$0xff]
      %v1442 = vld [vmem:[#allocation20 + $0x18c] sm:$0xf]
      %v1443 = vld [vmem:[#allocation20 + $0x190] sm:$0xff]
      %v1444 = vld [vmem:[#allocation20 + $0x198] sm:$0xff]
      %v1445 = vld [vmem:[#allocation20 + $0x1a0] sm:$0xf]
      %v1446 = vld [vmem:[#allocation20 + $0x1a4] sm:$0xff]
      %v1447 = vld [vmem:[#allocation20 + $0x1ac] sm:$0xff]
      %v1448 = vld [vmem:[#allocation20 + $0x1b4] sm:$0xf]
      %v1449 = vld [vmem:[#allocation20 + $0x1b8] sm:$0xff]
      %v1450 = vld [vmem:[#allocation20 + $0x1c0] sm:$0xff]
      %v1451 = vld [vmem:[#allocation20 + $0x1c8] sm:$0xf]
      %v1452 = vld [vmem:[#allocation20 + $0x1cc] sm:$0xff]
      %v1453 = vld [vmem:[#allocation20 + $0x1d4] sm:$0xff]
      %v1454 = vld [vmem:[#allocation20 + $0x1dc] sm:$0xf]
      %v1455 = vld [vmem:[#allocation20 + $0x1e0] sm:$0xff]
      %v1456 = vld [vmem:[#allocation20 + $0x1e8] sm:$0xff]
      %v1457 = vld [vmem:[#allocation20 + $0x1f0] sm:$0xf]
      %v1458 = vld [vmem:[#allocation20 + $0x1f4] sm:$0xff]
      %v1459 = vld [vmem:[#allocation20 + $0x1fc] sm:$0xff]
      %v1460 = vld [vmem:[#allocation20 + $0x204] sm:$0xf]
      %v1461 = vld [vmem:[#allocation20 + $0x208] sm:$0xff]
      %v1462 = vld [vmem:[#allocation20 + $0x210] sm:$0xff]
      %v1463 = vld [vmem:[#allocation20 + $0x218] sm:$0xf]
      %v1464 = vld [vmem:[#allocation20 + $0x21c] sm:$0xff]
      %v1465 = vld [vmem:[#allocation20 + $0x224] sm:$0xff]
      %v1466 = vld [vmem:[#allocation20 + $0x22c] sm:$0xf]
      %v1467 = vld [vmem:[#allocation20 + $0x230] sm:$0xff]
      %v1468 = vld [vmem:[#allocation20 + $0x238] sm:$0xff]
      %v1469 = vld [vmem:[#allocation20 + $0x240] sm:$0xf]
      %v1470 = vld [vmem:[#allocation20 + $0x244] sm:$0xff]
      %v1471 = vld [vmem:[#allocation20 + $0x24c] sm:$0xff]
      %v1472 = vld [vmem:[#allocation20 + $0x254] sm:$0xf]
      %v1473 = vld [vmem:[#allocation20 + $0x258] sm:$0xff]
      %v1474 = vld [vmem:[#allocation20 + $0x260] sm:$0xff]
      %v1475 = vld [vmem:[#allocation20 + $0x268] sm:$0xf]
      %v1476 = vld [vmem:[#allocation20 + $0x26c] sm:$0xff]
      %v1477 = vld [vmem:[#allocation20 + $0x274] sm:$0xff]
      %v1478 = vld [vmem:[#allocation20 + $0x27c] sm:$0xf]
      %v1479 = vld [vmem:[#allocation20 + $0x280] sm:$0xff]
      %v1480 = vld [vmem:[#allocation20 + $0x288] sm:$0xff]
      %v1481 = vld [vmem:[#allocation20 + $0x290] sm:$0xf]
      %v1482 = vld [vmem:[#allocation20 + $0x294] sm:$0xff]
      %v1483 = vld [vmem:[#allocation20 + $0x29c] sm:$0xff]
      %v1484 = vld [vmem:[#allocation20 + $0x2a4] sm:$0xf]
      %v1485 = vld [vmem:[#allocation20 + $0x2a8] sm:$0xff]
      %v1486 = vld [vmem:[#allocation20 + $0x2b0] sm:$0xff]
      %v1487 = vld [vmem:[#allocation20 + $0x2b8] sm:$0xf]
      %v1488 = vld [vmem:[#allocation20 + $0x2bc] sm:$0xff]
      %v1489 = vld [vmem:[#allocation20 + $0x2c4] sm:$0xff]
      %v1490 = vld [vmem:[#allocation20 + $0x2cc] sm:$0xf]
      %v1491 = vld [vmem:[#allocation20 + $0x2d0] sm:$0xff]
      %v1492 = vld [vmem:[#allocation20 + $0x2d8] sm:$0xff]
      %v1493 = vld [vmem:[#allocation20 + $0x2e0] sm:$0xf]
      %v1494 = vld [vmem:[#allocation20 + $0x2e4] sm:$0xff]
      %v1495 = vld [vmem:[#allocation20 + $0x2ec] sm:$0xff]
      %v1496 = vld [vmem:[#allocation20 + $0x2f4] sm:$0xf]
      %v1497 = vld [vmem:[#allocation20 + $0x2f8] sm:$0xff]
      %v1498 = vld [vmem:[#allocation20 + $0x300] sm:$0xff]
      %v1499 = vld [vmem:[#allocation20 + $0x308] sm:$0xf]
      %v1500 = vld [vmem:[#allocation20 + $0x30c] sm:$0xff]
      %v1501 = vld [vmem:[#allocation20 + $0x314] sm:$0xff]
      %v1502 = vld [vmem:[#allocation20 + $0x31c] sm:$0xf]
      %v1503 = vld [vmem:[#allocation20 + $0x320] sm:$0xff]
      %v1504 = vld [vmem:[#allocation20 + $0x328] sm:$0xff]
      %v1505 = vld [vmem:[#allocation20 + $0x330] sm:$0xf]
      %v1506 = vld [vmem:[#allocation20 + $0x334] sm:$0xff]
      %v1507 = vld [vmem:[#allocation20 + $0x33c] sm:$0xff]
      %v1508 = vld [vmem:[#allocation20 + $0x344] sm:$0xf]
      %v1509 = vld [vmem:[#allocation20 + $0x348] sm:$0xff]
      %v1510 = vld [vmem:[#allocation20 + $0x350] sm:$0xff]
      %v1511 = vld [vmem:[#allocation20 + $0x358] sm:$0xf]
      %v1512 = vld [vmem:[#allocation20 + $0x35c] sm:$0xff]
      %v1513 = vld [vmem:[#allocation20 + $0x364] sm:$0xff]
      %v1514 = vld [vmem:[#allocation20 + $0x36c] sm:$0xf]
      %v1515 = vld [vmem:[#allocation20 + $0x370] sm:$0xff]
      %v1516 = vld [vmem:[#allocation20 + $0x378] sm:$0xff]
      %v1517 = vld [vmem:[#allocation20 + $0x380] sm:$0xf]
      %v1518 = vld [vmem:[#allocation20 + $0x384] sm:$0xff]
      %v1519 = vld [vmem:[#allocation20 + $0x38c] sm:$0xff]
      %v1520 = vld [vmem:[#allocation20 + $0x394] sm:$0xf]
      %v1521 = vld [vmem:[#allocation20 + $0x398] sm:$0xff]
      %v1522 = vld [vmem:[#allocation20 + $0x3a0] sm:$0xff]
      %v1523 = vld [vmem:[#allocation20 + $0x3a8] sm:$0xf]
      %v1524 = vld [vmem:[#allocation20 + $0x3ac] sm:$0xff]
      %v1525 = vld [vmem:[#allocation20 + $0x3b4] sm:$0xff]
      %v1526 = vld [vmem:[#allocation20 + $0x3bc] sm:$0xf]
      %v1527 = vld [vmem:[#allocation20 + $0x3c0] sm:$0xff]
      %v1528 = vld [vmem:[#allocation20 + $0x3c8] sm:$0xff]
      %v1529 = vld [vmem:[#allocation20 + $0x3d0] sm:$0xf]
      %v1530 = vld [vmem:[#allocation20 + $0x3d4] sm:$0xff]
      %v1531 = vld [vmem:[#allocation20 + $0x3dc] sm:$0xff]
      %v1532 = vld [vmem:[#allocation20 + $0x3e4] sm:$0xf]
      %v1533 = vld [vmem:[#allocation20 + $0x3e8] sm:$0xff]
      %v1534 = vld [vmem:[#allocation20 + $0x3f0] sm:$0xff]
      %v1535 = vld [vmem:[#allocation20 + $0x3f8] sm:$0xf]
      %v1536 = vld [vmem:[#allocation20 + $0x3fc] sm:$0xff]
      %v1537 = vld [vmem:[#allocation20 + $0x404] sm:$0xff]
      %v1538 = vld [vmem:[#allocation20 + $0x40c] sm:$0xf]
      %v1539 = vld [vmem:[#allocation20 + $0x410] sm:$0xff]
      %v1540 = vld [vmem:[#allocation20 + $0x418] sm:$0xff]
      %v1541 = vld [vmem:[#allocation20 + $0x420] sm:$0xf]
      %v1542 = vld [vmem:[#allocation20 + $0x424] sm:$0xff]
      %v1543 = vld [vmem:[#allocation20 + $0x42c] sm:$0xff]
      %v1544 = vld [vmem:[#allocation20 + $0x434] sm:$0xf]
      %v1545 = vld [vmem:[#allocation20 + $0x438] sm:$0xff]
      %v1546 = vld [vmem:[#allocation20 + $0x440] sm:$0xff]
      %v1547 = vld [vmem:[#allocation20 + $0x448] sm:$0xf]
      %v1548 = vld [vmem:[#allocation20 + $0x44c] sm:$0xff]
      %v1549 = vld [vmem:[#allocation20 + $0x454] sm:$0xff]
      %v1550 = vld [vmem:[#allocation20 + $0x45c] sm:$0xf]
      %v1551 = vld [vmem:[#allocation20 + $0x460] sm:$0xff]
      %v1552 = vld [vmem:[#allocation20 + $0x468] sm:$0xff]
      %v1553 = vld [vmem:[#allocation20 + $0x470] sm:$0xf]
      %v1554 = vld [vmem:[#allocation20 + $0x474] sm:$0xff]
      %v1555 = vld [vmem:[#allocation20 + $0x47c] sm:$0xff]
      %v1556 = vld [vmem:[#allocation20 + $0x484] sm:$0xf]
      %v1557 = vld [vmem:[#allocation20 + $0x488] sm:$0xff]
      %v1558 = vld [vmem:[#allocation20 + $0x490] sm:$0xff]
      %v1559 = vld [vmem:[#allocation20 + $0x498] sm:$0xf]
      %v1560 = vld [vmem:[#allocation20 + $0x49c] sm:$0xff]
      %v1561 = vld [vmem:[#allocation20 + $0x4a4] sm:$0xff]
      %v1562 = vld [vmem:[#allocation20 + $0x4ac] sm:$0xf]
      %v1563 = vld [vmem:[#allocation20 + $0x4b0] sm:$0xff]
      %v1564 = vld [vmem:[#allocation20 + $0x4b8] sm:$0xff]
      %v1565 = vld [vmem:[#allocation20 + $0x4c0] sm:$0xf]
      %v1566 = vld [vmem:[#allocation20 + $0x4c4] sm:$0xff]
      %v1567 = vld [vmem:[#allocation20 + $0x4cc] sm:$0xff]
      %v1568 = vld [vmem:[#allocation20 + $0x4d4] sm:$0xf]
      %v1569 = vld [vmem:[#allocation20 + $0x4d8] sm:$0xff]
      %v1570 = vld [vmem:[#allocation20 + $0x4e0] sm:$0xff]
      %v1571 = vld [vmem:[#allocation20 + $0x4e8] sm:$0xf]
      %v1572 = vld [vmem:[#allocation20 + $0x4ec] sm:$0xff]
      %v1573 = vld [vmem:[#allocation20 + $0x4f4] sm:$0xff]
      %v1574 = vld [vmem:[#allocation20 + $0x4fc] sm:$0xf]
      %v1575 = vld [vmem:[#allocation20 + $0x500] sm:$0xff]
      %v1576 = vld [vmem:[#allocation20 + $0x508] sm:$0xff]
      %v1577 = vld [vmem:[#allocation20 + $0x510] sm:$0xf]
      %v1578 = vld [vmem:[#allocation20 + $0x514] sm:$0xff]
      %v1579 = vld [vmem:[#allocation20 + $0x51c] sm:$0xff]
      %v1580 = vld [vmem:[#allocation20 + $0x524] sm:$0xf]
      %v1581 = vld [vmem:[#allocation20 + $0x528] sm:$0xff]
      %v1582 = vld [vmem:[#allocation20 + $0x530] sm:$0xff]
      %v1583 = vld [vmem:[#allocation20 + $0x538] sm:$0xf]
      %v1584 = vld [vmem:[#allocation20 + $0x53c] sm:$0xff]
      %v1585 = vld [vmem:[#allocation20 + $0x544] sm:$0xff]
      %v1586 = vld [vmem:[#allocation20 + $0x54c] sm:$0xf]
      %v1587 = vld [vmem:[#allocation20 + $0x550] sm:$0xff]
      %v1588 = vld [vmem:[#allocation20 + $0x558] sm:$0xff]
      %v1589 = vld [vmem:[#allocation20 + $0x560] sm:$0xf]
      %v1590 = vld [vmem:[#allocation20 + $0x564] sm:$0xff]
      %v1591 = vld [vmem:[#allocation20 + $0x56c] sm:$0xff]
      %v1592 = vld [vmem:[#allocation20 + $0x574] sm:$0xf]
      %v1593 = vld [vmem:[#allocation20 + $0x578] sm:$0xff]
      %v1594 = vld [vmem:[#allocation20 + $0x580] sm:$0xff]
      %v1595 = vld [vmem:[#allocation20 + $0x588] sm:$0xf]
      %v1596 = vld [vmem:[#allocation20 + $0x58c] sm:$0xff]
      %v1597 = vld [vmem:[#allocation20 + $0x594] sm:$0xff]
      %v1598 = vld [vmem:[#allocation20 + $0x59c] sm:$0xf]
      %v1599 = vld [vmem:[#allocation20 + $0x5a0] sm:$0xff]
      %v1600 = vld [vmem:[#allocation20 + $0x5a8] sm:$0xff]
      %v1601 = vld [vmem:[#allocation20 + $0x5b0] sm:$0xf]
      %v1602 = vld [vmem:[#allocation20 + $0x5b4] sm:$0xff]
      %v1603 = vld [vmem:[#allocation20 + $0x5bc] sm:$0xff]
      %v1604 = vld [vmem:[#allocation20 + $0x5c4] sm:$0xf]
      %v1605 = vld [vmem:[#allocation20 + $0x5c8] sm:$0xff]
      %v1606 = vld [vmem:[#allocation20 + $0x5d0] sm:$0xff]
      %v1607 = vld [vmem:[#allocation20 + $0x5d8] sm:$0xf]
      %v1608 = vld [vmem:[#allocation20 + $0x5dc] sm:$0xff]
      %v1609 = vld [vmem:[#allocation20 + $0x5e4] sm:$0xff]
      %v1610 = vld [vmem:[#allocation20 + $0x5ec] sm:$0xf]
      %v1611 = vld [vmem:[#allocation20 + $0x5f0] sm:$0xff]
      %v1612 = vld [vmem:[#allocation20 + $0x5f8] sm:$0xff]
      %v1613 = vld [vmem:[#allocation20 + $0x600] sm:$0xf]
      %v1614 = vld [vmem:[#allocation20 + $0x604] sm:$0xff]
      %v1615 = vld [vmem:[#allocation20 + $0x60c] sm:$0xff]
      %v1616 = vld [vmem:[#allocation20 + $0x614] sm:$0xf]
      %v1617 = vld [vmem:[#allocation20 + $0x618] sm:$0xff]
      %v1618 = vld [vmem:[#allocation20 + $0x620] sm:$0xff]
      %v1619 = vld [vmem:[#allocation20 + $0x628] sm:$0xf]
      %v1620 = vld [vmem:[#allocation20 + $0x62c] sm:$0xff]
      %v1621 = vld [vmem:[#allocation20 + $0x634] sm:$0xff]
      %v1622 = vld [vmem:[#allocation20 + $0x63c] sm:$0xf]
      %v1623 = vld [vmem:[#allocation20 + $0x640] sm:$0xff]
      %v1624 = vld [vmem:[#allocation20 + $0x648] sm:$0xff]
      %v1625 = vld [vmem:[#allocation20 + $0x650] sm:$0xf]
      %v1626 = vld [vmem:[#allocation20 + $0x654] sm:$0xff]
      %v1627 = vld [vmem:[#allocation20 + $0x65c] sm:$0xff]
      %v1628 = vld [vmem:[#allocation20 + $0x664] sm:$0xf]
      %v1629 = vld [vmem:[#allocation20 + $0x668] sm:$0xff]
      %v1630 = vld [vmem:[#allocation20 + $0x670] sm:$0xff]
      %v1631 = vld [vmem:[#allocation20 + $0x678] sm:$0xf]
      %v1632 = vld [vmem:[#allocation20 + $0x67c] sm:$0xff]
      %v1633 = vld [vmem:[#allocation20 + $0x684] sm:$0xff]
      %v1634 = vld [vmem:[#allocation20 + $0x68c] sm:$0xf]
      %v1635 = vld [vmem:[#allocation20 + $0x690] sm:$0xff]
      %v1636 = vld [vmem:[#allocation20 + $0x698] sm:$0xff]
      %v1637 = vld [vmem:[#allocation20 + $0x6a0] sm:$0xf]
      %v1638 = vld [vmem:[#allocation20 + $0x6a4] sm:$0xff]
      %v1639 = vld [vmem:[#allocation20 + $0x6ac] sm:$0xff]
      %v1640 = vld [vmem:[#allocation20 + $0x6b4] sm:$0xf]
      %v1641 = vld [vmem:[#allocation20 + $0x6b8] sm:$0xff]
      %v1642 = vld [vmem:[#allocation20 + $0x6c0] sm:$0xff]
      %v1643 = vld [vmem:[#allocation20 + $0x6c8] sm:$0xf]
      %v1644 = vld [vmem:[#allocation20 + $0x6cc] sm:$0xff]
      %v1645 = vld [vmem:[#allocation20 + $0x6d4] sm:$0xff]
      %v1646 = vld [vmem:[#allocation20 + $0x6dc] sm:$0xf]
      %v1647 = vld [vmem:[#allocation20 + $0x6e0] sm:$0xff]
      %v1648 = vld [vmem:[#allocation20 + $0x6e8] sm:$0xff]
      %v1649 = vld [vmem:[#allocation20 + $0x6f0] sm:$0xf]
      %v1650 = vld [vmem:[#allocation20 + $0x6f4] sm:$0xff]
      %v1651 = vld [vmem:[#allocation20 + $0x6fc] sm:$0xff]
      %v1652 = vld [vmem:[#allocation20 + $0x704] sm:$0xf]
      %v1653 = vld [vmem:[#allocation20 + $0x708] sm:$0xff]
      %v1654 = vld [vmem:[#allocation20 + $0x710] sm:$0xff]
      %v1655 = vld [vmem:[#allocation20 + $0x718] sm:$0xf]
      %v1656 = vld [vmem:[#allocation20 + $0x71c] sm:$0xff]
      %v1657 = vld [vmem:[#allocation20 + $0x724] sm:$0xff]
      %v1658 = vld [vmem:[#allocation20 + $0x72c] sm:$0xf]
      %v1659 = vld [vmem:[#allocation20 + $0x730] sm:$0xff]
      %v1660 = vld [vmem:[#allocation20 + $0x738] sm:$0xff]
      %v1661 = vld [vmem:[#allocation20 + $0x740] sm:$0xf]
      %v1662 = vld [vmem:[#allocation20 + $0x744] sm:$0xff]
      %v1663 = vld [vmem:[#allocation20 + $0x74c] sm:$0xff]
      %v1664 = vld [vmem:[#allocation20 + $0x754] sm:$0xf]
      %v1665 = vld [vmem:[#allocation20 + $0x758] sm:$0xff]
      %v1666 = vld [vmem:[#allocation20 + $0x760] sm:$0xff]
      %v1667 = vld [vmem:[#allocation20 + $0x768] sm:$0xf]
      %v1668 = vld [vmem:[#allocation20 + $0x76c] sm:$0xff]
      %v1669 = vld [vmem:[#allocation20 + $0x774] sm:$0xff]
      %v1670 = vld [vmem:[#allocation20 + $0x77c] sm:$0xf]
      %v1671 = vld [vmem:[#allocation20 + $0x780] sm:$0xff]
      %v1672 = vld [vmem:[#allocation20 + $0x788] sm:$0xff]
      %v1673 = vld [vmem:[#allocation20 + $0x790] sm:$0xf]
      %v1674 = vld [vmem:[#allocation20 + $0x794] sm:$0xff]
      %v1675 = vld [vmem:[#allocation20 + $0x79c] sm:$0xff]
      %v1676 = vld [vmem:[#allocation20 + $0x7a4] sm:$0xf]
      %v1677 = vld [vmem:[#allocation20 + $0x7a8] sm:$0xff]
      %v1678 = vld [vmem:[#allocation20 + $0x7b0] sm:$0xff]
      %v1679 = vld [vmem:[#allocation20 + $0x7b8] sm:$0xf]
      %v1680 = vld [vmem:[#allocation20 + $0x7bc] sm:$0xff]
      %v1681 = vld [vmem:[#allocation20 + $0x7c4] sm:$0xff]
      %v1682 = vld [vmem:[#allocation20 + $0x7cc] sm:$0xf]
      %v1683 = vld [vmem:[#allocation20 + $0x7d0] sm:$0xff]
      %v1684 = vld [vmem:[#allocation20 + $0x7d8] sm:$0xff]
      %v1685 = vld [vmem:[#allocation20 + $0x7e0] sm:$0xf]
      %v1686 = vld [vmem:[#allocation20 + $0x7e4] sm:$0xff]
      %v1687 = vld [vmem:[#allocation20 + $0x7ec] sm:$0xff]
      %v1688 = vld [vmem:[#allocation20 + $0x7f4] sm:$0xf]
      %v1689 = vld [vmem:[#allocation20 + $0x7f8] sm:$0xff]
      %v1690 = vld [vmem:[#allocation20 + $0x800] sm:$0xff]
      %v1691 = vld [vmem:[#allocation20 + $0x808] sm:$0xf]
      %v1692 = vld [vmem:[#allocation20 + $0x80c] sm:$0xff]
      %v1693 = vld [vmem:[#allocation20 + $0x814] sm:$0xff]
      %v1694 = vld [vmem:[#allocation20 + $0x81c] sm:$0xf]
      %v1695 = vld [vmem:[#allocation20 + $0x820] sm:$0xff]
      %v1696 = vld [vmem:[#allocation20 + $0x828] sm:$0xff]
      %v1697 = vld [vmem:[#allocation20 + $0x830] sm:$0xf]
      %v1698 = vld [vmem:[#allocation20 + $0x834] sm:$0xff]
      %v1699 = vld [vmem:[#allocation20 + $0x83c] sm:$0xff]
      %v1700 = vld [vmem:[#allocation20 + $0x844] sm:$0xf]
      %v1701 = vld [vmem:[#allocation20 + $0x848] sm:$0xff]
      %v1702 = vld [vmem:[#allocation20 + $0x850] sm:$0xff]
      %v1703 = vld [vmem:[#allocation20 + $0x858] sm:$0xf]
      %v1704 = vld [vmem:[#allocation20 + $0x85c] sm:$0xff]
      %v1705 = vld [vmem:[#allocation20 + $0x864] sm:$0xff]
      %v1706 = vld [vmem:[#allocation20 + $0x86c] sm:$0xf]
      %v1707 = vld [vmem:[#allocation20 + $0x870] sm:$0xff]
      %v1708 = vld [vmem:[#allocation20 + $0x878] sm:$0xff]
      %v1709 = vld [vmem:[#allocation20 + $0x880] sm:$0xf]
      %v1710 = vld [vmem:[#allocation20 + $0x884] sm:$0xff]
      %v1711 = vld [vmem:[#allocation20 + $0x88c] sm:$0xff]
      %v1712 = vld [vmem:[#allocation20 + $0x894] sm:$0xf]
      %v1713 = vld [vmem:[#allocation20 + $0x898] sm:$0xff]
      %v1714 = vld [vmem:[#allocation20 + $0x8a0] sm:$0xff]
      %v1715 = vld [vmem:[#allocation20 + $0x8a8] sm:$0xf]
      %v1716 = vld [vmem:[#allocation20 + $0x8ac] sm:$0xff]
      %v1717 = vld [vmem:[#allocation20 + $0x8b4] sm:$0xff]
      %v1718 = vld [vmem:[#allocation20 + $0x8bc] sm:$0xf]
      %v1719 = vld [vmem:[#allocation20 + $0x8c0] sm:$0xff]
      %v1720 = vld [vmem:[#allocation20 + $0x8c8] sm:$0xff]
      %v1721 = vld [vmem:[#allocation20 + $0x8d0] sm:$0xf]
      %v1722 = vld [vmem:[#allocation20 + $0x8d4] sm:$0xff]
      %v1723 = vld [vmem:[#allocation20 + $0x8dc] sm:$0xff]
      %v1724 = vld [vmem:[#allocation20 + $0x8e4] sm:$0xf]
      %v1725 = vld [vmem:[#allocation20 + $0x8e8] sm:$0xff]
      %v1726 = vld [vmem:[#allocation20 + $0x8f0] sm:$0xff]
      %v1727 = vld [vmem:[#allocation20 + $0x8f8] sm:$0xf]
      %v1728 = vld [vmem:[#allocation20 + $0x8fc] sm:$0xff]
      %v1729 = vld [vmem:[#allocation20 + $0x904] sm:$0xff]
      %v1730 = vld [vmem:[#allocation20 + $0x90c] sm:$0xf]
      %v1731 = vld [vmem:[#allocation20 + $0x910] sm:$0xff]
      %v1732 = vld [vmem:[#allocation20 + $0x918] sm:$0xff]
      %v1733 = vld [vmem:[#allocation20 + $0x920] sm:$0xf]
      %v1734 = vld [vmem:[#allocation20 + $0x924] sm:$0xff]
      %v1735 = vld [vmem:[#allocation20 + $0x92c] sm:$0xff]
      %v1736 = vld [vmem:[#allocation20 + $0x934] sm:$0xf]
      %v1737 = vld [vmem:[#allocation20 + $0x938] sm:$0xff]
      %v1738 = vld [vmem:[#allocation20 + $0x940] sm:$0xff]
      %v1739 = vld [vmem:[#allocation20 + $0x948] sm:$0xf]
      %v1740 = vld [vmem:[#allocation20 + $0x94c] sm:$0xff]
      %v1741 = vld [vmem:[#allocation20 + $0x954] sm:$0xff]
      %v1742 = vld [vmem:[#allocation20 + $0x95c] sm:$0xf]
      %v1743 = vld [vmem:[#allocation20 + $0x960] sm:$0xff]
      %v1744 = vld [vmem:[#allocation20 + $0x968] sm:$0xff]
      %v1745 = vld [vmem:[#allocation20 + $0x970] sm:$0xf]
      %v1746 = vld [vmem:[#allocation20 + $0x974] sm:$0xff]
      %v1747 = vld [vmem:[#allocation20 + $0x97c] sm:$0xff]
      %v1748 = vld [vmem:[#allocation20 + $0x984] sm:$0xf]
      %v1749 = vld [vmem:[#allocation20 + $0x988] sm:$0xff]
      %v1750 = vld [vmem:[#allocation20 + $0x990] sm:$0xff]
      %v1751 = vld [vmem:[#allocation20 + $0x998] sm:$0xf]
      %v1752 = vld [vmem:[#allocation20 + $0x99c] sm:$0xff]
      %v1753 = vld [vmem:[#allocation20 + $0x9a4] sm:$0xff]
      %v1754 = vld [vmem:[#allocation20 + $0x9ac] sm:$0xf]
      %v1755 = vld [vmem:[#allocation20 + $0x9b0] sm:$0xff]
      %v1756 = vld [vmem:[#allocation20 + $0x9b8] sm:$0xff]
      %v1757 = vld [vmem:[#allocation20 + $0x9c0] sm:$0xf]
      %v1758 = vld [vmem:[#allocation20 + $0x9c4] sm:$0xff]
      %v1759 = vld [vmem:[#allocation20 + $0x9cc] sm:$0xff]
      %v1760 = vld [vmem:[#allocation20 + $0x9d4] sm:$0xf]
      %v1761 = vld [vmem:[#allocation20 + $0x9d8] sm:$0xff]
      %v1762 = vld [vmem:[#allocation20 + $0x9e0] sm:$0xff]
      %v1763 = vld [vmem:[#allocation20 + $0x9e8] sm:$0xf]
      %v1764 = vld [vmem:[#allocation20 + $0x9ec] sm:$0xff]
      %v1765 = vld [vmem:[#allocation20 + $0x9f4] sm:$0xff]
      %v1766 = vld [vmem:[#allocation20 + $0x9fc] sm:$0xf]
      %v1767 = vpack.c.bf16 %v1373, %v1373
      %v1768 = vpack.c.bf16 %v1374, %v1374
      %v1769 = vld [vmem:[#allocation21] sm:$0xff]
      %v1770 = vld [vmem:[#allocation21 + $0x8] sm:$0xff]
      %v1771 = vld [vmem:[#allocation21 + $0x10] sm:$0xf]
      %v1772 = vld [vmem:[#allocation21 + $0x14] sm:$0xff]
      %v1773 = vld [vmem:[#allocation21 + $0x1c] sm:$0xff]
      %v1774 = vld [vmem:[#allocation21 + $0x24] sm:$0xf]
      %v1775 = vld [vmem:[#allocation21 + $0x28] sm:$0xff]
      %v1776 = vld [vmem:[#allocation21 + $0x30] sm:$0xff]
      %v1777 = vld [vmem:[#allocation21 + $0x38] sm:$0xf]
      %v1778 = vld [vmem:[#allocation21 + $0x3c] sm:$0xff]
      %v1779 = vld [vmem:[#allocation21 + $0x44] sm:$0xff]
      %v1780 = vld [vmem:[#allocation21 + $0x4c] sm:$0xf]
      %v1781 = vld [vmem:[#allocation21 + $0x50] sm:$0xff]
      %v1782 = vld [vmem:[#allocation21 + $0x58] sm:$0xff]
      %v1783 = vld [vmem:[#allocation21 + $0x60] sm:$0xf]
      %v1784 = vld [vmem:[#allocation21 + $0x64] sm:$0xff]
      %v1785 = vld [vmem:[#allocation21 + $0x6c] sm:$0xff]
      %v1786 = vld [vmem:[#allocation21 + $0x74] sm:$0xf]
      %v1787 = vld [vmem:[#allocation21 + $0x78] sm:$0xff]
      %v1788 = vld [vmem:[#allocation21 + $0x80] sm:$0xff]
      %v1789 = vld [vmem:[#allocation21 + $0x88] sm:$0xf]
      %v1790 = vld [vmem:[#allocation21 + $0x8c] sm:$0xff]
      %v1791 = vld [vmem:[#allocation21 + $0x94] sm:$0xff]
      %v1792 = vld [vmem:[#allocation21 + $0x9c] sm:$0xf]
      %v1793 = vld [vmem:[#allocation21 + $0xa0] sm:$0xff]
      %v1794 = vld [vmem:[#allocation21 + $0xa8] sm:$0xff]
      %v1795 = vld [vmem:[#allocation21 + $0xb0] sm:$0xf]
      %v1796 = vld [vmem:[#allocation21 + $0xb4] sm:$0xff]
      %v1797 = vld [vmem:[#allocation21 + $0xbc] sm:$0xff]
      %v1798 = vld [vmem:[#allocation21 + $0xc4] sm:$0xf]
      %v1799 = vld [vmem:[#allocation21 + $0xc8] sm:$0xff]
      %v1800 = vld [vmem:[#allocation21 + $0xd0] sm:$0xff]
      %v1801 = vld [vmem:[#allocation21 + $0xd8] sm:$0xf]
      %v1802 = vld [vmem:[#allocation21 + $0xdc] sm:$0xff]
      %v1803 = vld [vmem:[#allocation21 + $0xe4] sm:$0xff]
      %v1804 = vld [vmem:[#allocation21 + $0xec] sm:$0xf]
      %v1805 = vld [vmem:[#allocation21 + $0xf0] sm:$0xff]
      %v1806 = vld [vmem:[#allocation21 + $0xf8] sm:$0xff]
      %v1807 = vld [vmem:[#allocation21 + $0x100] sm:$0xf]
      %v1808 = vld [vmem:[#allocation21 + $0x104] sm:$0xff]
      %v1809 = vld [vmem:[#allocation21 + $0x10c] sm:$0xff]
      %v1810 = vld [vmem:[#allocation21 + $0x114] sm:$0xf]
      %v1811 = vld [vmem:[#allocation21 + $0x118] sm:$0xff]
      %v1812 = vld [vmem:[#allocation21 + $0x120] sm:$0xff]
      %v1813 = vld [vmem:[#allocation21 + $0x128] sm:$0xf]
      %v1814 = vld [vmem:[#allocation21 + $0x12c] sm:$0xff]
      %v1815 = vld [vmem:[#allocation21 + $0x134] sm:$0xff]
      %v1816 = vld [vmem:[#allocation21 + $0x13c] sm:$0xf]
      %v1817 = vld [vmem:[#allocation21 + $0x140] sm:$0xff]
      %v1818 = vld [vmem:[#allocation21 + $0x148] sm:$0xff]
      %v1819 = vld [vmem:[#allocation21 + $0x150] sm:$0xf]
      %v1820 = vld [vmem:[#allocation21 + $0x154] sm:$0xff]
      %v1821 = vld [vmem:[#allocation21 + $0x15c] sm:$0xff]
      %v1822 = vld [vmem:[#allocation21 + $0x164] sm:$0xf]
      %v1823 = vld [vmem:[#allocation21 + $0x168] sm:$0xff]
      %v1824 = vld [vmem:[#allocation21 + $0x170] sm:$0xff]
      %v1825 = vld [vmem:[#allocation21 + $0x178] sm:$0xf]
      %v1826 = vld [vmem:[#allocation21 + $0x17c] sm:$0xff]
      %v1827 = vld [vmem:[#allocation21 + $0x184] sm:$0xff]
      %v1828 = vld [vmem:[#allocation21 + $0x18c] sm:$0xf]
      %v1829 = vld [vmem:[#allocation21 + $0x190] sm:$0xff]
      %v1830 = vld [vmem:[#allocation21 + $0x198] sm:$0xff]
      %v1831 = vld [vmem:[#allocation21 + $0x1a0] sm:$0xf]
      %v1832 = vld [vmem:[#allocation21 + $0x1a4] sm:$0xff]
      %v1833 = vld [vmem:[#allocation21 + $0x1ac] sm:$0xff]
      %v1834 = vld [vmem:[#allocation21 + $0x1b4] sm:$0xf]
      %v1835 = vld [vmem:[#allocation21 + $0x1b8] sm:$0xff]
      %v1836 = vld [vmem:[#allocation21 + $0x1c0] sm:$0xff]
      %v1837 = vld [vmem:[#allocation21 + $0x1c8] sm:$0xf]
      %v1838 = vld [vmem:[#allocation21 + $0x1cc] sm:$0xff]
      %v1839 = vld [vmem:[#allocation21 + $0x1d4] sm:$0xff]
      %v1840 = vld [vmem:[#allocation21 + $0x1dc] sm:$0xf]
      %v1841 = vld [vmem:[#allocation21 + $0x1e0] sm:$0xff]
      %v1842 = vld [vmem:[#allocation21 + $0x1e8] sm:$0xff]
      %v1843 = vld [vmem:[#allocation21 + $0x1f0] sm:$0xf]
      %v1844 = vld [vmem:[#allocation21 + $0x1f4] sm:$0xff]
      %v1845 = vld [vmem:[#allocation21 + $0x1fc] sm:$0xff]
      %v1846 = vld [vmem:[#allocation21 + $0x204] sm:$0xf]
      %v1847 = vld [vmem:[#allocation21 + $0x208] sm:$0xff]
      %v1848 = vld [vmem:[#allocation21 + $0x210] sm:$0xff]
      %v1849 = vld [vmem:[#allocation21 + $0x218] sm:$0xf]
      %v1850 = vld [vmem:[#allocation21 + $0x21c] sm:$0xff]
      %v1851 = vld [vmem:[#allocation21 + $0x224] sm:$0xff]
      %v1852 = vld [vmem:[#allocation21 + $0x22c] sm:$0xf]
      %v1853 = vld [vmem:[#allocation21 + $0x230] sm:$0xff]
      %v1854 = vld [vmem:[#allocation21 + $0x238] sm:$0xff]
      %v1855 = vld [vmem:[#allocation21 + $0x240] sm:$0xf]
      %v1856 = vld [vmem:[#allocation21 + $0x244] sm:$0xff]
      %v1857 = vld [vmem:[#allocation21 + $0x24c] sm:$0xff]
      %v1858 = vld [vmem:[#allocation21 + $0x254] sm:$0xf]
      %v1859 = vld [vmem:[#allocation21 + $0x258] sm:$0xff]
      %v1860 = vld [vmem:[#allocation21 + $0x260] sm:$0xff]
      %v1861 = vld [vmem:[#allocation21 + $0x268] sm:$0xf]
      %v1862 = vld [vmem:[#allocation21 + $0x26c] sm:$0xff]
      %v1863 = vld [vmem:[#allocation21 + $0x274] sm:$0xff]
      %v1864 = vld [vmem:[#allocation21 + $0x27c] sm:$0xf]
      %v1961 = vunpack.c.l.b16 %v1769
      %v1962 = vunpack.c.h.b16 %v1769
      %v1963 = vunpack.c.l.b16 %v1770
      %v1964 = vunpack.c.h.b16 %v1770
      %v1965 = vunpack.c.l.b16 %v1771
      %v1966 = vunpack.c.l.b16 %v1772
      %v1967 = vunpack.c.h.b16 %v1772
      %v1968 = vunpack.c.l.b16 %v1773
      %v1969 = vunpack.c.h.b16 %v1773
      %v1970 = vunpack.c.l.b16 %v1774
      %v1971 = vunpack.c.l.b16 %v1775
      %v1972 = vunpack.c.h.b16 %v1775
      %v1973 = vunpack.c.l.b16 %v1776
      %v1974 = vunpack.c.h.b16 %v1776
      %v1975 = vunpack.c.l.b16 %v1777
      %v1976 = vunpack.c.l.b16 %v1778
      %v1977 = vunpack.c.h.b16 %v1778
      %v1978 = vunpack.c.l.b16 %v1779
      %v1979 = vunpack.c.h.b16 %v1779
      %v1980 = vunpack.c.l.b16 %v1780
      %v1981 = vunpack.c.l.b16 %v1781
      %v1982 = vunpack.c.h.b16 %v1781
      %v1983 = vunpack.c.l.b16 %v1782
      %v1984 = vunpack.c.h.b16 %v1782
      %v1985 = vunpack.c.l.b16 %v1783
      %v1986 = vunpack.c.l.b16 %v1784
      %v1987 = vunpack.c.h.b16 %v1784
      %v1988 = vunpack.c.l.b16 %v1785
      %v1989 = vunpack.c.h.b16 %v1785
      %v1990 = vunpack.c.l.b16 %v1786
      %v1991 = vunpack.c.l.b16 %v1787
      %v1992 = vunpack.c.h.b16 %v1787
      %v1993 = vunpack.c.l.b16 %v1788
      %v1994 = vunpack.c.h.b16 %v1788
      %v1995 = vunpack.c.l.b16 %v1789
      %v1996 = vunpack.c.l.b16 %v1790
      %v1997 = vunpack.c.h.b16 %v1790
      %v1998 = vunpack.c.l.b16 %v1791
      %v1999 = vunpack.c.h.b16 %v1791
      %v2000 = vunpack.c.l.b16 %v1792
      %v2001 = vunpack.c.l.b16 %v1793
      %v2002 = vunpack.c.h.b16 %v1793
      %v2003 = vunpack.c.l.b16 %v1794
      %v2004 = vunpack.c.h.b16 %v1794
      %v2005 = vunpack.c.l.b16 %v1795
      %v2006 = vunpack.c.l.b16 %v1796
      %v2007 = vunpack.c.h.b16 %v1796
      %v2008 = vunpack.c.l.b16 %v1797
      %v2009 = vunpack.c.h.b16 %v1797
      %v2010 = vunpack.c.l.b16 %v1798
      %v2011 = vunpack.c.l.b16 %v1799
      %v2012 = vunpack.c.h.b16 %v1799
      %v2013 = vunpack.c.l.b16 %v1800
      %v2014 = vunpack.c.h.b16 %v1800
      %v2015 = vunpack.c.l.b16 %v1801
      %v2016 = vunpack.c.l.b16 %v1802
      %v2017 = vunpack.c.h.b16 %v1802
      %v2018 = vunpack.c.l.b16 %v1803
      %v2019 = vunpack.c.h.b16 %v1803
      %v2020 = vunpack.c.l.b16 %v1804
      %v2021 = vunpack.c.l.b16 %v1805
      %v2022 = vunpack.c.h.b16 %v1805
      %v2023 = vunpack.c.l.b16 %v1806
      %v2024 = vunpack.c.h.b16 %v1806
      %v2025 = vunpack.c.l.b16 %v1807
      %v2026 = vunpack.c.l.b16 %v1808
      %v2027 = vunpack.c.h.b16 %v1808
      %v2028 = vunpack.c.l.b16 %v1809
      %v2029 = vunpack.c.h.b16 %v1809
      %v2030 = vunpack.c.l.b16 %v1810
      %v2031 = vunpack.c.l.b16 %v1811
      %v2032 = vunpack.c.h.b16 %v1811
      %v2033 = vunpack.c.l.b16 %v1812
      %v2034 = vunpack.c.h.b16 %v1812
      %v2035 = vunpack.c.l.b16 %v1813
      %v2036 = vunpack.c.l.b16 %v1814
      %v2037 = vunpack.c.h.b16 %v1814
      %v2038 = vunpack.c.l.b16 %v1815
      %v2039 = vunpack.c.h.b16 %v1815
      %v2040 = vunpack.c.l.b16 %v1816
      %v2041 = vunpack.c.l.b16 %v1817
      %v2042 = vunpack.c.h.b16 %v1817
      %v2043 = vunpack.c.l.b16 %v1818
      %v2044 = vunpack.c.h.b16 %v1818
      %v2045 = vunpack.c.l.b16 %v1819
      %v2046 = vunpack.c.l.b16 %v1820
      %v2047 = vunpack.c.h.b16 %v1820
      %v2048 = vunpack.c.l.b16 %v1821
      %v2049 = vunpack.c.h.b16 %v1821
      %v2050 = vunpack.c.l.b16 %v1822
      %v2051 = vunpack.c.l.b16 %v1823
      %v2052 = vunpack.c.h.b16 %v1823
      %v2053 = vunpack.c.l.b16 %v1824
      %v2054 = vunpack.c.h.b16 %v1824
      %v2055 = vunpack.c.l.b16 %v1825
      %v2056 = vunpack.c.l.b16 %v1826
      %v2057 = vunpack.c.h.b16 %v1826
      %v2058 = vunpack.c.l.b16 %v1827
      %v2059 = vunpack.c.h.b16 %v1827
      %v2060 = vunpack.c.l.b16 %v1828
      %v2061 = vunpack.c.l.b16 %v1829
      %v2062 = vunpack.c.h.b16 %v1829
      %v2063 = vunpack.c.l.b16 %v1830
      %v2064 = vunpack.c.h.b16 %v1830
      %v2065 = vunpack.c.l.b16 %v1831
      %v2066 = vunpack.c.l.b16 %v1832
      %v2067 = vunpack.c.h.b16 %v1832
      %v2068 = vunpack.c.l.b16 %v1833
      %v2069 = vunpack.c.h.b16 %v1833
      %v2070 = vunpack.c.l.b16 %v1834
      %v2071 = vunpack.c.l.b16 %v1835
      %v2072 = vunpack.c.h.b16 %v1835
      %v2073 = vunpack.c.l.b16 %v1836
      %v2074 = vunpack.c.h.b16 %v1836
      %v2075 = vunpack.c.l.b16 %v1837
      %v2076 = vunpack.c.l.b16 %v1838
      %v2077 = vunpack.c.h.b16 %v1838
      %v2078 = vunpack.c.l.b16 %v1839
      %v2079 = vunpack.c.h.b16 %v1839
      %v2080 = vunpack.c.l.b16 %v1840
      %v2081 = vunpack.c.l.b16 %v1841
      %v2082 = vunpack.c.h.b16 %v1841
      %v2083 = vunpack.c.l.b16 %v1842
      %v2084 = vunpack.c.h.b16 %v1842
      %v2085 = vunpack.c.l.b16 %v1843
      %v2086 = vunpack.c.l.b16 %v1844
      %v2087 = vunpack.c.h.b16 %v1844
      %v2088 = vunpack.c.l.b16 %v1845
      %v2089 = vunpack.c.h.b16 %v1845
      %v2090 = vunpack.c.l.b16 %v1846
      %v2091 = vunpack.c.l.b16 %v1847
      %v2092 = vunpack.c.h.b16 %v1847
      %v2093 = vunpack.c.l.b16 %v1848
      %v2094 = vunpack.c.h.b16 %v1848
      %v2095 = vunpack.c.l.b16 %v1849
      %v2096 = vunpack.c.l.b16 %v1850
      %v2097 = vunpack.c.h.b16 %v1850
      %v2098 = vunpack.c.l.b16 %v1851
      %v2099 = vunpack.c.h.b16 %v1851
      %v2100 = vunpack.c.l.b16 %v1852
      %v2101 = vunpack.c.l.b16 %v1853
      %v2102 = vunpack.c.h.b16 %v1853
      %v2103 = vunpack.c.l.b16 %v1854
      %v2104 = vunpack.c.h.b16 %v1854
      %v2105 = vunpack.c.l.b16 %v1855
      %v2106 = vunpack.c.l.b16 %v1856
      %v2107 = vunpack.c.h.b16 %v1856
      %v2108 = vunpack.c.l.b16 %v1857
      %v2109 = vunpack.c.h.b16 %v1857
      %v2110 = vunpack.c.l.b16 %v1858
      %v2111 = vunpack.c.l.b16 %v1859
      %v2112 = vunpack.c.h.b16 %v1859
      %v2113 = vunpack.c.l.b16 %v1860
      %v2114 = vunpack.c.h.b16 %v1860
      %v2115 = vunpack.c.l.b16 %v1861
      %v2116 = vunpack.c.l.b16 %v1862
      %v2117 = vunpack.c.h.b16 %v1862
      %v2118 = vunpack.c.l.b16 %v1863
      %v2119 = vunpack.c.h.b16 %v1863
      %v2120 = vunpack.c.l.b16 %v1864
      %v2121 = vpack.c.b16 %v1966, %v1961
      %v2122 = vpack.c.b16 %v1967, %v1962
      %v2123 = vpack.c.b16 %v1968, %v1963
      %v2124 = vpack.c.b16 %v1969, %v1964
      %v2125 = vpack.c.b16 %v1970, %v1965
      %v2126 = vpack.c.b16 %v1976, %v1971
      %v2127 = vpack.c.b16 %v1977, %v1972
      %v2128 = vpack.c.b16 %v1978, %v1973
      %v2129 = vpack.c.b16 %v1979, %v1974
      %v2130 = vpack.c.b16 %v1980, %v1975
      %v2131 = vpack.c.b16 %v1986, %v1981
      %v2132 = vpack.c.b16 %v1987, %v1982
      %v2133 = vpack.c.b16 %v1988, %v1983
      %v2134 = vpack.c.b16 %v1989, %v1984
      %v2135 = vpack.c.b16 %v1990, %v1985
      %v2136 = vpack.c.b16 %v1996, %v1991
      %v2137 = vpack.c.b16 %v1997, %v1992
      %v2138 = vpack.c.b16 %v1998, %v1993
      %v2139 = vpack.c.b16 %v1999, %v1994
      %v2140 = vpack.c.b16 %v2000, %v1995
      %v2141 = vpack.c.b16 %v2006, %v2001
      %v2142 = vpack.c.b16 %v2007, %v2002
      %v2143 = vpack.c.b16 %v2008, %v2003
      %v2144 = vpack.c.b16 %v2009, %v2004
      %v2145 = vpack.c.b16 %v2010, %v2005
      %v2146 = vpack.c.b16 %v2016, %v2011
      %v2147 = vpack.c.b16 %v2017, %v2012
      %v2148 = vpack.c.b16 %v2018, %v2013
      %v2149 = vpack.c.b16 %v2019, %v2014
      %v2150 = vpack.c.b16 %v2020, %v2015
      %v2151 = vpack.c.b16 %v2026, %v2021
      %v2152 = vpack.c.b16 %v2027, %v2022
      %v2153 = vpack.c.b16 %v2028, %v2023
      %v2154 = vpack.c.b16 %v2029, %v2024
      %v2155 = vpack.c.b16 %v2030, %v2025
      %v2156 = vpack.c.b16 %v2036, %v2031
      %v2157 = vpack.c.b16 %v2037, %v2032
      %v2158 = vpack.c.b16 %v2038, %v2033
      %v2159 = vpack.c.b16 %v2039, %v2034
      %v2160 = vpack.c.b16 %v2040, %v2035
      %v2161 = vpack.c.b16 %v2046, %v2041
      %v2162 = vpack.c.b16 %v2047, %v2042
      %v2163 = vpack.c.b16 %v2048, %v2043
      %v2164 = vpack.c.b16 %v2049, %v2044
      %v2165 = vpack.c.b16 %v2050, %v2045
      %v2166 = vpack.c.b16 %v2056, %v2051
      %v2167 = vpack.c.b16 %v2057, %v2052
      %v2168 = vpack.c.b16 %v2058, %v2053
      %v2169 = vpack.c.b16 %v2059, %v2054
      %v2170 = vpack.c.b16 %v2060, %v2055
      %v2171 = vpack.c.b16 %v2066, %v2061
      %v2172 = vpack.c.b16 %v2067, %v2062
      %v2173 = vpack.c.b16 %v2068, %v2063
      %v2174 = vpack.c.b16 %v2069, %v2064
      %v2175 = vpack.c.b16 %v2070, %v2065
      %v2176 = vpack.c.b16 %v2076, %v2071
      %v2177 = vpack.c.b16 %v2077, %v2072
      %v2178 = vpack.c.b16 %v2078, %v2073
      %v2179 = vpack.c.b16 %v2079, %v2074
      %v2180 = vpack.c.b16 %v2080, %v2075
      %v2181 = vpack.c.b16 %v2086, %v2081
      %v2182 = vpack.c.b16 %v2087, %v2082
      %v2183 = vpack.c.b16 %v2088, %v2083
      %v2184 = vpack.c.b16 %v2089, %v2084
      %v2185 = vpack.c.b16 %v2090, %v2085
      %v2186 = vpack.c.b16 %v2096, %v2091
      %v2187 = vpack.c.b16 %v2097, %v2092
      %v2188 = vpack.c.b16 %v2098, %v2093
      %v2189 = vpack.c.b16 %v2099, %v2094
      %v2190 = vpack.c.b16 %v2100, %v2095
      %v2191 = vpack.c.b16 %v2106, %v2101
      %v2192 = vpack.c.b16 %v2107, %v2102
      %v2193 = vpack.c.b16 %v2108, %v2103
      %v2194 = vpack.c.b16 %v2109, %v2104
      %v2195 = vpack.c.b16 %v2110, %v2105
      %v2196 = vpack.c.b16 %v2116, %v2111
      %v2197 = vpack.c.b16 %v2117, %v2112
      %v2198 = vpack.c.b16 %v2118, %v2113
      %v2199 = vpack.c.b16 %v2119, %v2114
      %v2200 = vpack.c.b16 %v2120, %v2115
      %2281 = vmatpush.bf16.msra.mxu0 %v2156
      %2282 = vmatpush.bf16.msra.mxu0 %v2151
      %2283 = vmatpush.bf16.msra.mxu0 %v2146
      %2284 = vmatpush.bf16.msra.mxu0 %v2141
      %2285 = vmatpush.bf16.msra.mxu0 %v2136
      %2286 = vmatpush.bf16.msra.mxu0 %v2131
      %2287 = vmatpush.bf16.msra.mxu0 %v2126
      %2288 = vmatpush.bf16.msra.mxu0 %v2121
      %2289 = vmatmul.bf16.gmra.mxu0 %v1767
      %v2290 = vpop.f32.mrf.mxu0
      %v2291 = vadd.f32 0.0, %v2290
      %v2292 = vpop.f32.mrf.mxu0
      %2293 = vdwg.mxu0
      %2294 = vmatpush.bf16.msra.mxu0 %v2196
      %2295 = vmatpush.bf16.msra.mxu0 %v2191
      %2296 = vmatpush.bf16.msra.mxu0 %v2186
      %2297 = vmatpush.bf16.msra.mxu0 %v2181
      %2298 = vmatpush.bf16.msra.mxu0 %v2176
      %2299 = vmatpush.bf16.msra.mxu0 %v2171
      %2300 = vmatpush.bf16.msra.mxu0 %v2166
      %2301 = vmatpush.bf16.msra.mxu0 %v2161
      %2302 = vmatmul.bf16.gmra.mxu0 %v1768
      %v2303 = vpop.f32.mrf.mxu0
      %v2304 = vadd.f32 %v2291, %v2303
      %v2305 = vpop.f32.mrf.mxu0
      %2306 = vdwg.mxu0
      %2307 = vmatpush.bf16.msra.mxu0 %v2157
      %2308 = vmatpush.bf16.msra.mxu0 %v2152
      %2309 = vmatpush.bf16.msra.mxu0 %v2147
      %2310 = vmatpush.bf16.msra.mxu0 %v2142
      %2311 = vmatpush.bf16.msra.mxu0 %v2137
      %2312 = vmatpush.bf16.msra.mxu0 %v2132
      %2313 = vmatpush.bf16.msra.mxu0 %v2127
      %2314 = vmatpush.bf16.msra.mxu0 %v2122
      %2315 = vmatmul.bf16.gmra.mxu0 %v1767
      %v2316 = vpop.f32.mrf.mxu0
      %v2317 = vadd.f32 0.0, %v2316
      %v2318 = vpop.f32.mrf.mxu0
      %2319 = vdwg.mxu0
      %2320 = vmatpush.bf16.msra.mxu0 %v2197
      %2321 = vmatpush.bf16.msra.mxu0 %v2192
      %2322 = vmatpush.bf16.msra.mxu0 %v2187
      %2323 = vmatpush.bf16.msra.mxu0 %v2182
      %2324 = vmatpush.bf16.msra.mxu0 %v2177
      %2325 = vmatpush.bf16.msra.mxu0 %v2172
      %2326 = vmatpush.bf16.msra.mxu0 %v2167
      %2327 = vmatpush.bf16.msra.mxu0 %v2162
      %2328 = vmatmul.bf16.gmra.mxu0 %v1768
      %v2329 = vpop.f32.mrf.mxu0
      %v2330 = vadd.f32 %v2317, %v2329
      %v2331 = vpop.f32.mrf.mxu0
      %2332 = vdwg.mxu0
      %2333 = vmatpush.bf16.msra.mxu0 %v2158
      %2334 = vmatpush.bf16.msra.mxu0 %v2153
      %2335 = vmatpush.bf16.msra.mxu0 %v2148
      %2336 = vmatpush.bf16.msra.mxu0 %v2143
      %2337 = vmatpush.bf16.msra.mxu0 %v2138
      %2338 = vmatpush.bf16.msra.mxu0 %v2133
      %2339 = vmatpush.bf16.msra.mxu0 %v2128
      %2340 = vmatpush.bf16.msra.mxu0 %v2123
      %2341 = vmatmul.bf16.gmra.mxu0 %v1767
      %v2342 = vpop.f32.mrf.mxu0
      %v2343 = vadd.f32 0.0, %v2342
      %v2344 = vpop.f32.mrf.mxu0
      %2345 = vdwg.mxu0
      %2346 = vmatpush.bf16.msra.mxu0 %v2198
      %2347 = vmatpush.bf16.msra.mxu0 %v2193
      %2348 = vmatpush.bf16.msra.mxu0 %v2188
      %2349 = vmatpush.bf16.msra.mxu0 %v2183
      %2350 = vmatpush.bf16.msra.mxu0 %v2178
      %2351 = vmatpush.bf16.msra.mxu0 %v2173
      %2352 = vmatpush.bf16.msra.mxu0 %v2168
      %2353 = vmatpush.bf16.msra.mxu0 %v2163
      %2354 = vmatmul.bf16.gmra.mxu0 %v1768
      %v2355 = vpop.f32.mrf.mxu0
      %v2356 = vadd.f32 %v2343, %v2355
      %v2357 = vpop.f32.mrf.mxu0
      %2358 = vdwg.mxu0
      %2359 = vmatpush.bf16.msra.mxu0 %v2159
      %2360 = vmatpush.bf16.msra.mxu0 %v2154
      %2361 = vmatpush.bf16.msra.mxu0 %v2149
      %2362 = vmatpush.bf16.msra.mxu0 %v2144
      %2363 = vmatpush.bf16.msra.mxu0 %v2139
      %2364 = vmatpush.bf16.msra.mxu0 %v2134
      %2365 = vmatpush.bf16.msra.mxu0 %v2129
      %2366 = vmatpush.bf16.msra.mxu0 %v2124
      %2367 = vmatmul.bf16.gmra.mxu0 %v1767
      %v2368 = vpop.f32.mrf.mxu0
      %v2369 = vadd.f32 0.0, %v2368
      %v2370 = vpop.f32.mrf.mxu0
      %2371 = vdwg.mxu0
      %2372 = vmatpush.bf16.msra.mxu0 %v2199
      %2373 = vmatpush.bf16.msra.mxu0 %v2194
      %2374 = vmatpush.bf16.msra.mxu0 %v2189
      %2375 = vmatpush.bf16.msra.mxu0 %v2184
      %2376 = vmatpush.bf16.msra.mxu0 %v2179
      %2377 = vmatpush.bf16.msra.mxu0 %v2174
      %2378 = vmatpush.bf16.msra.mxu0 %v2169
      %2379 = vmatpush.bf16.msra.mxu0 %v2164
      %2380 = vmatmul.bf16.gmra.mxu0 %v1768
      %v2381 = vpop.f32.mrf.mxu0
      %v2382 = vadd.f32 %v2369, %v2381
      %v2383 = vpop.f32.mrf.mxu0
      %2384 = vdwg.mxu0
      %2385 = vmatpush.bf16.msra.mxu0 %v2160
      %2386 = vmatpush.bf16.msra.mxu0 %v2155
      %2387 = vmatpush.bf16.msra.mxu0 %v2150
      %2388 = vmatpush.bf16.msra.mxu0 %v2145
      %2389 = vmatpush.bf16.msra.mxu0 %v2140
      %2390 = vmatpush.bf16.msra.mxu0 %v2135
      %2391 = vmatpush.bf16.msra.mxu0 %v2130
      %2392 = vmatpush.bf16.msra.mxu0 %v2125
      %2393 = vmatmul.bf16.gmra.mxu0 %v1767
      %v2394 = vpop.f32.mrf.mxu0
      %v2395 = vadd.f32 0.0, %v2394
      %v2396 = vpop.f32.mrf.mxu0
      %2397 = vdwg.mxu0
      %2398 = vmatpush.bf16.msra.mxu0 %v2200
      %2399 = vmatpush.bf16.msra.mxu0 %v2195
      %2400 = vmatpush.bf16.msra.mxu0 %v2190
      %2401 = vmatpush.bf16.msra.mxu0 %v2185
      %2402 = vmatpush.bf16.msra.mxu0 %v2180
      %2403 = vmatpush.bf16.msra.mxu0 %v2175
      %2404 = vmatpush.bf16.msra.mxu0 %v2170
      %2405 = vmatpush.bf16.msra.mxu0 %v2165
      %2406 = vmatmul.bf16.gmra.mxu0 %v1768
      %v2407 = vpop.f32.mrf.mxu0
      %v2408 = vadd.f32 %v2395, %v2407
      %v2409 = vpop.f32.mrf.mxu0
      %2410 = vdwg.mxu0
      %v2795 = vunpack.c.l.b16 %v1383
      %v2796 = vunpack.c.h.b16 %v1383
      %v2797 = vunpack.c.l.b16 %v1384
      %v2798 = vunpack.c.h.b16 %v1384
      %v2799 = vunpack.c.l.b16 %v1385
      %v2800 = vunpack.c.l.b16 %v1386
      %v2801 = vunpack.c.h.b16 %v1386
      %v2802 = vunpack.c.l.b16 %v1387
      %v2803 = vunpack.c.h.b16 %v1387
      %v2804 = vunpack.c.l.b16 %v1388
      %v2805 = vunpack.c.l.b16 %v1389
      %v2806 = vunpack.c.h.b16 %v1389
      %v2807 = vunpack.c.l.b16 %v1390
      %v2808 = vunpack.c.h.b16 %v1390
      %v2809 = vunpack.c.l.b16 %v1391
      %v2810 = vunpack.c.l.b16 %v1392
      %v2811 = vunpack.c.h.b16 %v1392
      %v2812 = vunpack.c.l.b16 %v1393
      %v2813 = vunpack.c.h.b16 %v1393
      %v2814 = vunpack.c.l.b16 %v1394
      %v2815 = vunpack.c.l.b16 %v1395
      %v2816 = vunpack.c.h.b16 %v1395
      %v2817 = vunpack.c.l.b16 %v1396
      %v2818 = vunpack.c.h.b16 %v1396
      %v2819 = vunpack.c.l.b16 %v1397
      %v2820 = vunpack.c.l.b16 %v1398
      %v2821 = vunpack.c.h.b16 %v1398
      %v2822 = vunpack.c.l.b16 %v1399
      %v2823 = vunpack.c.h.b16 %v1399
      %v2824 = vunpack.c.l.b16 %v1400
      %v2825 = vunpack.c.l.b16 %v1401
      %v2826 = vunpack.c.h.b16 %v1401
      %v2827 = vunpack.c.l.b16 %v1402
      %v2828 = vunpack.c.h.b16 %v1402
      %v2829 = vunpack.c.l.b16 %v1403
      %v2830 = vunpack.c.l.b16 %v1404
      %v2831 = vunpack.c.h.b16 %v1404
      %v2832 = vunpack.c.l.b16 %v1405
      %v2833 = vunpack.c.h.b16 %v1405
      %v2834 = vunpack.c.l.b16 %v1406
      %v2835 = vunpack.c.l.b16 %v1407
      %v2836 = vunpack.c.h.b16 %v1407
      %v2837 = vunpack.c.l.b16 %v1408
      %v2838 = vunpack.c.h.b16 %v1408
      %v2839 = vunpack.c.l.b16 %v1409
      %v2840 = vunpack.c.l.b16 %v1410
      %v2841 = vunpack.c.h.b16 %v1410
      %v2842 = vunpack.c.l.b16 %v1411
      %v2843 = vunpack.c.h.b16 %v1411
      %v2844 = vunpack.c.l.b16 %v1412
      %v2845 = vunpack.c.l.b16 %v1413
      %v2846 = vunpack.c.h.b16 %v1413
      %v2847 = vunpack.c.l.b16 %v1414
      %v2848 = vunpack.c.h.b16 %v1414
      %v2849 = vunpack.c.l.b16 %v1415
      %v2850 = vunpack.c.l.b16 %v1416
      %v2851 = vunpack.c.h.b16 %v1416
      %v2852 = vunpack.c.l.b16 %v1417
      %v2853 = vunpack.c.h.b16 %v1417
      %v2854 = vunpack.c.l.b16 %v1418
      %v2855 = vunpack.c.l.b16 %v1419
      %v2856 = vunpack.c.h.b16 %v1419
      %v2857 = vunpack.c.l.b16 %v1420
      %v2858 = vunpack.c.h.b16 %v1420
      %v2859 = vunpack.c.l.b16 %v1421
      %v2860 = vunpack.c.l.b16 %v1422
      %v2861 = vunpack.c.h.b16 %v1422
      %v2862 = vunpack.c.l.b16 %v1423
      %v2863 = vunpack.c.h.b16 %v1423
      %v2864 = vunpack.c.l.b16 %v1424
      %v2865 = vunpack.c.l.b16 %v1425
      %v2866 = vunpack.c.h.b16 %v1425
      %v2867 = vunpack.c.l.b16 %v1426
      %v2868 = vunpack.c.h.b16 %v1426
      %v2869 = vunpack.c.l.b16 %v1427
      %v2870 = vunpack.c.l.b16 %v1428
      %v2871 = vunpack.c.h.b16 %v1428
      %v2872 = vunpack.c.l.b16 %v1429
      %v2873 = vunpack.c.h.b16 %v1429
      %v2874 = vunpack.c.l.b16 %v1430
      %v2875 = vunpack.c.l.b16 %v1431
      %v2876 = vunpack.c.h.b16 %v1431
      %v2877 = vunpack.c.l.b16 %v1432
      %v2878 = vunpack.c.h.b16 %v1432
      %v2879 = vunpack.c.l.b16 %v1433
      %v2880 = vunpack.c.l.b16 %v1434
      %v2881 = vunpack.c.h.b16 %v1434
      %v2882 = vunpack.c.l.b16 %v1435
      %v2883 = vunpack.c.h.b16 %v1435
      %v2884 = vunpack.c.l.b16 %v1436
      %v2885 = vunpack.c.l.b16 %v1437
      %v2886 = vunpack.c.h.b16 %v1437
      %v2887 = vunpack.c.l.b16 %v1438
      %v2888 = vunpack.c.h.b16 %v1438
      %v2889 = vunpack.c.l.b16 %v1439
      %v2890 = vunpack.c.l.b16 %v1440
      %v2891 = vunpack.c.h.b16 %v1440
      %v2892 = vunpack.c.l.b16 %v1441
      %v2893 = vunpack.c.h.b16 %v1441
      %v2894 = vunpack.c.l.b16 %v1442
      %v2895 = vunpack.c.l.b16 %v1443
      %v2896 = vunpack.c.h.b16 %v1443
      %v2897 = vunpack.c.l.b16 %v1444
      %v2898 = vunpack.c.h.b16 %v1444
      %v2899 = vunpack.c.l.b16 %v1445
      %v2900 = vunpack.c.l.b16 %v1446
      %v2901 = vunpack.c.h.b16 %v1446
      %v2902 = vunpack.c.l.b16 %v1447
      %v2903 = vunpack.c.h.b16 %v1447
      %v2904 = vunpack.c.l.b16 %v1448
      %v2905 = vunpack.c.l.b16 %v1449
      %v2906 = vunpack.c.h.b16 %v1449
      %v2907 = vunpack.c.l.b16 %v1450
      %v2908 = vunpack.c.h.b16 %v1450
      %v2909 = vunpack.c.l.b16 %v1451
      %v2910 = vunpack.c.l.b16 %v1452
      %v2911 = vunpack.c.h.b16 %v1452
      %v2912 = vunpack.c.l.b16 %v1453
      %v2913 = vunpack.c.h.b16 %v1453
      %v2914 = vunpack.c.l.b16 %v1454
      %v2915 = vunpack.c.l.b16 %v1455
      %v2916 = vunpack.c.h.b16 %v1455
      %v2917 = vunpack.c.l.b16 %v1456
      %v2918 = vunpack.c.h.b16 %v1456
      %v2919 = vunpack.c.l.b16 %v1457
      %v2920 = vunpack.c.l.b16 %v1458
      %v2921 = vunpack.c.h.b16 %v1458
      %v2922 = vunpack.c.l.b16 %v1459
      %v2923 = vunpack.c.h.b16 %v1459
      %v2924 = vunpack.c.l.b16 %v1460
      %v2925 = vunpack.c.l.b16 %v1461
      %v2926 = vunpack.c.h.b16 %v1461
      %v2927 = vunpack.c.l.b16 %v1462
      %v2928 = vunpack.c.h.b16 %v1462
      %v2929 = vunpack.c.l.b16 %v1463
      %v2930 = vunpack.c.l.b16 %v1464
      %v2931 = vunpack.c.h.b16 %v1464
      %v2932 = vunpack.c.l.b16 %v1465
      %v2933 = vunpack.c.h.b16 %v1465
      %v2934 = vunpack.c.l.b16 %v1466
      %v2935 = vunpack.c.l.b16 %v1467
      %v2936 = vunpack.c.h.b16 %v1467
      %v2937 = vunpack.c.l.b16 %v1468
      %v2938 = vunpack.c.h.b16 %v1468
      %v2939 = vunpack.c.l.b16 %v1469
      %v2940 = vunpack.c.l.b16 %v1470
      %v2941 = vunpack.c.h.b16 %v1470
      %v2942 = vunpack.c.l.b16 %v1471
      %v2943 = vunpack.c.h.b16 %v1471
      %v2944 = vunpack.c.l.b16 %v1472
      %v2945 = vunpack.c.l.b16 %v1473
      %v2946 = vunpack.c.h.b16 %v1473
      %v2947 = vunpack.c.l.b16 %v1474
      %v2948 = vunpack.c.h.b16 %v1474
      %v2949 = vunpack.c.l.b16 %v1475
      %v2950 = vunpack.c.l.b16 %v1476
      %v2951 = vunpack.c.h.b16 %v1476
      %v2952 = vunpack.c.l.b16 %v1477
      %v2953 = vunpack.c.h.b16 %v1477
      %v2954 = vunpack.c.l.b16 %v1478
      %v2955 = vunpack.c.l.b16 %v1479
      %v2956 = vunpack.c.h.b16 %v1479
      %v2957 = vunpack.c.l.b16 %v1480
      %v2958 = vunpack.c.h.b16 %v1480
      %v2959 = vunpack.c.l.b16 %v1481
      %v2960 = vunpack.c.l.b16 %v1482
      %v2961 = vunpack.c.h.b16 %v1482
      %v2962 = vunpack.c.l.b16 %v1483
      %v2963 = vunpack.c.h.b16 %v1483
      %v2964 = vunpack.c.l.b16 %v1484
      %v2965 = vunpack.c.l.b16 %v1485
      %v2966 = vunpack.c.h.b16 %v1485
      %v2967 = vunpack.c.l.b16 %v1486
      %v2968 = vunpack.c.h.b16 %v1486
      %v2969 = vunpack.c.l.b16 %v1487
      %v2970 = vunpack.c.l.b16 %v1488
      %v2971 = vunpack.c.h.b16 %v1488
      %v2972 = vunpack.c.l.b16 %v1489
      %v2973 = vunpack.c.h.b16 %v1489
      %v2974 = vunpack.c.l.b16 %v1490
      %v2975 = vunpack.c.l.b16 %v1491
      %v2976 = vunpack.c.h.b16 %v1491
      %v2977 = vunpack.c.l.b16 %v1492
      %v2978 = vunpack.c.h.b16 %v1492
      %v2979 = vunpack.c.l.b16 %v1493
      %v2980 = vunpack.c.l.b16 %v1494
      %v2981 = vunpack.c.h.b16 %v1494
      %v2982 = vunpack.c.l.b16 %v1495
      %v2983 = vunpack.c.h.b16 %v1495
      %v2984 = vunpack.c.l.b16 %v1496
      %v2985 = vunpack.c.l.b16 %v1497
      %v2986 = vunpack.c.h.b16 %v1497
      %v2987 = vunpack.c.l.b16 %v1498
      %v2988 = vunpack.c.h.b16 %v1498
      %v2989 = vunpack.c.l.b16 %v1499
      %v2990 = vunpack.c.l.b16 %v1500
      %v2991 = vunpack.c.h.b16 %v1500
      %v2992 = vunpack.c.l.b16 %v1501
      %v2993 = vunpack.c.h.b16 %v1501
      %v2994 = vunpack.c.l.b16 %v1502
      %v2995 = vunpack.c.l.b16 %v1503
      %v2996 = vunpack.c.h.b16 %v1503
      %v2997 = vunpack.c.l.b16 %v1504
      %v2998 = vunpack.c.h.b16 %v1504
      %v2999 = vunpack.c.l.b16 %v1505
      %v3000 = vunpack.c.l.b16 %v1506
      %v3001 = vunpack.c.h.b16 %v1506
      %v3002 = vunpack.c.l.b16 %v1507
      %v3003 = vunpack.c.h.b16 %v1507
      %v3004 = vunpack.c.l.b16 %v1508
      %v3005 = vunpack.c.l.b16 %v1509
      %v3006 = vunpack.c.h.b16 %v1509
      %v3007 = vunpack.c.l.b16 %v1510
      %v3008 = vunpack.c.h.b16 %v1510
      %v3009 = vunpack.c.l.b16 %v1511
      %v3010 = vunpack.c.l.b16 %v1512
      %v3011 = vunpack.c.h.b16 %v1512
      %v3012 = vunpack.c.l.b16 %v1513
      %v3013 = vunpack.c.h.b16 %v1513
      %v3014 = vunpack.c.l.b16 %v1514
      %v3015 = vunpack.c.l.b16 %v1515
      %v3016 = vunpack.c.h.b16 %v1515
      %v3017 = vunpack.c.l.b16 %v1516
      %v3018 = vunpack.c.h.b16 %v1516
      %v3019 = vunpack.c.l.b16 %v1517
      %v3020 = vunpack.c.l.b16 %v1518
      %v3021 = vunpack.c.h.b16 %v1518
      %v3022 = vunpack.c.l.b16 %v1519
      %v3023 = vunpack.c.h.b16 %v1519
      %v3024 = vunpack.c.l.b16 %v1520
      %v3025 = vunpack.c.l.b16 %v1521
      %v3026 = vunpack.c.h.b16 %v1521
      %v3027 = vunpack.c.l.b16 %v1522
      %v3028 = vunpack.c.h.b16 %v1522
      %v3029 = vunpack.c.l.b16 %v1523
      %v3030 = vunpack.c.l.b16 %v1524
      %v3031 = vunpack.c.h.b16 %v1524
      %v3032 = vunpack.c.l.b16 %v1525
      %v3033 = vunpack.c.h.b16 %v1525
      %v3034 = vunpack.c.l.b16 %v1526
      %v3035 = vunpack.c.l.b16 %v1527
      %v3036 = vunpack.c.h.b16 %v1527
      %v3037 = vunpack.c.l.b16 %v1528
      %v3038 = vunpack.c.h.b16 %v1528
      %v3039 = vunpack.c.l.b16 %v1529
      %v3040 = vunpack.c.l.b16 %v1530
      %v3041 = vunpack.c.h.b16 %v1530
      %v3042 = vunpack.c.l.b16 %v1531
      %v3043 = vunpack.c.h.b16 %v1531
      %v3044 = vunpack.c.l.b16 %v1532
      %v3045 = vunpack.c.l.b16 %v1533
      %v3046 = vunpack.c.h.b16 %v1533
      %v3047 = vunpack.c.l.b16 %v1534
      %v3048 = vunpack.c.h.b16 %v1534
      %v3049 = vunpack.c.l.b16 %v1535
      %v3050 = vunpack.c.l.b16 %v1536
      %v3051 = vunpack.c.h.b16 %v1536
      %v3052 = vunpack.c.l.b16 %v1537
      %v3053 = vunpack.c.h.b16 %v1537
      %v3054 = vunpack.c.l.b16 %v1538
      %v3055 = vunpack.c.l.b16 %v1539
      %v3056 = vunpack.c.h.b16 %v1539
      %v3057 = vunpack.c.l.b16 %v1540
      %v3058 = vunpack.c.h.b16 %v1540
      %v3059 = vunpack.c.l.b16 %v1541
      %v3060 = vunpack.c.l.b16 %v1542
      %v3061 = vunpack.c.h.b16 %v1542
      %v3062 = vunpack.c.l.b16 %v1543
      %v3063 = vunpack.c.h.b16 %v1543
      %v3064 = vunpack.c.l.b16 %v1544
      %v3065 = vunpack.c.l.b16 %v1545
      %v3066 = vunpack.c.h.b16 %v1545
      %v3067 = vunpack.c.l.b16 %v1546
      %v3068 = vunpack.c.h.b16 %v1546
      %v3069 = vunpack.c.l.b16 %v1547
      %v3070 = vunpack.c.l.b16 %v1548
      %v3071 = vunpack.c.h.b16 %v1548
      %v3072 = vunpack.c.l.b16 %v1549
      %v3073 = vunpack.c.h.b16 %v1549
      %v3074 = vunpack.c.l.b16 %v1550
      %v3075 = vunpack.c.l.b16 %v1551
      %v3076 = vunpack.c.h.b16 %v1551
      %v3077 = vunpack.c.l.b16 %v1552
      %v3078 = vunpack.c.h.b16 %v1552
      %v3079 = vunpack.c.l.b16 %v1553
      %v3080 = vunpack.c.l.b16 %v1554
      %v3081 = vunpack.c.h.b16 %v1554
      %v3082 = vunpack.c.l.b16 %v1555
      %v3083 = vunpack.c.h.b16 %v1555
      %v3084 = vunpack.c.l.b16 %v1556
      %v3085 = vunpack.c.l.b16 %v1557
      %v3086 = vunpack.c.h.b16 %v1557
      %v3087 = vunpack.c.l.b16 %v1558
      %v3088 = vunpack.c.h.b16 %v1558
      %v3089 = vunpack.c.l.b16 %v1559
      %v3090 = vunpack.c.l.b16 %v1560
      %v3091 = vunpack.c.h.b16 %v1560
      %v3092 = vunpack.c.l.b16 %v1561
      %v3093 = vunpack.c.h.b16 %v1561
      %v3094 = vunpack.c.l.b16 %v1562
      %v3095 = vunpack.c.l.b16 %v1563
      %v3096 = vunpack.c.h.b16 %v1563
      %v3097 = vunpack.c.l.b16 %v1564
      %v3098 = vunpack.c.h.b16 %v1564
      %v3099 = vunpack.c.l.b16 %v1565
      %v3100 = vunpack.c.l.b16 %v1566
      %v3101 = vunpack.c.h.b16 %v1566
      %v3102 = vunpack.c.l.b16 %v1567
      %v3103 = vunpack.c.h.b16 %v1567
      %v3104 = vunpack.c.l.b16 %v1568
      %v3105 = vunpack.c.l.b16 %v1569
      %v3106 = vunpack.c.h.b16 %v1569
      %v3107 = vunpack.c.l.b16 %v1570
      %v3108 = vunpack.c.h.b16 %v1570
      %v3109 = vunpack.c.l.b16 %v1571
      %v3110 = vunpack.c.l.b16 %v1572
      %v3111 = vunpack.c.h.b16 %v1572
      %v3112 = vunpack.c.l.b16 %v1573
      %v3113 = vunpack.c.h.b16 %v1573
      %v3114 = vunpack.c.l.b16 %v1574
      %v3115 = vunpack.c.l.b16 %v1575
      %v3116 = vunpack.c.h.b16 %v1575
      %v3117 = vunpack.c.l.b16 %v1576
      %v3118 = vunpack.c.h.b16 %v1576
      %v3119 = vunpack.c.l.b16 %v1577
      %v3120 = vunpack.c.l.b16 %v1578
      %v3121 = vunpack.c.h.b16 %v1578
      %v3122 = vunpack.c.l.b16 %v1579
      %v3123 = vunpack.c.h.b16 %v1579
      %v3124 = vunpack.c.l.b16 %v1580
      %v3125 = vunpack.c.l.b16 %v1581
      %v3126 = vunpack.c.h.b16 %v1581
      %v3127 = vunpack.c.l.b16 %v1582
      %v3128 = vunpack.c.h.b16 %v1582
      %v3129 = vunpack.c.l.b16 %v1583
      %v3130 = vunpack.c.l.b16 %v1584
      %v3131 = vunpack.c.h.b16 %v1584
      %v3132 = vunpack.c.l.b16 %v1585
      %v3133 = vunpack.c.h.b16 %v1585
      %v3134 = vunpack.c.l.b16 %v1586
      %v3135 = vunpack.c.l.b16 %v1587
      %v3136 = vunpack.c.h.b16 %v1587
      %v3137 = vunpack.c.l.b16 %v1588
      %v3138 = vunpack.c.h.b16 %v1588
      %v3139 = vunpack.c.l.b16 %v1589
      %v3140 = vunpack.c.l.b16 %v1590
      %v3141 = vunpack.c.h.b16 %v1590
      %v3142 = vunpack.c.l.b16 %v1591
      %v3143 = vunpack.c.h.b16 %v1591
      %v3144 = vunpack.c.l.b16 %v1592
      %v3145 = vunpack.c.l.b16 %v1593
      %v3146 = vunpack.c.h.b16 %v1593
      %v3147 = vunpack.c.l.b16 %v1594
      %v3148 = vunpack.c.h.b16 %v1594
      %v3149 = vunpack.c.l.b16 %v1595
      %v3150 = vunpack.c.l.b16 %v1596
      %v3151 = vunpack.c.h.b16 %v1596
      %v3152 = vunpack.c.l.b16 %v1597
      %v3153 = vunpack.c.h.b16 %v1597
      %v3154 = vunpack.c.l.b16 %v1598
      %v3155 = vunpack.c.l.b16 %v1599
      %v3156 = vunpack.c.h.b16 %v1599
      %v3157 = vunpack.c.l.b16 %v1600
      %v3158 = vunpack.c.h.b16 %v1600
      %v3159 = vunpack.c.l.b16 %v1601
      %v3160 = vunpack.c.l.b16 %v1602
      %v3161 = vunpack.c.h.b16 %v1602
      %v3162 = vunpack.c.l.b16 %v1603
      %v3163 = vunpack.c.h.b16 %v1603
      %v3164 = vunpack.c.l.b16 %v1604
      %v3165 = vunpack.c.l.b16 %v1605
      %v3166 = vunpack.c.h.b16 %v1605
      %v3167 = vunpack.c.l.b16 %v1606
      %v3168 = vunpack.c.h.b16 %v1606
      %v3169 = vunpack.c.l.b16 %v1607
      %v3170 = vunpack.c.l.b16 %v1608
      %v3171 = vunpack.c.h.b16 %v1608
      %v3172 = vunpack.c.l.b16 %v1609
      %v3173 = vunpack.c.h.b16 %v1609
      %v3174 = vunpack.c.l.b16 %v1610
      %v3175 = vunpack.c.l.b16 %v1611
      %v3176 = vunpack.c.h.b16 %v1611
      %v3177 = vunpack.c.l.b16 %v1612
      %v3178 = vunpack.c.h.b16 %v1612
      %v3179 = vunpack.c.l.b16 %v1613
      %v3180 = vunpack.c.l.b16 %v1614
      %v3181 = vunpack.c.h.b16 %v1614
      %v3182 = vunpack.c.l.b16 %v1615
      %v3183 = vunpack.c.h.b16 %v1615
      %v3184 = vunpack.c.l.b16 %v1616
      %v3185 = vunpack.c.l.b16 %v1617
      %v3186 = vunpack.c.h.b16 %v1617
      %v3187 = vunpack.c.l.b16 %v1618
      %v3188 = vunpack.c.h.b16 %v1618
      %v3189 = vunpack.c.l.b16 %v1619
      %v3190 = vunpack.c.l.b16 %v1620
      %v3191 = vunpack.c.h.b16 %v1620
      %v3192 = vunpack.c.l.b16 %v1621
      %v3193 = vunpack.c.h.b16 %v1621
      %v3194 = vunpack.c.l.b16 %v1622
      %v3195 = vunpack.c.l.b16 %v1623
      %v3196 = vunpack.c.h.b16 %v1623
      %v3197 = vunpack.c.l.b16 %v1624
      %v3198 = vunpack.c.h.b16 %v1624
      %v3199 = vunpack.c.l.b16 %v1625
      %v3200 = vunpack.c.l.b16 %v1626
      %v3201 = vunpack.c.h.b16 %v1626
      %v3202 = vunpack.c.l.b16 %v1627
      %v3203 = vunpack.c.h.b16 %v1627
      %v3204 = vunpack.c.l.b16 %v1628
      %v3205 = vunpack.c.l.b16 %v1629
      %v3206 = vunpack.c.h.b16 %v1629
      %v3207 = vunpack.c.l.b16 %v1630
      %v3208 = vunpack.c.h.b16 %v1630
      %v3209 = vunpack.c.l.b16 %v1631
      %v3210 = vunpack.c.l.b16 %v1632
      %v3211 = vunpack.c.h.b16 %v1632
      %v3212 = vunpack.c.l.b16 %v1633
      %v3213 = vunpack.c.h.b16 %v1633
      %v3214 = vunpack.c.l.b16 %v1634
      %v3215 = vunpack.c.l.b16 %v1635
      %v3216 = vunpack.c.h.b16 %v1635
      %v3217 = vunpack.c.l.b16 %v1636
      %v3218 = vunpack.c.h.b16 %v1636
      %v3219 = vunpack.c.l.b16 %v1637
      %v3220 = vunpack.c.l.b16 %v1638
      %v3221 = vunpack.c.h.b16 %v1638
      %v3222 = vunpack.c.l.b16 %v1639
      %v3223 = vunpack.c.h.b16 %v1639
      %v3224 = vunpack.c.l.b16 %v1640
      %v3225 = vunpack.c.l.b16 %v1641
      %v3226 = vunpack.c.h.b16 %v1641
      %v3227 = vunpack.c.l.b16 %v1642
      %v3228 = vunpack.c.h.b16 %v1642
      %v3229 = vunpack.c.l.b16 %v1643
      %v3230 = vunpack.c.l.b16 %v1644
      %v3231 = vunpack.c.h.b16 %v1644
      %v3232 = vunpack.c.l.b16 %v1645
      %v3233 = vunpack.c.h.b16 %v1645
      %v3234 = vunpack.c.l.b16 %v1646
      %v3235 = vunpack.c.l.b16 %v1647
      %v3236 = vunpack.c.h.b16 %v1647
      %v3237 = vunpack.c.l.b16 %v1648
      %v3238 = vunpack.c.h.b16 %v1648
      %v3239 = vunpack.c.l.b16 %v1649
      %v3240 = vunpack.c.l.b16 %v1650
      %v3241 = vunpack.c.h.b16 %v1650
      %v3242 = vunpack.c.l.b16 %v1651
      %v3243 = vunpack.c.h.b16 %v1651
      %v3244 = vunpack.c.l.b16 %v1652
      %v3245 = vunpack.c.l.b16 %v1653
      %v3246 = vunpack.c.h.b16 %v1653
      %v3247 = vunpack.c.l.b16 %v1654
      %v3248 = vunpack.c.h.b16 %v1654
      %v3249 = vunpack.c.l.b16 %v1655
      %v3250 = vunpack.c.l.b16 %v1656
      %v3251 = vunpack.c.h.b16 %v1656
      %v3252 = vunpack.c.l.b16 %v1657
      %v3253 = vunpack.c.h.b16 %v1657
      %v3254 = vunpack.c.l.b16 %v1658
      %v3255 = vunpack.c.l.b16 %v1659
      %v3256 = vunpack.c.h.b16 %v1659
      %v3257 = vunpack.c.l.b16 %v1660
      %v3258 = vunpack.c.h.b16 %v1660
      %v3259 = vunpack.c.l.b16 %v1661
      %v3260 = vunpack.c.l.b16 %v1662
      %v3261 = vunpack.c.h.b16 %v1662
      %v3262 = vunpack.c.l.b16 %v1663
      %v3263 = vunpack.c.h.b16 %v1663
      %v3264 = vunpack.c.l.b16 %v1664
      %v3265 = vunpack.c.l.b16 %v1665
      %v3266 = vunpack.c.h.b16 %v1665
      %v3267 = vunpack.c.l.b16 %v1666
      %v3268 = vunpack.c.h.b16 %v1666
      %v3269 = vunpack.c.l.b16 %v1667
      %v3270 = vunpack.c.l.b16 %v1668
      %v3271 = vunpack.c.h.b16 %v1668
      %v3272 = vunpack.c.l.b16 %v1669
      %v3273 = vunpack.c.h.b16 %v1669
      %v3274 = vunpack.c.l.b16 %v1670
      %v3275 = vunpack.c.l.b16 %v1671
      %v3276 = vunpack.c.h.b16 %v1671
      %v3277 = vunpack.c.l.b16 %v1672
      %v3278 = vunpack.c.h.b16 %v1672
      %v3279 = vunpack.c.l.b16 %v1673
      %v3280 = vunpack.c.l.b16 %v1674
      %v3281 = vunpack.c.h.b16 %v1674
      %v3282 = vunpack.c.l.b16 %v1675
      %v3283 = vunpack.c.h.b16 %v1675
      %v3284 = vunpack.c.l.b16 %v1676
      %v3285 = vunpack.c.l.b16 %v1677
      %v3286 = vunpack.c.h.b16 %v1677
      %v3287 = vunpack.c.l.b16 %v1678
      %v3288 = vunpack.c.h.b16 %v1678
      %v3289 = vunpack.c.l.b16 %v1679
      %v3290 = vunpack.c.l.b16 %v1680
      %v3291 = vunpack.c.h.b16 %v1680
      %v3292 = vunpack.c.l.b16 %v1681
      %v3293 = vunpack.c.h.b16 %v1681
      %v3294 = vunpack.c.l.b16 %v1682
      %v3295 = vunpack.c.l.b16 %v1683
      %v3296 = vunpack.c.h.b16 %v1683
      %v3297 = vunpack.c.l.b16 %v1684
      %v3298 = vunpack.c.h.b16 %v1684
      %v3299 = vunpack.c.l.b16 %v1685
      %v3300 = vunpack.c.l.b16 %v1686
      %v3301 = vunpack.c.h.b16 %v1686
      %v3302 = vunpack.c.l.b16 %v1687
      %v3303 = vunpack.c.h.b16 %v1687
      %v3304 = vunpack.c.l.b16 %v1688
      %v3305 = vunpack.c.l.b16 %v1689
      %v3306 = vunpack.c.h.b16 %v1689
      %v3307 = vunpack.c.l.b16 %v1690
      %v3308 = vunpack.c.h.b16 %v1690
      %v3309 = vunpack.c.l.b16 %v1691
      %v3310 = vunpack.c.l.b16 %v1692
      %v3311 = vunpack.c.h.b16 %v1692
      %v3312 = vunpack.c.l.b16 %v1693
      %v3313 = vunpack.c.h.b16 %v1693
      %v3314 = vunpack.c.l.b16 %v1694
      %v3315 = vunpack.c.l.b16 %v1695
      %v3316 = vunpack.c.h.b16 %v1695
      %v3317 = vunpack.c.l.b16 %v1696
      %v3318 = vunpack.c.h.b16 %v1696
      %v3319 = vunpack.c.l.b16 %v1697
      %v3320 = vunpack.c.l.b16 %v1698
      %v3321 = vunpack.c.h.b16 %v1698
      %v3322 = vunpack.c.l.b16 %v1699
      %v3323 = vunpack.c.h.b16 %v1699
      %v3324 = vunpack.c.l.b16 %v1700
      %v3325 = vunpack.c.l.b16 %v1701
      %v3326 = vunpack.c.h.b16 %v1701
      %v3327 = vunpack.c.l.b16 %v1702
      %v3328 = vunpack.c.h.b16 %v1702
      %v3329 = vunpack.c.l.b16 %v1703
      %v3330 = vunpack.c.l.b16 %v1704
      %v3331 = vunpack.c.h.b16 %v1704
      %v3332 = vunpack.c.l.b16 %v1705
      %v3333 = vunpack.c.h.b16 %v1705
      %v3334 = vunpack.c.l.b16 %v1706
      %v3335 = vunpack.c.l.b16 %v1707
      %v3336 = vunpack.c.h.b16 %v1707
      %v3337 = vunpack.c.l.b16 %v1708
      %v3338 = vunpack.c.h.b16 %v1708
      %v3339 = vunpack.c.l.b16 %v1709
      %v3340 = vunpack.c.l.b16 %v1710
      %v3341 = vunpack.c.h.b16 %v1710
      %v3342 = vunpack.c.l.b16 %v1711
      %v3343 = vunpack.c.h.b16 %v1711
      %v3344 = vunpack.c.l.b16 %v1712
      %v3345 = vunpack.c.l.b16 %v1713
      %v3346 = vunpack.c.h.b16 %v1713
      %v3347 = vunpack.c.l.b16 %v1714
      %v3348 = vunpack.c.h.b16 %v1714
      %v3349 = vunpack.c.l.b16 %v1715
      %v3350 = vunpack.c.l.b16 %v1716
      %v3351 = vunpack.c.h.b16 %v1716
      %v3352 = vunpack.c.l.b16 %v1717
      %v3353 = vunpack.c.h.b16 %v1717
      %v3354 = vunpack.c.l.b16 %v1718
      %v3355 = vunpack.c.l.b16 %v1719
      %v3356 = vunpack.c.h.b16 %v1719
      %v3357 = vunpack.c.l.b16 %v1720
      %v3358 = vunpack.c.h.b16 %v1720
      %v3359 = vunpack.c.l.b16 %v1721
      %v3360 = vunpack.c.l.b16 %v1722
      %v3361 = vunpack.c.h.b16 %v1722
      %v3362 = vunpack.c.l.b16 %v1723
      %v3363 = vunpack.c.h.b16 %v1723
      %v3364 = vunpack.c.l.b16 %v1724
      %v3365 = vunpack.c.l.b16 %v1725
      %v3366 = vunpack.c.h.b16 %v1725
      %v3367 = vunpack.c.l.b16 %v1726
      %v3368 = vunpack.c.h.b16 %v1726
      %v3369 = vunpack.c.l.b16 %v1727
      %v3370 = vunpack.c.l.b16 %v1728
      %v3371 = vunpack.c.h.b16 %v1728
      %v3372 = vunpack.c.l.b16 %v1729
      %v3373 = vunpack.c.h.b16 %v1729
      %v3374 = vunpack.c.l.b16 %v1730
      %v3375 = vunpack.c.l.b16 %v1731
      %v3376 = vunpack.c.h.b16 %v1731
      %v3377 = vunpack.c.l.b16 %v1732
      %v3378 = vunpack.c.h.b16 %v1732
      %v3379 = vunpack.c.l.b16 %v1733
      %v3380 = vunpack.c.l.b16 %v1734
      %v3381 = vunpack.c.h.b16 %v1734
      %v3382 = vunpack.c.l.b16 %v1735
      %v3383 = vunpack.c.h.b16 %v1735
      %v3384 = vunpack.c.l.b16 %v1736
      %v3385 = vunpack.c.l.b16 %v1737
      %v3386 = vunpack.c.h.b16 %v1737
      %v3387 = vunpack.c.l.b16 %v1738
      %v3388 = vunpack.c.h.b16 %v1738
      %v3389 = vunpack.c.l.b16 %v1739
      %v3390 = vunpack.c.l.b16 %v1740
      %v3391 = vunpack.c.h.b16 %v1740
      %v3392 = vunpack.c.l.b16 %v1741
      %v3393 = vunpack.c.h.b16 %v1741
      %v3394 = vunpack.c.l.b16 %v1742
      %v3395 = vunpack.c.l.b16 %v1743
      %v3396 = vunpack.c.h.b16 %v1743
      %v3397 = vunpack.c.l.b16 %v1744
      %v3398 = vunpack.c.h.b16 %v1744
      %v3399 = vunpack.c.l.b16 %v1745
      %v3400 = vunpack.c.l.b16 %v1746
      %v3401 = vunpack.c.h.b16 %v1746
      %v3402 = vunpack.c.l.b16 %v1747
      %v3403 = vunpack.c.h.b16 %v1747
      %v3404 = vunpack.c.l.b16 %v1748
      %v3405 = vunpack.c.l.b16 %v1749
      %v3406 = vunpack.c.h.b16 %v1749
      %v3407 = vunpack.c.l.b16 %v1750
      %v3408 = vunpack.c.h.b16 %v1750
      %v3409 = vunpack.c.l.b16 %v1751
      %v3410 = vunpack.c.l.b16 %v1752
      %v3411 = vunpack.c.h.b16 %v1752
      %v3412 = vunpack.c.l.b16 %v1753
      %v3413 = vunpack.c.h.b16 %v1753
      %v3414 = vunpack.c.l.b16 %v1754
      %v3415 = vunpack.c.l.b16 %v1755
      %v3416 = vunpack.c.h.b16 %v1755
      %v3417 = vunpack.c.l.b16 %v1756
      %v3418 = vunpack.c.h.b16 %v1756
      %v3419 = vunpack.c.l.b16 %v1757
      %v3420 = vunpack.c.l.b16 %v1758
      %v3421 = vunpack.c.h.b16 %v1758
      %v3422 = vunpack.c.l.b16 %v1759
      %v3423 = vunpack.c.h.b16 %v1759
      %v3424 = vunpack.c.l.b16 %v1760
      %v3425 = vunpack.c.l.b16 %v1761
      %v3426 = vunpack.c.h.b16 %v1761
      %v3427 = vunpack.c.l.b16 %v1762
      %v3428 = vunpack.c.h.b16 %v1762
      %v3429 = vunpack.c.l.b16 %v1763
      %v3430 = vunpack.c.l.b16 %v1764
      %v3431 = vunpack.c.h.b16 %v1764
      %v3432 = vunpack.c.l.b16 %v1765
      %v3433 = vunpack.c.h.b16 %v1765
      %v3434 = vunpack.c.l.b16 %v1766
      %v3435 = vpack.c.b16 %v2800, %v2795
      %v3436 = vpack.c.b16 %v2801, %v2796
      %v3437 = vpack.c.b16 %v2802, %v2797
      %v3438 = vpack.c.b16 %v2803, %v2798
      %v3439 = vpack.c.b16 %v2804, %v2799
      %v3440 = vpack.c.b16 %v2810, %v2805
      %v3441 = vpack.c.b16 %v2811, %v2806
      %v3442 = vpack.c.b16 %v2812, %v2807
      %v3443 = vpack.c.b16 %v2813, %v2808
      %v3444 = vpack.c.b16 %v2814, %v2809
      %v3445 = vpack.c.b16 %v2820, %v2815
      %v3446 = vpack.c.b16 %v2821, %v2816
      %v3447 = vpack.c.b16 %v2822, %v2817
      %v3448 = vpack.c.b16 %v2823, %v2818
      %v3449 = vpack.c.b16 %v2824, %v2819
      %v3450 = vpack.c.b16 %v2830, %v2825
      %v3451 = vpack.c.b16 %v2831, %v2826
      %v3452 = vpack.c.b16 %v2832, %v2827
      %v3453 = vpack.c.b16 %v2833, %v2828
      %v3454 = vpack.c.b16 %v2834, %v2829
      %v3455 = vpack.c.b16 %v2840, %v2835
      %v3456 = vpack.c.b16 %v2841, %v2836
      %v3457 = vpack.c.b16 %v2842, %v2837
      %v3458 = vpack.c.b16 %v2843, %v2838
      %v3459 = vpack.c.b16 %v2844, %v2839
      %v3460 = vpack.c.b16 %v2850, %v2845
      %v3461 = vpack.c.b16 %v2851, %v2846
      %v3462 = vpack.c.b16 %v2852, %v2847
      %v3463 = vpack.c.b16 %v2853, %v2848
      %v3464 = vpack.c.b16 %v2854, %v2849
      %v3465 = vpack.c.b16 %v2860, %v2855
      %v3466 = vpack.c.b16 %v2861, %v2856
      %v3467 = vpack.c.b16 %v2862, %v2857
      %v3468 = vpack.c.b16 %v2863, %v2858
      %v3469 = vpack.c.b16 %v2864, %v2859
      %v3470 = vpack.c.b16 %v2870, %v2865
      %v3471 = vpack.c.b16 %v2871, %v2866
      %v3472 = vpack.c.b16 %v2872, %v2867
      %v3473 = vpack.c.b16 %v2873, %v2868
      %v3474 = vpack.c.b16 %v2874, %v2869
      %v3475 = vpack.c.b16 %v2880, %v2875
      %v3476 = vpack.c.b16 %v2881, %v2876
      %v3477 = vpack.c.b16 %v2882, %v2877
      %v3478 = vpack.c.b16 %v2883, %v2878
      %v3479 = vpack.c.b16 %v2884, %v2879
      %v3480 = vpack.c.b16 %v2890, %v2885
      %v3481 = vpack.c.b16 %v2891, %v2886
      %v3482 = vpack.c.b16 %v2892, %v2887
      %v3483 = vpack.c.b16 %v2893, %v2888
      %v3484 = vpack.c.b16 %v2894, %v2889
      %v3485 = vpack.c.b16 %v2900, %v2895
      %v3486 = vpack.c.b16 %v2901, %v2896
      %v3487 = vpack.c.b16 %v2902, %v2897
      %v3488 = vpack.c.b16 %v2903, %v2898
      %v3489 = vpack.c.b16 %v2904, %v2899
      %v3490 = vpack.c.b16 %v2910, %v2905
      %v3491 = vpack.c.b16 %v2911, %v2906
      %v3492 = vpack.c.b16 %v2912, %v2907
      %v3493 = vpack.c.b16 %v2913, %v2908
      %v3494 = vpack.c.b16 %v2914, %v2909
      %v3495 = vpack.c.b16 %v2920, %v2915
      %v3496 = vpack.c.b16 %v2921, %v2916
      %v3497 = vpack.c.b16 %v2922, %v2917
      %v3498 = vpack.c.b16 %v2923, %v2918
      %v3499 = vpack.c.b16 %v2924, %v2919
      %v3500 = vpack.c.b16 %v2930, %v2925
      %v3501 = vpack.c.b16 %v2931, %v2926
      %v3502 = vpack.c.b16 %v2932, %v2927
      %v3503 = vpack.c.b16 %v2933, %v2928
      %v3504 = vpack.c.b16 %v2934, %v2929
      %v3505 = vpack.c.b16 %v2940, %v2935
      %v3506 = vpack.c.b16 %v2941, %v2936
      %v3507 = vpack.c.b16 %v2942, %v2937
      %v3508 = vpack.c.b16 %v2943, %v2938
      %v3509 = vpack.c.b16 %v2944, %v2939
      %v3510 = vpack.c.b16 %v2950, %v2945
      %v3511 = vpack.c.b16 %v2951, %v2946
      %v3512 = vpack.c.b16 %v2952, %v2947
      %v3513 = vpack.c.b16 %v2953, %v2948
      %v3514 = vpack.c.b16 %v2954, %v2949
      %v3515 = vpack.c.b16 %v2960, %v2955
      %v3516 = vpack.c.b16 %v2961, %v2956
      %v3517 = vpack.c.b16 %v2962, %v2957
      %v3518 = vpack.c.b16 %v2963, %v2958
      %v3519 = vpack.c.b16 %v2964, %v2959
      %v3520 = vpack.c.b16 %v2970, %v2965
      %v3521 = vpack.c.b16 %v2971, %v2966
      %v3522 = vpack.c.b16 %v2972, %v2967
      %v3523 = vpack.c.b16 %v2973, %v2968
      %v3524 = vpack.c.b16 %v2974, %v2969
      %v3525 = vpack.c.b16 %v2980, %v2975
      %v3526 = vpack.c.b16 %v2981, %v2976
      %v3527 = vpack.c.b16 %v2982, %v2977
      %v3528 = vpack.c.b16 %v2983, %v2978
      %v3529 = vpack.c.b16 %v2984, %v2979
      %v3530 = vpack.c.b16 %v2990, %v2985
      %v3531 = vpack.c.b16 %v2991, %v2986
      %v3532 = vpack.c.b16 %v2992, %v2987
      %v3533 = vpack.c.b16 %v2993, %v2988
      %v3534 = vpack.c.b16 %v2994, %v2989
      %v3535 = vpack.c.b16 %v3000, %v2995
      %v3536 = vpack.c.b16 %v3001, %v2996
      %v3537 = vpack.c.b16 %v3002, %v2997
      %v3538 = vpack.c.b16 %v3003, %v2998
      %v3539 = vpack.c.b16 %v3004, %v2999
      %v3540 = vpack.c.b16 %v3010, %v3005
      %v3541 = vpack.c.b16 %v3011, %v3006
      %v3542 = vpack.c.b16 %v3012, %v3007
      %v3543 = vpack.c.b16 %v3013, %v3008
      %v3544 = vpack.c.b16 %v3014, %v3009
      %v3545 = vpack.c.b16 %v3020, %v3015
      %v3546 = vpack.c.b16 %v3021, %v3016
      %v3547 = vpack.c.b16 %v3022, %v3017
      %v3548 = vpack.c.b16 %v3023, %v3018
      %v3549 = vpack.c.b16 %v3024, %v3019
      %v3550 = vpack.c.b16 %v3030, %v3025
      %v3551 = vpack.c.b16 %v3031, %v3026
      %v3552 = vpack.c.b16 %v3032, %v3027
      %v3553 = vpack.c.b16 %v3033, %v3028
      %v3554 = vpack.c.b16 %v3034, %v3029
      %v3555 = vpack.c.b16 %v3040, %v3035
      %v3556 = vpack.c.b16 %v3041, %v3036
      %v3557 = vpack.c.b16 %v3042, %v3037
      %v3558 = vpack.c.b16 %v3043, %v3038
      %v3559 = vpack.c.b16 %v3044, %v3039
      %v3560 = vpack.c.b16 %v3050, %v3045
      %v3561 = vpack.c.b16 %v3051, %v3046
      %v3562 = vpack.c.b16 %v3052, %v3047
      %v3563 = vpack.c.b16 %v3053, %v3048
      %v3564 = vpack.c.b16 %v3054, %v3049
      %v3565 = vpack.c.b16 %v3060, %v3055
      %v3566 = vpack.c.b16 %v3061, %v3056
      %v3567 = vpack.c.b16 %v3062, %v3057
      %v3568 = vpack.c.b16 %v3063, %v3058
      %v3569 = vpack.c.b16 %v3064, %v3059
      %v3570 = vpack.c.b16 %v3070, %v3065
      %v3571 = vpack.c.b16 %v3071, %v3066
      %v3572 = vpack.c.b16 %v3072, %v3067
      %v3573 = vpack.c.b16 %v3073, %v3068
      %v3574 = vpack.c.b16 %v3074, %v3069
      %v3575 = vpack.c.b16 %v3080, %v3075
      %v3576 = vpack.c.b16 %v3081, %v3076
      %v3577 = vpack.c.b16 %v3082, %v3077
      %v3578 = vpack.c.b16 %v3083, %v3078
      %v3579 = vpack.c.b16 %v3084, %v3079
      %v3580 = vpack.c.b16 %v3090, %v3085
      %v3581 = vpack.c.b16 %v3091, %v3086
      %v3582 = vpack.c.b16 %v3092, %v3087
      %v3583 = vpack.c.b16 %v3093, %v3088
      %v3584 = vpack.c.b16 %v3094, %v3089
      %v3585 = vpack.c.b16 %v3100, %v3095
      %v3586 = vpack.c.b16 %v3101, %v3096
      %v3587 = vpack.c.b16 %v3102, %v3097
      %v3588 = vpack.c.b16 %v3103, %v3098
      %v3589 = vpack.c.b16 %v3104, %v3099
      %v3590 = vpack.c.b16 %v3110, %v3105
      %v3591 = vpack.c.b16 %v3111, %v3106
      %v3592 = vpack.c.b16 %v3112, %v3107
      %v3593 = vpack.c.b16 %v3113, %v3108
      %v3594 = vpack.c.b16 %v3114, %v3109
      %v3595 = vpack.c.b16 %v3120, %v3115
      %v3596 = vpack.c.b16 %v3121, %v3116
      %v3597 = vpack.c.b16 %v3122, %v3117
      %v3598 = vpack.c.b16 %v3123, %v3118
      %v3599 = vpack.c.b16 %v3124, %v3119
      %v3600 = vpack.c.b16 %v3130, %v3125
      %v3601 = vpack.c.b16 %v3131, %v3126
      %v3602 = vpack.c.b16 %v3132, %v3127
      %v3603 = vpack.c.b16 %v3133, %v3128
      %v3604 = vpack.c.b16 %v3134, %v3129
      %v3605 = vpack.c.b16 %v3140, %v3135
      %v3606 = vpack.c.b16 %v3141, %v3136
      %v3607 = vpack.c.b16 %v3142, %v3137
      %v3608 = vpack.c.b16 %v3143, %v3138
      %v3609 = vpack.c.b16 %v3144, %v3139
      %v3610 = vpack.c.b16 %v3150, %v3145
      %v3611 = vpack.c.b16 %v3151, %v3146
      %v3612 = vpack.c.b16 %v3152, %v3147
      %v3613 = vpack.c.b16 %v3153, %v3148
      %v3614 = vpack.c.b16 %v3154, %v3149
      %v3615 = vpack.c.b16 %v3160, %v3155
      %v3616 = vpack.c.b16 %v3161, %v3156
      %v3617 = vpack.c.b16 %v3162, %v3157
      %v3618 = vpack.c.b16 %v3163, %v3158
      %v3619 = vpack.c.b16 %v3164, %v3159
      %v3620 = vpack.c.b16 %v3170, %v3165
      %v3621 = vpack.c.b16 %v3171, %v3166
      %v3622 = vpack.c.b16 %v3172, %v3167
      %v3623 = vpack.c.b16 %v3173, %v3168
      %v3624 = vpack.c.b16 %v3174, %v3169
      %v3625 = vpack.c.b16 %v3180, %v3175
      %v3626 = vpack.c.b16 %v3181, %v3176
      %v3627 = vpack.c.b16 %v3182, %v3177
      %v3628 = vpack.c.b16 %v3183, %v3178
      %v3629 = vpack.c.b16 %v3184, %v3179
      %v3630 = vpack.c.b16 %v3190, %v3185
      %v3631 = vpack.c.b16 %v3191, %v3186
      %v3632 = vpack.c.b16 %v3192, %v3187
      %v3633 = vpack.c.b16 %v3193, %v3188
      %v3634 = vpack.c.b16 %v3194, %v3189
      %v3635 = vpack.c.b16 %v3200, %v3195
      %v3636 = vpack.c.b16 %v3201, %v3196
      %v3637 = vpack.c.b16 %v3202, %v3197
      %v3638 = vpack.c.b16 %v3203, %v3198
      %v3639 = vpack.c.b16 %v3204, %v3199
      %v3640 = vpack.c.b16 %v3210, %v3205
      %v3641 = vpack.c.b16 %v3211, %v3206
      %v3642 = vpack.c.b16 %v3212, %v3207
      %v3643 = vpack.c.b16 %v3213, %v3208
      %v3644 = vpack.c.b16 %v3214, %v3209
      %v3645 = vpack.c.b16 %v3220, %v3215
      %v3646 = vpack.c.b16 %v3221, %v3216
      %v3647 = vpack.c.b16 %v3222, %v3217
      %v3648 = vpack.c.b16 %v3223, %v3218
      %v3649 = vpack.c.b16 %v3224, %v3219
      %v3650 = vpack.c.b16 %v3230, %v3225
      %v3651 = vpack.c.b16 %v3231, %v3226
      %v3652 = vpack.c.b16 %v3232, %v3227
      %v3653 = vpack.c.b16 %v3233, %v3228
      %v3654 = vpack.c.b16 %v3234, %v3229
      %v3655 = vpack.c.b16 %v3240, %v3235
      %v3656 = vpack.c.b16 %v3241, %v3236
      %v3657 = vpack.c.b16 %v3242, %v3237
      %v3658 = vpack.c.b16 %v3243, %v3238
      %v3659 = vpack.c.b16 %v3244, %v3239
      %v3660 = vpack.c.b16 %v3250, %v3245
      %v3661 = vpack.c.b16 %v3251, %v3246
      %v3662 = vpack.c.b16 %v3252, %v3247
      %v3663 = vpack.c.b16 %v3253, %v3248
      %v3664 = vpack.c.b16 %v3254, %v3249
      %v3665 = vpack.c.b16 %v3260, %v3255
      %v3666 = vpack.c.b16 %v3261, %v3256
      %v3667 = vpack.c.b16 %v3262, %v3257
      %v3668 = vpack.c.b16 %v3263, %v3258
      %v3669 = vpack.c.b16 %v3264, %v3259
      %v3670 = vpack.c.b16 %v3270, %v3265
      %v3671 = vpack.c.b16 %v3271, %v3266
      %v3672 = vpack.c.b16 %v3272, %v3267
      %v3673 = vpack.c.b16 %v3273, %v3268
      %v3674 = vpack.c.b16 %v3274, %v3269
      %v3675 = vpack.c.b16 %v3280, %v3275
      %v3676 = vpack.c.b16 %v3281, %v3276
      %v3677 = vpack.c.b16 %v3282, %v3277
      %v3678 = vpack.c.b16 %v3283, %v3278
      %v3679 = vpack.c.b16 %v3284, %v3279
      %v3680 = vpack.c.b16 %v3290, %v3285
      %v3681 = vpack.c.b16 %v3291, %v3286
      %v3682 = vpack.c.b16 %v3292, %v3287
      %v3683 = vpack.c.b16 %v3293, %v3288
      %v3684 = vpack.c.b16 %v3294, %v3289
      %v3685 = vpack.c.b16 %v3300, %v3295
      %v3686 = vpack.c.b16 %v3301, %v3296
      %v3687 = vpack.c.b16 %v3302, %v3297
      %v3688 = vpack.c.b16 %v3303, %v3298
      %v3689 = vpack.c.b16 %v3304, %v3299
      %v3690 = vpack.c.b16 %v3310, %v3305
      %v3691 = vpack.c.b16 %v3311, %v3306
      %v3692 = vpack.c.b16 %v3312, %v3307
      %v3693 = vpack.c.b16 %v3313, %v3308
      %v3694 = vpack.c.b16 %v3314, %v3309
      %v3695 = vpack.c.b16 %v3320, %v3315
      %v3696 = vpack.c.b16 %v3321, %v3316
      %v3697 = vpack.c.b16 %v3322, %v3317
      %v3698 = vpack.c.b16 %v3323, %v3318
      %v3699 = vpack.c.b16 %v3324, %v3319
      %v3700 = vpack.c.b16 %v3330, %v3325
      %v3701 = vpack.c.b16 %v3331, %v3326
      %v3702 = vpack.c.b16 %v3332, %v3327
      %v3703 = vpack.c.b16 %v3333, %v3328
      %v3704 = vpack.c.b16 %v3334, %v3329
      %v3705 = vpack.c.b16 %v3340, %v3335
      %v3706 = vpack.c.b16 %v3341, %v3336
      %v3707 = vpack.c.b16 %v3342, %v3337
      %v3708 = vpack.c.b16 %v3343, %v3338
      %v3709 = vpack.c.b16 %v3344, %v3339
      %v3710 = vpack.c.b16 %v3350, %v3345
      %v3711 = vpack.c.b16 %v3351, %v3346
      %v3712 = vpack.c.b16 %v3352, %v3347
      %v3713 = vpack.c.b16 %v3353, %v3348
      %v3714 = vpack.c.b16 %v3354, %v3349
      %v3715 = vpack.c.b16 %v3360, %v3355
      %v3716 = vpack.c.b16 %v3361, %v3356
      %v3717 = vpack.c.b16 %v3362, %v3357
      %v3718 = vpack.c.b16 %v3363, %v3358
      %v3719 = vpack.c.b16 %v3364, %v3359
      %v3720 = vpack.c.b16 %v3370, %v3365
      %v3721 = vpack.c.b16 %v3371, %v3366
      %v3722 = vpack.c.b16 %v3372, %v3367
      %v3723 = vpack.c.b16 %v3373, %v3368
      %v3724 = vpack.c.b16 %v3374, %v3369
      %v3725 = vpack.c.b16 %v3380, %v3375
      %v3726 = vpack.c.b16 %v3381, %v3376
      %v3727 = vpack.c.b16 %v3382, %v3377
      %v3728 = vpack.c.b16 %v3383, %v3378
      %v3729 = vpack.c.b16 %v3384, %v3379
      %v3730 = vpack.c.b16 %v3390, %v3385
      %v3731 = vpack.c.b16 %v3391, %v3386
      %v3732 = vpack.c.b16 %v3392, %v3387
      %v3733 = vpack.c.b16 %v3393, %v3388
      %v3734 = vpack.c.b16 %v3394, %v3389
      %v3735 = vpack.c.b16 %v3400, %v3395
      %v3736 = vpack.c.b16 %v3401, %v3396
      %v3737 = vpack.c.b16 %v3402, %v3397
      %v3738 = vpack.c.b16 %v3403, %v3398
      %v3739 = vpack.c.b16 %v3404, %v3399
      %v3740 = vpack.c.b16 %v3410, %v3405
      %v3741 = vpack.c.b16 %v3411, %v3406
      %v3742 = vpack.c.b16 %v3412, %v3407
      %v3743 = vpack.c.b16 %v3413, %v3408
      %v3744 = vpack.c.b16 %v3414, %v3409
      %v3745 = vpack.c.b16 %v3420, %v3415
      %v3746 = vpack.c.b16 %v3421, %v3416
      %v3747 = vpack.c.b16 %v3422, %v3417
      %v3748 = vpack.c.b16 %v3423, %v3418
      %v3749 = vpack.c.b16 %v3424, %v3419
      %v3750 = vpack.c.b16 %v3430, %v3425
      %v3751 = vpack.c.b16 %v3431, %v3426
      %v3752 = vpack.c.b16 %v3432, %v3427
      %v3753 = vpack.c.b16 %v3433, %v3428
      %v3754 = vpack.c.b16 %v3434, %v3429
      %4075 = vmatpush.bf16.msra.mxu0 %v3470
      %4076 = vmatpush.bf16.msra.mxu0 %v3465
      %4077 = vmatpush.bf16.msra.mxu0 %v3460
      %4078 = vmatpush.bf16.msra.mxu0 %v3455
      %4079 = vmatpush.bf16.msra.mxu0 %v3450
      %4080 = vmatpush.bf16.msra.mxu0 %v3445
      %4081 = vmatpush.bf16.msra.mxu0 %v3440
      %4082 = vmatpush.bf16.msra.mxu0 %v3435
      %4083 = vmatmul.bf16.gmra.mxu0 %v1375
      %v4084 = vpop.f32.mrf.mxu0
      %v4085 = vadd.f32 %v2304, %v4084
      %v4086 = vpop.f32.mrf.mxu0
      %4087 = vdwg.mxu0
      %4088 = vmatpush.bf16.msra.mxu0 %v3510
      %4089 = vmatpush.bf16.msra.mxu0 %v3505
      %4090 = vmatpush.bf16.msra.mxu0 %v3500
      %4091 = vmatpush.bf16.msra.mxu0 %v3495
      %4092 = vmatpush.bf16.msra.mxu0 %v3490
      %4093 = vmatpush.bf16.msra.mxu0 %v3485
      %4094 = vmatpush.bf16.msra.mxu0 %v3480
      %4095 = vmatpush.bf16.msra.mxu0 %v3475
      %4096 = vmatmul.bf16.gmra.mxu0 %v1376
      %v4097 = vpop.f32.mrf.mxu0
      %v4098 = vadd.f32 %v4085, %v4097
      %v4099 = vpop.f32.mrf.mxu0
      %4100 = vdwg.mxu0
      %4101 = vmatpush.bf16.msra.mxu0 %v3550
      %4102 = vmatpush.bf16.msra.mxu0 %v3545
      %4103 = vmatpush.bf16.msra.mxu0 %v3540
      %4104 = vmatpush.bf16.msra.mxu0 %v3535
      %4105 = vmatpush.bf16.msra.mxu0 %v3530
      %4106 = vmatpush.bf16.msra.mxu0 %v3525
      %4107 = vmatpush.bf16.msra.mxu0 %v3520
      %4108 = vmatpush.bf16.msra.mxu0 %v3515
      %4109 = vmatmul.bf16.gmra.mxu0 %v1377
      %v4110 = vpop.f32.mrf.mxu0
      %v4111 = vadd.f32 %v4098, %v4110
      %v4112 = vpop.f32.mrf.mxu0
      %4113 = vdwg.mxu0
      %4114 = vmatpush.bf16.msra.mxu0 %v3590
      %4115 = vmatpush.bf16.msra.mxu0 %v3585
      %4116 = vmatpush.bf16.msra.mxu0 %v3580
      %4117 = vmatpush.bf16.msra.mxu0 %v3575
      %4118 = vmatpush.bf16.msra.mxu0 %v3570
      %4119 = vmatpush.bf16.msra.mxu0 %v3565
      %4120 = vmatpush.bf16.msra.mxu0 %v3560
      %4121 = vmatpush.bf16.msra.mxu0 %v3555
      %4122 = vmatmul.bf16.gmra.mxu0 %v1378
      %v4123 = vpop.f32.mrf.mxu0
      %v4124 = vadd.f32 %v4111, %v4123
      %v4125 = vpop.f32.mrf.mxu0
      %4126 = vdwg.mxu0
      %4127 = vmatpush.bf16.msra.mxu0 %v3630
      %4128 = vmatpush.bf16.msra.mxu0 %v3625
      %4129 = vmatpush.bf16.msra.mxu0 %v3620
      %4130 = vmatpush.bf16.msra.mxu0 %v3615
      %4131 = vmatpush.bf16.msra.mxu0 %v3610
      %4132 = vmatpush.bf16.msra.mxu0 %v3605
      %4133 = vmatpush.bf16.msra.mxu0 %v3600
      %4134 = vmatpush.bf16.msra.mxu0 %v3595
      %4135 = vmatmul.bf16.gmra.mxu0 %v1379
      %v4136 = vpop.f32.mrf.mxu0
      %v4137 = vadd.f32 %v4124, %v4136
      %v4138 = vpop.f32.mrf.mxu0
      %4139 = vdwg.mxu0
      %4140 = vmatpush.bf16.msra.mxu0 %v3670
      %4141 = vmatpush.bf16.msra.mxu0 %v3665
      %4142 = vmatpush.bf16.msra.mxu0 %v3660
      %4143 = vmatpush.bf16.msra.mxu0 %v3655
      %4144 = vmatpush.bf16.msra.mxu0 %v3650
      %4145 = vmatpush.bf16.msra.mxu0 %v3645
      %4146 = vmatpush.bf16.msra.mxu0 %v3640
      %4147 = vmatpush.bf16.msra.mxu0 %v3635
      %4148 = vmatmul.bf16.gmra.mxu0 %v1380
      %v4149 = vpop.f32.mrf.mxu0
      %v4150 = vadd.f32 %v4137, %v4149
      %v4151 = vpop.f32.mrf.mxu0
      %4152 = vdwg.mxu0
      %4153 = vmatpush.bf16.msra.mxu0 %v3710
      %4154 = vmatpush.bf16.msra.mxu0 %v3705
      %4155 = vmatpush.bf16.msra.mxu0 %v3700
      %4156 = vmatpush.bf16.msra.mxu0 %v3695
      %4157 = vmatpush.bf16.msra.mxu0 %v3690
      %4158 = vmatpush.bf16.msra.mxu0 %v3685
      %4159 = vmatpush.bf16.msra.mxu0 %v3680
      %4160 = vmatpush.bf16.msra.mxu0 %v3675
      %4161 = vmatmul.bf16.gmra.mxu0 %v1381
      %v4162 = vpop.f32.mrf.mxu0
      %v4163 = vadd.f32 %v4150, %v4162
      %v4164 = vpop.f32.mrf.mxu0
      %4165 = vdwg.mxu0
      %4166 = vmatpush.bf16.msra.mxu0 %v3750
      %4167 = vmatpush.bf16.msra.mxu0 %v3745
      %4168 = vmatpush.bf16.msra.mxu0 %v3740
      %4169 = vmatpush.bf16.msra.mxu0 %v3735
      %4170 = vmatpush.bf16.msra.mxu0 %v3730
      %4171 = vmatpush.bf16.msra.mxu0 %v3725
      %4172 = vmatpush.bf16.msra.mxu0 %v3720
      %4173 = vmatpush.bf16.msra.mxu0 %v3715
      %4174 = vmatmul.bf16.gmra.mxu0 %v1382
      %v4175 = vpop.f32.mrf.mxu0
      %v4176 = vadd.f32 %v4163, %v4175
      %v4177 = vpop.f32.mrf.mxu0
      %4178 = vdwg.mxu0
      %4179 = vmatpush.bf16.msra.mxu0 %v3471
      %4180 = vmatpush.bf16.msra.mxu0 %v3466
      %4181 = vmatpush.bf16.msra.mxu0 %v3461
      %4182 = vmatpush.bf16.msra.mxu0 %v3456
      %4183 = vmatpush.bf16.msra.mxu0 %v3451
      %4184 = vmatpush.bf16.msra.mxu0 %v3446
      %4185 = vmatpush.bf16.msra.mxu0 %v3441
      %4186 = vmatpush.bf16.msra.mxu0 %v3436
      %4187 = vmatmul.bf16.gmra.mxu0 %v1375
      %v4188 = vpop.f32.mrf.mxu0
      %v4189 = vadd.f32 %v2330, %v4188
      %v4190 = vpop.f32.mrf.mxu0
      %4191 = vdwg.mxu0
      %4192 = vmatpush.bf16.msra.mxu0 %v3511
      %4193 = vmatpush.bf16.msra.mxu0 %v3506
      %4194 = vmatpush.bf16.msra.mxu0 %v3501
      %4195 = vmatpush.bf16.msra.mxu0 %v3496
      %4196 = vmatpush.bf16.msra.mxu0 %v3491
      %4197 = vmatpush.bf16.msra.mxu0 %v3486
      %4198 = vmatpush.bf16.msra.mxu0 %v3481
      %4199 = vmatpush.bf16.msra.mxu0 %v3476
      %4200 = vmatmul.bf16.gmra.mxu0 %v1376
      %v4201 = vpop.f32.mrf.mxu0
      %v4202 = vadd.f32 %v4189, %v4201
      %v4203 = vpop.f32.mrf.mxu0
      %4204 = vdwg.mxu0
      %4205 = vmatpush.bf16.msra.mxu0 %v3551
      %4206 = vmatpush.bf16.msra.mxu0 %v3546
      %4207 = vmatpush.bf16.msra.mxu0 %v3541
      %4208 = vmatpush.bf16.msra.mxu0 %v3536
      %4209 = vmatpush.bf16.msra.mxu0 %v3531
      %4210 = vmatpush.bf16.msra.mxu0 %v3526
      %4211 = vmatpush.bf16.msra.mxu0 %v3521
      %4212 = vmatpush.bf16.msra.mxu0 %v3516
      %4213 = vmatmul.bf16.gmra.mxu0 %v1377
      %v4214 = vpop.f32.mrf.mxu0
      %v4215 = vadd.f32 %v4202, %v4214
      %v4216 = vpop.f32.mrf.mxu0
      %4217 = vdwg.mxu0
      %4218 = vmatpush.bf16.msra.mxu0 %v3591
      %4219 = vmatpush.bf16.msra.mxu0 %v3586
      %4220 = vmatpush.bf16.msra.mxu0 %v3581
      %4221 = vmatpush.bf16.msra.mxu0 %v3576
      %4222 = vmatpush.bf16.msra.mxu0 %v3571
      %4223 = vmatpush.bf16.msra.mxu0 %v3566
      %4224 = vmatpush.bf16.msra.mxu0 %v3561
      %4225 = vmatpush.bf16.msra.mxu0 %v3556
      %4226 = vmatmul.bf16.gmra.mxu0 %v1378
      %v4227 = vpop.f32.mrf.mxu0
      %v4228 = vadd.f32 %v4215, %v4227
      %v4229 = vpop.f32.mrf.mxu0
      %4230 = vdwg.mxu0
      %4231 = vmatpush.bf16.msra.mxu0 %v3631
      %4232 = vmatpush.bf16.msra.mxu0 %v3626
      %4233 = vmatpush.bf16.msra.mxu0 %v3621
      %4234 = vmatpush.bf16.msra.mxu0 %v3616
      %4235 = vmatpush.bf16.msra.mxu0 %v3611
      %4236 = vmatpush.bf16.msra.mxu0 %v3606
      %4237 = vmatpush.bf16.msra.mxu0 %v3601
      %4238 = vmatpush.bf16.msra.mxu0 %v3596
      %4239 = vmatmul.bf16.gmra.mxu0 %v1379
      %v4240 = vpop.f32.mrf.mxu0
      %v4241 = vadd.f32 %v4228, %v4240
      %v4242 = vpop.f32.mrf.mxu0
      %4243 = vdwg.mxu0
      %4244 = vmatpush.bf16.msra.mxu0 %v3671
      %4245 = vmatpush.bf16.msra.mxu0 %v3666
      %4246 = vmatpush.bf16.msra.mxu0 %v3661
      %4247 = vmatpush.bf16.msra.mxu0 %v3656
      %4248 = vmatpush.bf16.msra.mxu0 %v3651
      %4249 = vmatpush.bf16.msra.mxu0 %v3646
      %4250 = vmatpush.bf16.msra.mxu0 %v3641
      %4251 = vmatpush.bf16.msra.mxu0 %v3636
      %4252 = vmatmul.bf16.gmra.mxu0 %v1380
      %v4253 = vpop.f32.mrf.mxu0
      %v4254 = vadd.f32 %v4241, %v4253
      %v4255 = vpop.f32.mrf.mxu0
      %4256 = vdwg.mxu0
      %4257 = vmatpush.bf16.msra.mxu0 %v3711
      %4258 = vmatpush.bf16.msra.mxu0 %v3706
      %4259 = vmatpush.bf16.msra.mxu0 %v3701
      %4260 = vmatpush.bf16.msra.mxu0 %v3696
      %4261 = vmatpush.bf16.msra.mxu0 %v3691
      %4262 = vmatpush.bf16.msra.mxu0 %v3686
      %4263 = vmatpush.bf16.msra.mxu0 %v3681
      %4264 = vmatpush.bf16.msra.mxu0 %v3676
      %4265 = vmatmul.bf16.gmra.mxu0 %v1381
      %v4266 = vpop.f32.mrf.mxu0
      %v4267 = vadd.f32 %v4254, %v4266
      %v4268 = vpop.f32.mrf.mxu0
      %4269 = vdwg.mxu0
      %4270 = vmatpush.bf16.msra.mxu0 %v3751
      %4271 = vmatpush.bf16.msra.mxu0 %v3746
      %4272 = vmatpush.bf16.msra.mxu0 %v3741
      %4273 = vmatpush.bf16.msra.mxu0 %v3736
      %4274 = vmatpush.bf16.msra.mxu0 %v3731
      %4275 = vmatpush.bf16.msra.mxu0 %v3726
      %4276 = vmatpush.bf16.msra.mxu0 %v3721
      %4277 = vmatpush.bf16.msra.mxu0 %v3716
      %4278 = vmatmul.bf16.gmra.mxu0 %v1382
      %v4279 = vpop.f32.mrf.mxu0
      %v4280 = vadd.f32 %v4267, %v4279
      %v4281 = vpop.f32.mrf.mxu0
      %4282 = vdwg.mxu0
      %4283 = vmatpush.bf16.msra.mxu0 %v3472
      %4284 = vmatpush.bf16.msra.mxu0 %v3467
      %4285 = vmatpush.bf16.msra.mxu0 %v3462
      %4286 = vmatpush.bf16.msra.mxu0 %v3457
      %4287 = vmatpush.bf16.msra.mxu0 %v3452
      %4288 = vmatpush.bf16.msra.mxu0 %v3447
      %4289 = vmatpush.bf16.msra.mxu0 %v3442
      %4290 = vmatpush.bf16.msra.mxu0 %v3437
      %4291 = vmatmul.bf16.gmra.mxu0 %v1375
      %v4292 = vpop.f32.mrf.mxu0
      %v4293 = vadd.f32 %v2356, %v4292
      %v4294 = vpop.f32.mrf.mxu0
      %4295 = vdwg.mxu0
      %4296 = vmatpush.bf16.msra.mxu0 %v3512
      %4297 = vmatpush.bf16.msra.mxu0 %v3507
      %4298 = vmatpush.bf16.msra.mxu0 %v3502
      %4299 = vmatpush.bf16.msra.mxu0 %v3497
      %4300 = vmatpush.bf16.msra.mxu0 %v3492
      %4301 = vmatpush.bf16.msra.mxu0 %v3487
      %4302 = vmatpush.bf16.msra.mxu0 %v3482
      %4303 = vmatpush.bf16.msra.mxu0 %v3477
      %4304 = vmatmul.bf16.gmra.mxu0 %v1376
      %v4305 = vpop.f32.mrf.mxu0
      %v4306 = vadd.f32 %v4293, %v4305
      %v4307 = vpop.f32.mrf.mxu0
      %4308 = vdwg.mxu0
      %4309 = vmatpush.bf16.msra.mxu0 %v3552
      %4310 = vmatpush.bf16.msra.mxu0 %v3547
      %4311 = vmatpush.bf16.msra.mxu0 %v3542
      %4312 = vmatpush.bf16.msra.mxu0 %v3537
      %4313 = vmatpush.bf16.msra.mxu0 %v3532
      %4314 = vmatpush.bf16.msra.mxu0 %v3527
      %4315 = vmatpush.bf16.msra.mxu0 %v3522
      %4316 = vmatpush.bf16.msra.mxu0 %v3517
      %4317 = vmatmul.bf16.gmra.mxu0 %v1377
      %v4318 = vpop.f32.mrf.mxu0
      %v4319 = vadd.f32 %v4306, %v4318
      %v4320 = vpop.f32.mrf.mxu0
      %4321 = vdwg.mxu0
      %4322 = vmatpush.bf16.msra.mxu0 %v3592
      %4323 = vmatpush.bf16.msra.mxu0 %v3587
      %4324 = vmatpush.bf16.msra.mxu0 %v3582
      %4325 = vmatpush.bf16.msra.mxu0 %v3577
      %4326 = vmatpush.bf16.msra.mxu0 %v3572
      %4327 = vmatpush.bf16.msra.mxu0 %v3567
      %4328 = vmatpush.bf16.msra.mxu0 %v3562
      %4329 = vmatpush.bf16.msra.mxu0 %v3557
      %4330 = vmatmul.bf16.gmra.mxu0 %v1378
      %v4331 = vpop.f32.mrf.mxu0
      %v4332 = vadd.f32 %v4319, %v4331
      %v4333 = vpop.f32.mrf.mxu0
      %4334 = vdwg.mxu0
      %4335 = vmatpush.bf16.msra.mxu0 %v3632
      %4336 = vmatpush.bf16.msra.mxu0 %v3627
      %4337 = vmatpush.bf16.msra.mxu0 %v3622
      %4338 = vmatpush.bf16.msra.mxu0 %v3617
      %4339 = vmatpush.bf16.msra.mxu0 %v3612
      %4340 = vmatpush.bf16.msra.mxu0 %v3607
      %4341 = vmatpush.bf16.msra.mxu0 %v3602
      %4342 = vmatpush.bf16.msra.mxu0 %v3597
      %4343 = vmatmul.bf16.gmra.mxu0 %v1379
      %v4344 = vpop.f32.mrf.mxu0
      %v4345 = vadd.f32 %v4332, %v4344
      %v4346 = vpop.f32.mrf.mxu0
      %4347 = vdwg.mxu0
      %4348 = vmatpush.bf16.msra.mxu0 %v3672
      %4349 = vmatpush.bf16.msra.mxu0 %v3667
      %4350 = vmatpush.bf16.msra.mxu0 %v3662
      %4351 = vmatpush.bf16.msra.mxu0 %v3657
      %4352 = vmatpush.bf16.msra.mxu0 %v3652
      %4353 = vmatpush.bf16.msra.mxu0 %v3647
      %4354 = vmatpush.bf16.msra.mxu0 %v3642
      %4355 = vmatpush.bf16.msra.mxu0 %v3637
      %4356 = vmatmul.bf16.gmra.mxu0 %v1380
      %v4357 = vpop.f32.mrf.mxu0
      %v4358 = vadd.f32 %v4345, %v4357
      %v4359 = vpop.f32.mrf.mxu0
      %4360 = vdwg.mxu0
      %4361 = vmatpush.bf16.msra.mxu0 %v3712
      %4362 = vmatpush.bf16.msra.mxu0 %v3707
      %4363 = vmatpush.bf16.msra.mxu0 %v3702
      %4364 = vmatpush.bf16.msra.mxu0 %v3697
      %4365 = vmatpush.bf16.msra.mxu0 %v3692
      %4366 = vmatpush.bf16.msra.mxu0 %v3687
      %4367 = vmatpush.bf16.msra.mxu0 %v3682
      %4368 = vmatpush.bf16.msra.mxu0 %v3677
      %4369 = vmatmul.bf16.gmra.mxu0 %v1381
      %v4370 = vpop.f32.mrf.mxu0
      %v4371 = vadd.f32 %v4358, %v4370
      %v4372 = vpop.f32.mrf.mxu0
      %4373 = vdwg.mxu0
      %4374 = vmatpush.bf16.msra.mxu0 %v3752
      %4375 = vmatpush.bf16.msra.mxu0 %v3747
      %4376 = vmatpush.bf16.msra.mxu0 %v3742
      %4377 = vmatpush.bf16.msra.mxu0 %v3737
      %4378 = vmatpush.bf16.msra.mxu0 %v3732
      %4379 = vmatpush.bf16.msra.mxu0 %v3727
      %4380 = vmatpush.bf16.msra.mxu0 %v3722
      %4381 = vmatpush.bf16.msra.mxu0 %v3717
      %4382 = vmatmul.bf16.gmra.mxu0 %v1382
      %v4383 = vpop.f32.mrf.mxu0
      %v4384 = vadd.f32 %v4371, %v4383
      %v4385 = vpop.f32.mrf.mxu0
      %4386 = vdwg.mxu0
      %4387 = vmatpush.bf16.msra.mxu0 %v3473
      %4388 = vmatpush.bf16.msra.mxu0 %v3468
      %4389 = vmatpush.bf16.msra.mxu0 %v3463
      %4390 = vmatpush.bf16.msra.mxu0 %v3458
      %4391 = vmatpush.bf16.msra.mxu0 %v3453
      %4392 = vmatpush.bf16.msra.mxu0 %v3448
      %4393 = vmatpush.bf16.msra.mxu0 %v3443
      %4394 = vmatpush.bf16.msra.mxu0 %v3438
      %4395 = vmatmul.bf16.gmra.mxu0 %v1375
      %v4396 = vpop.f32.mrf.mxu0
      %v4397 = vadd.f32 %v2382, %v4396
      %v4398 = vpop.f32.mrf.mxu0
      %4399 = vdwg.mxu0
      %4400 = vmatpush.bf16.msra.mxu0 %v3513
      %4401 = vmatpush.bf16.msra.mxu0 %v3508
      %4402 = vmatpush.bf16.msra.mxu0 %v3503
      %4403 = vmatpush.bf16.msra.mxu0 %v3498
      %4404 = vmatpush.bf16.msra.mxu0 %v3493
      %4405 = vmatpush.bf16.msra.mxu0 %v3488
      %4406 = vmatpush.bf16.msra.mxu0 %v3483
      %4407 = vmatpush.bf16.msra.mxu0 %v3478
      %4408 = vmatmul.bf16.gmra.mxu0 %v1376
      %v4409 = vpop.f32.mrf.mxu0
      %v4410 = vadd.f32 %v4397, %v4409
      %v4411 = vpop.f32.mrf.mxu0
      %4412 = vdwg.mxu0
      %4413 = vmatpush.bf16.msra.mxu0 %v3553
      %4414 = vmatpush.bf16.msra.mxu0 %v3548
      %4415 = vmatpush.bf16.msra.mxu0 %v3543
      %4416 = vmatpush.bf16.msra.mxu0 %v3538
      %4417 = vmatpush.bf16.msra.mxu0 %v3533
      %4418 = vmatpush.bf16.msra.mxu0 %v3528
      %4419 = vmatpush.bf16.msra.mxu0 %v3523
      %4420 = vmatpush.bf16.msra.mxu0 %v3518
      %4421 = vmatmul.bf16.gmra.mxu0 %v1377
      %v4422 = vpop.f32.mrf.mxu0
      %v4423 = vadd.f32 %v4410, %v4422
      %v4424 = vpop.f32.mrf.mxu0
      %4425 = vdwg.mxu0
      %4426 = vmatpush.bf16.msra.mxu0 %v3593
      %4427 = vmatpush.bf16.msra.mxu0 %v3588
      %4428 = vmatpush.bf16.msra.mxu0 %v3583
      %4429 = vmatpush.bf16.msra.mxu0 %v3578
      %4430 = vmatpush.bf16.msra.mxu0 %v3573
      %4431 = vmatpush.bf16.msra.mxu0 %v3568
      %4432 = vmatpush.bf16.msra.mxu0 %v3563
      %4433 = vmatpush.bf16.msra.mxu0 %v3558
      %4434 = vmatmul.bf16.gmra.mxu0 %v1378
      %v4435 = vpop.f32.mrf.mxu0
      %v4436 = vadd.f32 %v4423, %v4435
      %v4437 = vpop.f32.mrf.mxu0
      %4438 = vdwg.mxu0
      %4439 = vmatpush.bf16.msra.mxu0 %v3633
      %4440 = vmatpush.bf16.msra.mxu0 %v3628
      %4441 = vmatpush.bf16.msra.mxu0 %v3623
      %4442 = vmatpush.bf16.msra.mxu0 %v3618
      %4443 = vmatpush.bf16.msra.mxu0 %v3613
      %4444 = vmatpush.bf16.msra.mxu0 %v3608
      %4445 = vmatpush.bf16.msra.mxu0 %v3603
      %4446 = vmatpush.bf16.msra.mxu0 %v3598
      %4447 = vmatmul.bf16.gmra.mxu0 %v1379
      %v4448 = vpop.f32.mrf.mxu0
      %v4449 = vadd.f32 %v4436, %v4448
      %v4450 = vpop.f32.mrf.mxu0
      %4451 = vdwg.mxu0
      %4452 = vmatpush.bf16.msra.mxu0 %v3673
      %4453 = vmatpush.bf16.msra.mxu0 %v3668
      %4454 = vmatpush.bf16.msra.mxu0 %v3663
      %4455 = vmatpush.bf16.msra.mxu0 %v3658
      %4456 = vmatpush.bf16.msra.mxu0 %v3653
      %4457 = vmatpush.bf16.msra.mxu0 %v3648
      %4458 = vmatpush.bf16.msra.mxu0 %v3643
      %4459 = vmatpush.bf16.msra.mxu0 %v3638
      %4460 = vmatmul.bf16.gmra.mxu0 %v1380
      %v4461 = vpop.f32.mrf.mxu0
      %v4462 = vadd.f32 %v4449, %v4461
      %v4463 = vpop.f32.mrf.mxu0
      %4464 = vdwg.mxu0
      %4465 = vmatpush.bf16.msra.mxu0 %v3713
      %4466 = vmatpush.bf16.msra.mxu0 %v3708
      %4467 = vmatpush.bf16.msra.mxu0 %v3703
      %4468 = vmatpush.bf16.msra.mxu0 %v3698
      %4469 = vmatpush.bf16.msra.mxu0 %v3693
      %4470 = vmatpush.bf16.msra.mxu0 %v3688
      %4471 = vmatpush.bf16.msra.mxu0 %v3683
      %4472 = vmatpush.bf16.msra.mxu0 %v3678
      %4473 = vmatmul.bf16.gmra.mxu0 %v1381
      %v4474 = vpop.f32.mrf.mxu0
      %v4475 = vadd.f32 %v4462, %v4474
      %v4476 = vpop.f32.mrf.mxu0
      %4477 = vdwg.mxu0
      %4478 = vmatpush.bf16.msra.mxu0 %v3753
      %4479 = vmatpush.bf16.msra.mxu0 %v3748
      %4480 = vmatpush.bf16.msra.mxu0 %v3743
      %4481 = vmatpush.bf16.msra.mxu0 %v3738
      %4482 = vmatpush.bf16.msra.mxu0 %v3733
      %4483 = vmatpush.bf16.msra.mxu0 %v3728
      %4484 = vmatpush.bf16.msra.mxu0 %v3723
      %4485 = vmatpush.bf16.msra.mxu0 %v3718
      %4486 = vmatmul.bf16.gmra.mxu0 %v1382
      %v4487 = vpop.f32.mrf.mxu0
      %v4488 = vadd.f32 %v4475, %v4487
      %v4489 = vpop.f32.mrf.mxu0
      %4490 = vdwg.mxu0
      %4491 = vmatpush.bf16.msra.mxu0 %v3474
      %4492 = vmatpush.bf16.msra.mxu0 %v3469
      %4493 = vmatpush.bf16.msra.mxu0 %v3464
      %4494 = vmatpush.bf16.msra.mxu0 %v3459
      %4495 = vmatpush.bf16.msra.mxu0 %v3454
      %4496 = vmatpush.bf16.msra.mxu0 %v3449
      %4497 = vmatpush.bf16.msra.mxu0 %v3444
      %4498 = vmatpush.bf16.msra.mxu0 %v3439
      %4499 = vmatmul.bf16.gmra.mxu0 %v1375
      %v4500 = vpop.f32.mrf.mxu0
      %v4501 = vadd.f32 %v2408, %v4500
      %v4502 = vpop.f32.mrf.mxu0
      %4503 = vdwg.mxu0
      %4504 = vmatpush.bf16.msra.mxu0 %v3514
      %4505 = vmatpush.bf16.msra.mxu0 %v3509
      %4506 = vmatpush.bf16.msra.mxu0 %v3504
      %4507 = vmatpush.bf16.msra.mxu0 %v3499
      %4508 = vmatpush.bf16.msra.mxu0 %v3494
      %4509 = vmatpush.bf16.msra.mxu0 %v3489
      %4510 = vmatpush.bf16.msra.mxu0 %v3484
      %4511 = vmatpush.bf16.msra.mxu0 %v3479
      %4512 = vmatmul.bf16.gmra.mxu0 %v1376
      %v4513 = vpop.f32.mrf.mxu0
      %v4514 = vadd.f32 %v4501, %v4513
      %v4515 = vpop.f32.mrf.mxu0
      %4516 = vdwg.mxu0
      %4517 = vmatpush.bf16.msra.mxu0 %v3554
      %4518 = vmatpush.bf16.msra.mxu0 %v3549
      %4519 = vmatpush.bf16.msra.mxu0 %v3544
      %4520 = vmatpush.bf16.msra.mxu0 %v3539
      %4521 = vmatpush.bf16.msra.mxu0 %v3534
      %4522 = vmatpush.bf16.msra.mxu0 %v3529
      %4523 = vmatpush.bf16.msra.mxu0 %v3524
      %4524 = vmatpush.bf16.msra.mxu0 %v3519
      %4525 = vmatmul.bf16.gmra.mxu0 %v1377
      %v4526 = vpop.f32.mrf.mxu0
      %v4527 = vadd.f32 %v4514, %v4526
      %v4528 = vpop.f32.mrf.mxu0
      %4529 = vdwg.mxu0
      %4530 = vmatpush.bf16.msra.mxu0 %v3594
      %4531 = vmatpush.bf16.msra.mxu0 %v3589
      %4532 = vmatpush.bf16.msra.mxu0 %v3584
      %4533 = vmatpush.bf16.msra.mxu0 %v3579
      %4534 = vmatpush.bf16.msra.mxu0 %v3574
      %4535 = vmatpush.bf16.msra.mxu0 %v3569
      %4536 = vmatpush.bf16.msra.mxu0 %v3564
      %4537 = vmatpush.bf16.msra.mxu0 %v3559
      %4538 = vmatmul.bf16.gmra.mxu0 %v1378
      %v4539 = vpop.f32.mrf.mxu0
      %v4540 = vadd.f32 %v4527, %v4539
      %v4541 = vpop.f32.mrf.mxu0
      %4542 = vdwg.mxu0
      %4543 = vmatpush.bf16.msra.mxu0 %v3634
      %4544 = vmatpush.bf16.msra.mxu0 %v3629
      %4545 = vmatpush.bf16.msra.mxu0 %v3624
      %4546 = vmatpush.bf16.msra.mxu0 %v3619
      %4547 = vmatpush.bf16.msra.mxu0 %v3614
      %4548 = vmatpush.bf16.msra.mxu0 %v3609
      %4549 = vmatpush.bf16.msra.mxu0 %v3604
      %4550 = vmatpush.bf16.msra.mxu0 %v3599
      %4551 = vmatmul.bf16.gmra.mxu0 %v1379
      %v4552 = vpop.f32.mrf.mxu0
      %v4553 = vadd.f32 %v4540, %v4552
      %v4554 = vpop.f32.mrf.mxu0
      %4555 = vdwg.mxu0
      %4556 = vmatpush.bf16.msra.mxu0 %v3674
      %4557 = vmatpush.bf16.msra.mxu0 %v3669
      %4558 = vmatpush.bf16.msra.mxu0 %v3664
      %4559 = vmatpush.bf16.msra.mxu0 %v3659
      %4560 = vmatpush.bf16.msra.mxu0 %v3654
      %4561 = vmatpush.bf16.msra.mxu0 %v3649
      %4562 = vmatpush.bf16.msra.mxu0 %v3644
      %4563 = vmatpush.bf16.msra.mxu0 %v3639
      %4564 = vmatmul.bf16.gmra.mxu0 %v1380
      %v4565 = vpop.f32.mrf.mxu0
      %v4566 = vadd.f32 %v4553, %v4565
      %v4567 = vpop.f32.mrf.mxu0
      %4568 = vdwg.mxu0
      %4569 = vmatpush.bf16.msra.mxu0 %v3714
      %4570 = vmatpush.bf16.msra.mxu0 %v3709
      %4571 = vmatpush.bf16.msra.mxu0 %v3704
      %4572 = vmatpush.bf16.msra.mxu0 %v3699
      %4573 = vmatpush.bf16.msra.mxu0 %v3694
      %4574 = vmatpush.bf16.msra.mxu0 %v3689
      %4575 = vmatpush.bf16.msra.mxu0 %v3684
      %4576 = vmatpush.bf16.msra.mxu0 %v3679
      %4577 = vmatmul.bf16.gmra.mxu0 %v1381
      %v4578 = vpop.f32.mrf.mxu0
      %v4579 = vadd.f32 %v4566, %v4578
      %v4580 = vpop.f32.mrf.mxu0
      %4581 = vdwg.mxu0
      %4582 = vmatpush.bf16.msra.mxu0 %v3754
      %4583 = vmatpush.bf16.msra.mxu0 %v3749
      %4584 = vmatpush.bf16.msra.mxu0 %v3744
      %4585 = vmatpush.bf16.msra.mxu0 %v3739
      %4586 = vmatpush.bf16.msra.mxu0 %v3734
      %4587 = vmatpush.bf16.msra.mxu0 %v3729
      %4588 = vmatpush.bf16.msra.mxu0 %v3724
      %4589 = vmatpush.bf16.msra.mxu0 %v3719
      %4590 = vmatmul.bf16.gmra.mxu0 %v1382
      %v4591 = vpop.f32.mrf.mxu0
      %v4592 = vadd.f32 %v4579, %v4591
      %v4593 = vpop.f32.mrf.mxu0
      %4594 = vdwg.mxu0
      %v4595 = vld [vmem:[#allocation23] sm:$0x1f]
      %v4597 = vperm.slane %v4595, 0
      %v4598 = vperm.slane %v4595, 1
      %v4599 = vperm.slane %v4595, 2
      %v4600 = vperm.slane %v4595, 3
      %v4601 = vperm.slane %v4595, 4
      %v4607 = vadd.f32 %v4176, %v4597
      %v4608 = vadd.f32 %v4280, %v4598
      %v4609 = vadd.f32 %v4384, %v4599
      %v4610 = vadd.f32 %v4488, %v4600
      %v4611 = vadd.f32 %v4592, %v4601
      %v4612 = vmax.f32 %v4607, 0.0
      %v4613 = vmax.f32 %v4608, 0.0
      %v4614 = vmax.f32 %v4609, 0.0
      %v4615 = vmax.f32 %v4610, 0.0
      %v4616 = vmax.f32 %v4611, 0.0
      %v4617 = vpack.c.bf16 %v4612, %v4612
      %v4618 = vpack.c.bf16 %v4613, %v4613
      %v4619 = vpack.c.bf16 %v4614, %v4614
      %v4620 = vpack.c.bf16 %v4615, %v4615
      %v4621 = vpack.c.bf16 %v4616, %v4616
      %v4622 = vld [vmem:[%s13] sm:$0xff]
      %v4623 = vld [vmem:[%s13 + $0x8] sm:$0xf]
      %v4624 = vld [vmem:[%s13 + $0xc] sm:$0xff]
      %v4625 = vld [vmem:[%s13 + $0x14] sm:$0xf]
      %v4626 = vld [vmem:[%s13 + $0x18] sm:$0xff]
      %v4627 = vld [vmem:[%s13 + $0x20] sm:$0xf]
      %v4628 = vld [vmem:[%s13 + $0x24] sm:$0xff]
      %v4629 = vld [vmem:[%s13 + $0x2c] sm:$0xf]
      %v4630 = vld [vmem:[%s13 + $0x30] sm:$0xff]
      %v4631 = vld [vmem:[%s13 + $0x38] sm:$0xf]
      %v4632 = vld [vmem:[%s13 + $0x3c] sm:$0xff]
      %v4633 = vld [vmem:[%s13 + $0x44] sm:$0xf]
      %v4634 = vld [vmem:[%s13 + $0x48] sm:$0xff]
      %v4635 = vld [vmem:[%s13 + $0x50] sm:$0xf]
      %v4636 = vld [vmem:[%s13 + $0x54] sm:$0xff]
      %v4637 = vld [vmem:[%s13 + $0x5c] sm:$0xf]
      %v4638 = vld [vmem:[%s13 + $0x60] sm:$0xff]
      %v4639 = vld [vmem:[%s13 + $0x68] sm:$0xf]
      %v4640 = vld [vmem:[%s13 + $0x6c] sm:$0xff]
      %v4641 = vld [vmem:[%s13 + $0x74] sm:$0xf]
      %v4642 = vld [vmem:[%s13 + $0x78] sm:$0xff]
      %v4643 = vld [vmem:[%s13 + $0x80] sm:$0xf]
      %v4644 = vld [vmem:[%s13 + $0x84] sm:$0xff]
      %v4645 = vld [vmem:[%s13 + $0x8c] sm:$0xf]
      %v4646 = vld [vmem:[%s13 + $0x90] sm:$0xff]
      %v4647 = vld [vmem:[%s13 + $0x98] sm:$0xf]
      %v4648 = vld [vmem:[%s13 + $0x9c] sm:$0xff]
      %v4649 = vld [vmem:[%s13 + $0xa4] sm:$0xf]
      %v4650 = vld [vmem:[%s13 + $0xa8] sm:$0xff]
      %v4651 = vld [vmem:[%s13 + $0xb0] sm:$0xf]
      %v4652 = vld [vmem:[%s13 + $0xb4] sm:$0xff]
      %v4653 = vld [vmem:[%s13 + $0xbc] sm:$0xf]
      %v4654 = vld [vmem:[%s13 + $0xc0] sm:$0xff]
      %v4655 = vld [vmem:[%s13 + $0xc8] sm:$0xf]
      %v4656 = vld [vmem:[%s13 + $0xcc] sm:$0xff]
      %v4657 = vld [vmem:[%s13 + $0xd4] sm:$0xf]
      %v4658 = vld [vmem:[%s13 + $0xd8] sm:$0xff]
      %v4659 = vld [vmem:[%s13 + $0xe0] sm:$0xf]
      %v4660 = vld [vmem:[%s13 + $0xe4] sm:$0xff]
      %v4661 = vld [vmem:[%s13 + $0xec] sm:$0xf]
      %v4662 = vld [vmem:[%s13 + $0xf0] sm:$0xff]
      %v4663 = vld [vmem:[%s13 + $0xf8] sm:$0xf]
      %v4664 = vld [vmem:[%s13 + $0xfc] sm:$0xff]
      %v4665 = vld [vmem:[%s13 + $0x104] sm:$0xf]
      %v4666 = vld [vmem:[%s13 + $0x108] sm:$0xff]
      %v4667 = vld [vmem:[%s13 + $0x110] sm:$0xf]
      %v4668 = vld [vmem:[%s13 + $0x114] sm:$0xff]
      %v4669 = vld [vmem:[%s13 + $0x11c] sm:$0xf]
      %v4670 = vld [vmem:[%s13 + $0x120] sm:$0xff]
      %v4671 = vld [vmem:[%s13 + $0x128] sm:$0xf]
      %v4672 = vld [vmem:[%s13 + $0x12c] sm:$0xff]
      %v4673 = vld [vmem:[%s13 + $0x134] sm:$0xf]
      %v4674 = vld [vmem:[%s13 + $0x138] sm:$0xff]
      %v4675 = vld [vmem:[%s13 + $0x140] sm:$0xf]
      %v4676 = vld [vmem:[%s13 + $0x144] sm:$0xff]
      %v4677 = vld [vmem:[%s13 + $0x14c] sm:$0xf]
      %v4678 = vld [vmem:[%s13 + $0x150] sm:$0xff]
      %v4679 = vld [vmem:[%s13 + $0x158] sm:$0xf]
      %v4680 = vld [vmem:[%s13 + $0x15c] sm:$0xff]
      %v4681 = vld [vmem:[%s13 + $0x164] sm:$0xf]
      %v4682 = vld [vmem:[%s13 + $0x168] sm:$0xff]
      %v4683 = vld [vmem:[%s13 + $0x170] sm:$0xf]
      %v4684 = vld [vmem:[%s13 + $0x174] sm:$0xff]
      %v4685 = vld [vmem:[%s13 + $0x17c] sm:$0xf]
      %v4686 = vld [vmem:[%s13 + $0x180] sm:$0xff]
      %v4687 = vld [vmem:[%s13 + $0x188] sm:$0xf]
      %v4688 = vld [vmem:[%s13 + $0x18c] sm:$0xff]
      %v4689 = vld [vmem:[%s13 + $0x194] sm:$0xf]
      %v4690 = vld [vmem:[%s13 + $0x198] sm:$0xff]
      %v4691 = vld [vmem:[%s13 + $0x1a0] sm:$0xf]
      %v4692 = vld [vmem:[%s13 + $0x1a4] sm:$0xff]
      %v4693 = vld [vmem:[%s13 + $0x1ac] sm:$0xf]
      %v4694 = vld [vmem:[%s13 + $0x1b0] sm:$0xff]
      %v4695 = vld [vmem:[%s13 + $0x1b8] sm:$0xf]
      %v4696 = vld [vmem:[%s13 + $0x1bc] sm:$0xff]
      %v4697 = vld [vmem:[%s13 + $0x1c4] sm:$0xf]
      %v4698 = vld [vmem:[%s13 + $0x1c8] sm:$0xff]
      %v4699 = vld [vmem:[%s13 + $0x1d0] sm:$0xf]
      %v4700 = vld [vmem:[%s13 + $0x1d4] sm:$0xff]
      %v4701 = vld [vmem:[%s13 + $0x1dc] sm:$0xf]
      %v4702 = vld [vmem:[%s13 + $0x1e0] sm:$0xff]
      %v4703 = vld [vmem:[%s13 + $0x1e8] sm:$0xf]
      %v4704 = vld [vmem:[%s13 + $0x1ec] sm:$0xff]
      %v4705 = vld [vmem:[%s13 + $0x1f4] sm:$0xf]
      %v4706 = vld [vmem:[%s13 + $0x1f8] sm:$0xff]
      %v4707 = vld [vmem:[%s13 + $0x200] sm:$0xf]
      %v4708 = vld [vmem:[%s13 + $0x204] sm:$0xff]
      %v4709 = vld [vmem:[%s13 + $0x20c] sm:$0xf]
      %v4710 = vld [vmem:[%s13 + $0x210] sm:$0xff]
      %v4711 = vld [vmem:[%s13 + $0x218] sm:$0xf]
      %v4712 = vld [vmem:[%s13 + $0x21c] sm:$0xff]
      %v4713 = vld [vmem:[%s13 + $0x224] sm:$0xf]
      %v4714 = vld [vmem:[%s13 + $0x228] sm:$0xff]
      %v4715 = vld [vmem:[%s13 + $0x230] sm:$0xf]
      %v4716 = vld [vmem:[%s13 + $0x234] sm:$0xff]
      %v4717 = vld [vmem:[%s13 + $0x23c] sm:$0xf]
      %v4718 = vld [vmem:[%s13 + $0x240] sm:$0xff]
      %v4719 = vld [vmem:[%s13 + $0x248] sm:$0xf]
      %v4720 = vld [vmem:[%s13 + $0x24c] sm:$0xff]
      %v4721 = vld [vmem:[%s13 + $0x254] sm:$0xf]
      %v4722 = vld [vmem:[%s13 + $0x258] sm:$0xff]
      %v4723 = vld [vmem:[%s13 + $0x260] sm:$0xf]
      %v4724 = vld [vmem:[%s13 + $0x264] sm:$0xff]
      %v4725 = vld [vmem:[%s13 + $0x26c] sm:$0xf]
      %v4726 = vld [vmem:[%s13 + $0x270] sm:$0xff]
      %v4727 = vld [vmem:[%s13 + $0x278] sm:$0xf]
      %v4728 = vld [vmem:[%s13 + $0x27c] sm:$0xff]
      %v4729 = vld [vmem:[%s13 + $0x284] sm:$0xf]
      %v4730 = vld [vmem:[%s13 + $0x288] sm:$0xff]
      %v4731 = vld [vmem:[%s13 + $0x290] sm:$0xf]
      %v4732 = vld [vmem:[%s13 + $0x294] sm:$0xff]
      %v4733 = vld [vmem:[%s13 + $0x29c] sm:$0xf]
      %v4734 = vld [vmem:[%s13 + $0x2a0] sm:$0xff]
      %v4735 = vld [vmem:[%s13 + $0x2a8] sm:$0xf]
      %v4736 = vld [vmem:[%s13 + $0x2ac] sm:$0xff]
      %v4737 = vld [vmem:[%s13 + $0x2b4] sm:$0xf]
      %v4738 = vld [vmem:[%s13 + $0x2b8] sm:$0xff]
      %v4739 = vld [vmem:[%s13 + $0x2c0] sm:$0xf]
      %v4740 = vld [vmem:[%s13 + $0x2c4] sm:$0xff]
      %v4741 = vld [vmem:[%s13 + $0x2cc] sm:$0xf]
      %v4742 = vld [vmem:[%s13 + $0x2d0] sm:$0xff]
      %v4743 = vld [vmem:[%s13 + $0x2d8] sm:$0xf]
      %v4744 = vld [vmem:[%s13 + $0x2dc] sm:$0xff]
      %v4745 = vld [vmem:[%s13 + $0x2e4] sm:$0xf]
      %v4746 = vld [vmem:[%s13 + $0x2e8] sm:$0xff]
      %v4747 = vld [vmem:[%s13 + $0x2f0] sm:$0xf]
      %v4748 = vld [vmem:[%s13 + $0x2f4] sm:$0xff]
      %v4749 = vld [vmem:[%s13 + $0x2fc] sm:$0xf]
      %v4750 = vld [vmem:[%s13 + $0x300] sm:$0xff]
      %v4751 = vld [vmem:[%s13 + $0x308] sm:$0xf]
      %v4752 = vld [vmem:[%s13 + $0x30c] sm:$0xff]
      %v4753 = vld [vmem:[%s13 + $0x314] sm:$0xf]
      %v4754 = vld [vmem:[%s13 + $0x318] sm:$0xff]
      %v4755 = vld [vmem:[%s13 + $0x320] sm:$0xf]
      %v4756 = vld [vmem:[%s13 + $0x324] sm:$0xff]
      %v4757 = vld [vmem:[%s13 + $0x32c] sm:$0xf]
      %v4758 = vld [vmem:[%s13 + $0x330] sm:$0xff]
      %v4759 = vld [vmem:[%s13 + $0x338] sm:$0xf]
      %v4760 = vld [vmem:[%s13 + $0x33c] sm:$0xff]
      %v4761 = vld [vmem:[%s13 + $0x344] sm:$0xf]
      %v4762 = vld [vmem:[%s13 + $0x348] sm:$0xff]
      %v4763 = vld [vmem:[%s13 + $0x350] sm:$0xf]
      %v4764 = vld [vmem:[%s13 + $0x354] sm:$0xff]
      %v4765 = vld [vmem:[%s13 + $0x35c] sm:$0xf]
      %v4766 = vld [vmem:[%s13 + $0x360] sm:$0xff]
      %v4767 = vld [vmem:[%s13 + $0x368] sm:$0xf]
      %v4768 = vld [vmem:[%s13 + $0x36c] sm:$0xff]
      %v4769 = vld [vmem:[%s13 + $0x374] sm:$0xf]
      %v4770 = vld [vmem:[%s13 + $0x378] sm:$0xff]
      %v4771 = vld [vmem:[%s13 + $0x380] sm:$0xf]
      %v4772 = vld [vmem:[%s13 + $0x384] sm:$0xff]
      %v4773 = vld [vmem:[%s13 + $0x38c] sm:$0xf]
      %v4774 = vld [vmem:[%s13 + $0x390] sm:$0xff]
      %v4775 = vld [vmem:[%s13 + $0x398] sm:$0xf]
      %v4776 = vld [vmem:[%s13 + $0x39c] sm:$0xff]
      %v4777 = vld [vmem:[%s13 + $0x3a4] sm:$0xf]
      %v4778 = vld [vmem:[%s13 + $0x3a8] sm:$0xff]
      %v4779 = vld [vmem:[%s13 + $0x3b0] sm:$0xf]
      %v4780 = vld [vmem:[%s13 + $0x3b4] sm:$0xff]
      %v4781 = vld [vmem:[%s13 + $0x3bc] sm:$0xf]
      %v4782 = vld [vmem:[#allocation24] sm:$0x7]
      %v4784 = vperm.slane %v4782, 0
      %v4785 = vperm.slane %v4782, 1
      %v4786 = vperm.slane %v4782, 2
      %v4950 = vunpack.c.l.b16 %v4622
      %v4951 = vunpack.c.h.b16 %v4622
      %v4952 = vunpack.c.l.b16 %v4623
      %v4953 = vunpack.c.l.b16 %v4624
      %v4954 = vunpack.c.h.b16 %v4624
      %v4955 = vunpack.c.l.b16 %v4625
      %v4956 = vunpack.c.l.b16 %v4626
      %v4957 = vunpack.c.h.b16 %v4626
      %v4958 = vunpack.c.l.b16 %v4627
      %v4959 = vunpack.c.l.b16 %v4628
      %v4960 = vunpack.c.h.b16 %v4628
      %v4961 = vunpack.c.l.b16 %v4629
      %v4962 = vunpack.c.l.b16 %v4630
      %v4963 = vunpack.c.h.b16 %v4630
      %v4964 = vunpack.c.l.b16 %v4631
      %v4965 = vunpack.c.l.b16 %v4632
      %v4966 = vunpack.c.h.b16 %v4632
      %v4967 = vunpack.c.l.b16 %v4633
      %v4968 = vunpack.c.l.b16 %v4634
      %v4969 = vunpack.c.h.b16 %v4634
      %v4970 = vunpack.c.l.b16 %v4635
      %v4971 = vunpack.c.l.b16 %v4636
      %v4972 = vunpack.c.h.b16 %v4636
      %v4973 = vunpack.c.l.b16 %v4637
      %v4974 = vunpack.c.l.b16 %v4638
      %v4975 = vunpack.c.h.b16 %v4638
      %v4976 = vunpack.c.l.b16 %v4639
      %v4977 = vunpack.c.l.b16 %v4640
      %v4978 = vunpack.c.h.b16 %v4640
      %v4979 = vunpack.c.l.b16 %v4641
      %v4980 = vunpack.c.l.b16 %v4642
      %v4981 = vunpack.c.h.b16 %v4642
      %v4982 = vunpack.c.l.b16 %v4643
      %v4983 = vunpack.c.l.b16 %v4644
      %v4984 = vunpack.c.h.b16 %v4644
      %v4985 = vunpack.c.l.b16 %v4645
      %v4986 = vunpack.c.l.b16 %v4646
      %v4987 = vunpack.c.h.b16 %v4646
      %v4988 = vunpack.c.l.b16 %v4647
      %v4989 = vunpack.c.l.b16 %v4648
      %v4990 = vunpack.c.h.b16 %v4648
      %v4991 = vunpack.c.l.b16 %v4649
      %v4992 = vunpack.c.l.b16 %v4650
      %v4993 = vunpack.c.h.b16 %v4650
      %v4994 = vunpack.c.l.b16 %v4651
      %v4995 = vunpack.c.l.b16 %v4652
      %v4996 = vunpack.c.h.b16 %v4652
      %v4997 = vunpack.c.l.b16 %v4653
      %v4998 = vunpack.c.l.b16 %v4654
      %v4999 = vunpack.c.h.b16 %v4654
      %v5000 = vunpack.c.l.b16 %v4655
      %v5001 = vunpack.c.l.b16 %v4656
      %v5002 = vunpack.c.h.b16 %v4656
      %v5003 = vunpack.c.l.b16 %v4657
      %v5004 = vunpack.c.l.b16 %v4658
      %v5005 = vunpack.c.h.b16 %v4658
      %v5006 = vunpack.c.l.b16 %v4659
      %v5007 = vunpack.c.l.b16 %v4660
      %v5008 = vunpack.c.h.b16 %v4660
      %v5009 = vunpack.c.l.b16 %v4661
      %v5010 = vunpack.c.l.b16 %v4662
      %v5011 = vunpack.c.h.b16 %v4662
      %v5012 = vunpack.c.l.b16 %v4663
      %v5013 = vunpack.c.l.b16 %v4664
      %v5014 = vunpack.c.h.b16 %v4664
      %v5015 = vunpack.c.l.b16 %v4665
      %v5016 = vunpack.c.l.b16 %v4666
      %v5017 = vunpack.c.h.b16 %v4666
      %v5018 = vunpack.c.l.b16 %v4667
      %v5019 = vunpack.c.l.b16 %v4668
      %v5020 = vunpack.c.h.b16 %v4668
      %v5021 = vunpack.c.l.b16 %v4669
      %v5022 = vunpack.c.l.b16 %v4670
      %v5023 = vunpack.c.h.b16 %v4670
      %v5024 = vunpack.c.l.b16 %v4671
      %v5025 = vunpack.c.l.b16 %v4672
      %v5026 = vunpack.c.h.b16 %v4672
      %v5027 = vunpack.c.l.b16 %v4673
      %v5028 = vunpack.c.l.b16 %v4674
      %v5029 = vunpack.c.h.b16 %v4674
      %v5030 = vunpack.c.l.b16 %v4675
      %v5031 = vunpack.c.l.b16 %v4676
      %v5032 = vunpack.c.h.b16 %v4676
      %v5033 = vunpack.c.l.b16 %v4677
      %v5034 = vunpack.c.l.b16 %v4678
      %v5035 = vunpack.c.h.b16 %v4678
      %v5036 = vunpack.c.l.b16 %v4679
      %v5037 = vunpack.c.l.b16 %v4680
      %v5038 = vunpack.c.h.b16 %v4680
      %v5039 = vunpack.c.l.b16 %v4681
      %v5040 = vunpack.c.l.b16 %v4682
      %v5041 = vunpack.c.h.b16 %v4682
      %v5042 = vunpack.c.l.b16 %v4683
      %v5043 = vunpack.c.l.b16 %v4684
      %v5044 = vunpack.c.h.b16 %v4684
      %v5045 = vunpack.c.l.b16 %v4685
      %v5046 = vunpack.c.l.b16 %v4686
      %v5047 = vunpack.c.h.b16 %v4686
      %v5048 = vunpack.c.l.b16 %v4687
      %v5049 = vunpack.c.l.b16 %v4688
      %v5050 = vunpack.c.h.b16 %v4688
      %v5051 = vunpack.c.l.b16 %v4689
      %v5052 = vunpack.c.l.b16 %v4690
      %v5053 = vunpack.c.h.b16 %v4690
      %v5054 = vunpack.c.l.b16 %v4691
      %v5055 = vunpack.c.l.b16 %v4692
      %v5056 = vunpack.c.h.b16 %v4692
      %v5057 = vunpack.c.l.b16 %v4693
      %v5058 = vunpack.c.l.b16 %v4694
      %v5059 = vunpack.c.h.b16 %v4694
      %v5060 = vunpack.c.l.b16 %v4695
      %v5061 = vunpack.c.l.b16 %v4696
      %v5062 = vunpack.c.h.b16 %v4696
      %v5063 = vunpack.c.l.b16 %v4697
      %v5064 = vunpack.c.l.b16 %v4698
      %v5065 = vunpack.c.h.b16 %v4698
      %v5066 = vunpack.c.l.b16 %v4699
      %v5067 = vunpack.c.l.b16 %v4700
      %v5068 = vunpack.c.h.b16 %v4700
      %v5069 = vunpack.c.l.b16 %v4701
      %v5070 = vunpack.c.l.b16 %v4702
      %v5071 = vunpack.c.h.b16 %v4702
      %v5072 = vunpack.c.l.b16 %v4703
      %v5073 = vunpack.c.l.b16 %v4704
      %v5074 = vunpack.c.h.b16 %v4704
      %v5075 = vunpack.c.l.b16 %v4705
      %v5076 = vunpack.c.l.b16 %v4706
      %v5077 = vunpack.c.h.b16 %v4706
      %v5078 = vunpack.c.l.b16 %v4707
      %v5079 = vunpack.c.l.b16 %v4708
      %v5080 = vunpack.c.h.b16 %v4708
      %v5081 = vunpack.c.l.b16 %v4709
      %v5082 = vunpack.c.l.b16 %v4710
      %v5083 = vunpack.c.h.b16 %v4710
      %v5084 = vunpack.c.l.b16 %v4711
      %v5085 = vunpack.c.l.b16 %v4712
      %v5086 = vunpack.c.h.b16 %v4712
      %v5087 = vunpack.c.l.b16 %v4713
      %v5088 = vunpack.c.l.b16 %v4714
      %v5089 = vunpack.c.h.b16 %v4714
      %v5090 = vunpack.c.l.b16 %v4715
      %v5091 = vunpack.c.l.b16 %v4716
      %v5092 = vunpack.c.h.b16 %v4716
      %v5093 = vunpack.c.l.b16 %v4717
      %v5094 = vunpack.c.l.b16 %v4718
      %v5095 = vunpack.c.h.b16 %v4718
      %v5096 = vunpack.c.l.b16 %v4719
      %v5097 = vunpack.c.l.b16 %v4720
      %v5098 = vunpack.c.h.b16 %v4720
      %v5099 = vunpack.c.l.b16 %v4721
      %v5100 = vunpack.c.l.b16 %v4722
      %v5101 = vunpack.c.h.b16 %v4722
      %v5102 = vunpack.c.l.b16 %v4723
      %v5103 = vunpack.c.l.b16 %v4724
      %v5104 = vunpack.c.h.b16 %v4724
      %v5105 = vunpack.c.l.b16 %v4725
      %v5106 = vunpack.c.l.b16 %v4726
      %v5107 = vunpack.c.h.b16 %v4726
      %v5108 = vunpack.c.l.b16 %v4727
      %v5109 = vunpack.c.l.b16 %v4728
      %v5110 = vunpack.c.h.b16 %v4728
      %v5111 = vunpack.c.l.b16 %v4729
      %v5112 = vunpack.c.l.b16 %v4730
      %v5113 = vunpack.c.h.b16 %v4730
      %v5114 = vunpack.c.l.b16 %v4731
      %v5115 = vunpack.c.l.b16 %v4732
      %v5116 = vunpack.c.h.b16 %v4732
      %v5117 = vunpack.c.l.b16 %v4733
      %v5118 = vunpack.c.l.b16 %v4734
      %v5119 = vunpack.c.h.b16 %v4734
      %v5120 = vunpack.c.l.b16 %v4735
      %v5121 = vunpack.c.l.b16 %v4736
      %v5122 = vunpack.c.h.b16 %v4736
      %v5123 = vunpack.c.l.b16 %v4737
      %v5124 = vunpack.c.l.b16 %v4738
      %v5125 = vunpack.c.h.b16 %v4738
      %v5126 = vunpack.c.l.b16 %v4739
      %v5127 = vunpack.c.l.b16 %v4740
      %v5128 = vunpack.c.h.b16 %v4740
      %v5129 = vunpack.c.l.b16 %v4741
      %v5130 = vunpack.c.l.b16 %v4742
      %v5131 = vunpack.c.h.b16 %v4742
      %v5132 = vunpack.c.l.b16 %v4743
      %v5133 = vunpack.c.l.b16 %v4744
      %v5134 = vunpack.c.h.b16 %v4744
      %v5135 = vunpack.c.l.b16 %v4745
      %v5136 = vunpack.c.l.b16 %v4746
      %v5137 = vunpack.c.h.b16 %v4746
      %v5138 = vunpack.c.l.b16 %v4747
      %v5139 = vunpack.c.l.b16 %v4748
      %v5140 = vunpack.c.h.b16 %v4748
      %v5141 = vunpack.c.l.b16 %v4749
      %v5142 = vunpack.c.l.b16 %v4750
      %v5143 = vunpack.c.h.b16 %v4750
      %v5144 = vunpack.c.l.b16 %v4751
      %v5145 = vunpack.c.l.b16 %v4752
      %v5146 = vunpack.c.h.b16 %v4752
      %v5147 = vunpack.c.l.b16 %v4753
      %v5148 = vunpack.c.l.b16 %v4754
      %v5149 = vunpack.c.h.b16 %v4754
      %v5150 = vunpack.c.l.b16 %v4755
      %v5151 = vunpack.c.l.b16 %v4756
      %v5152 = vunpack.c.h.b16 %v4756
      %v5153 = vunpack.c.l.b16 %v4757
      %v5154 = vunpack.c.l.b16 %v4758
      %v5155 = vunpack.c.h.b16 %v4758
      %v5156 = vunpack.c.l.b16 %v4759
      %v5157 = vunpack.c.l.b16 %v4760
      %v5158 = vunpack.c.h.b16 %v4760
      %v5159 = vunpack.c.l.b16 %v4761
      %v5160 = vunpack.c.l.b16 %v4762
      %v5161 = vunpack.c.h.b16 %v4762
      %v5162 = vunpack.c.l.b16 %v4763
      %v5163 = vunpack.c.l.b16 %v4764
      %v5164 = vunpack.c.h.b16 %v4764
      %v5165 = vunpack.c.l.b16 %v4765
      %v5166 = vunpack.c.l.b16 %v4766
      %v5167 = vunpack.c.h.b16 %v4766
      %v5168 = vunpack.c.l.b16 %v4767
      %v5169 = vunpack.c.l.b16 %v4768
      %v5170 = vunpack.c.h.b16 %v4768
      %v5171 = vunpack.c.l.b16 %v4769
      %v5172 = vunpack.c.l.b16 %v4770
      %v5173 = vunpack.c.h.b16 %v4770
      %v5174 = vunpack.c.l.b16 %v4771
      %v5175 = vunpack.c.l.b16 %v4772
      %v5176 = vunpack.c.h.b16 %v4772
      %v5177 = vunpack.c.l.b16 %v4773
      %v5178 = vunpack.c.l.b16 %v4774
      %v5179 = vunpack.c.h.b16 %v4774
      %v5180 = vunpack.c.l.b16 %v4775
      %v5181 = vunpack.c.l.b16 %v4776
      %v5182 = vunpack.c.h.b16 %v4776
      %v5183 = vunpack.c.l.b16 %v4777
      %v5184 = vunpack.c.l.b16 %v4778
      %v5185 = vunpack.c.h.b16 %v4778
      %v5186 = vunpack.c.l.b16 %v4779
      %v5187 = vunpack.c.l.b16 %v4780
      %v5188 = vunpack.c.h.b16 %v4780
      %v5189 = vunpack.c.l.b16 %v4781
      %v5190 = vpack.c.b16 %v4953, %v4950
      %v5191 = vpack.c.b16 %v4954, %v4951
      %v5192 = vpack.c.b16 %v4955, %v4952
      %v5193 = vpack.c.b16 %v4959, %v4956
      %v5194 = vpack.c.b16 %v4960, %v4957
      %v5195 = vpack.c.b16 %v4961, %v4958
      %v5196 = vpack.c.b16 %v4965, %v4962
      %v5197 = vpack.c.b16 %v4966, %v4963
      %v5198 = vpack.c.b16 %v4967, %v4964
      %v5199 = vpack.c.b16 %v4971, %v4968
      %v5200 = vpack.c.b16 %v4972, %v4969
      %v5201 = vpack.c.b16 %v4973, %v4970
      %v5202 = vpack.c.b16 %v4977, %v4974
      %v5203 = vpack.c.b16 %v4978, %v4975
      %v5204 = vpack.c.b16 %v4979, %v4976
      %v5205 = vpack.c.b16 %v4983, %v4980
      %v5206 = vpack.c.b16 %v4984, %v4981
      %v5207 = vpack.c.b16 %v4985, %v4982
      %v5208 = vpack.c.b16 %v4989, %v4986
      %v5209 = vpack.c.b16 %v4990, %v4987
      %v5210 = vpack.c.b16 %v4991, %v4988
      %v5211 = vpack.c.b16 %v4995, %v4992
      %v5212 = vpack.c.b16 %v4996, %v4993
      %v5213 = vpack.c.b16 %v4997, %v4994
      %v5214 = vpack.c.b16 %v5001, %v4998
      %v5215 = vpack.c.b16 %v5002, %v4999
      %v5216 = vpack.c.b16 %v5003, %v5000
      %v5217 = vpack.c.b16 %v5007, %v5004
      %v5218 = vpack.c.b16 %v5008, %v5005
      %v5219 = vpack.c.b16 %v5009, %v5006
      %v5220 = vpack.c.b16 %v5013, %v5010
      %v5221 = vpack.c.b16 %v5014, %v5011
      %v5222 = vpack.c.b16 %v5015, %v5012
      %v5223 = vpack.c.b16 %v5019, %v5016
      %v5224 = vpack.c.b16 %v5020, %v5017
      %v5225 = vpack.c.b16 %v5021, %v5018
      %v5226 = vpack.c.b16 %v5025, %v5022
      %v5227 = vpack.c.b16 %v5026, %v5023
      %v5228 = vpack.c.b16 %v5027, %v5024
      %v5229 = vpack.c.b16 %v5031, %v5028
      %v5230 = vpack.c.b16 %v5032, %v5029
      %v5231 = vpack.c.b16 %v5033, %v5030
      %v5232 = vpack.c.b16 %v5037, %v5034
      %v5233 = vpack.c.b16 %v5038, %v5035
      %v5234 = vpack.c.b16 %v5039, %v5036
      %v5235 = vpack.c.b16 %v5043, %v5040
      %v5236 = vpack.c.b16 %v5044, %v5041
      %v5237 = vpack.c.b16 %v5045, %v5042
      %v5238 = vpack.c.b16 %v5049, %v5046
      %v5239 = vpack.c.b16 %v5050, %v5047
      %v5240 = vpack.c.b16 %v5051, %v5048
      %v5241 = vpack.c.b16 %v5055, %v5052
      %v5242 = vpack.c.b16 %v5056, %v5053
      %v5243 = vpack.c.b16 %v5057, %v5054
      %v5244 = vpack.c.b16 %v5061, %v5058
      %v5245 = vpack.c.b16 %v5062, %v5059
      %v5246 = vpack.c.b16 %v5063, %v5060
      %v5247 = vpack.c.b16 %v5067, %v5064
      %v5248 = vpack.c.b16 %v5068, %v5065
      %v5249 = vpack.c.b16 %v5069, %v5066
      %v5250 = vpack.c.b16 %v5073, %v5070
      %v5251 = vpack.c.b16 %v5074, %v5071
      %v5252 = vpack.c.b16 %v5075, %v5072
      %v5253 = vpack.c.b16 %v5079, %v5076
      %v5254 = vpack.c.b16 %v5080, %v5077
      %v5255 = vpack.c.b16 %v5081, %v5078
      %v5256 = vpack.c.b16 %v5085, %v5082
      %v5257 = vpack.c.b16 %v5086, %v5083
      %v5258 = vpack.c.b16 %v5087, %v5084
      %v5259 = vpack.c.b16 %v5091, %v5088
      %v5260 = vpack.c.b16 %v5092, %v5089
      %v5261 = vpack.c.b16 %v5093, %v5090
      %v5262 = vpack.c.b16 %v5097, %v5094
      %v5263 = vpack.c.b16 %v5098, %v5095
      %v5264 = vpack.c.b16 %v5099, %v5096
      %v5265 = vpack.c.b16 %v5103, %v5100
      %v5266 = vpack.c.b16 %v5104, %v5101
      %v5267 = vpack.c.b16 %v5105, %v5102
      %v5268 = vpack.c.b16 %v5109, %v5106
      %v5269 = vpack.c.b16 %v5110, %v5107
      %v5270 = vpack.c.b16 %v5111, %v5108
      %v5271 = vpack.c.b16 %v5115, %v5112
      %v5272 = vpack.c.b16 %v5116, %v5113
      %v5273 = vpack.c.b16 %v5117, %v5114
      %v5274 = vpack.c.b16 %v5121, %v5118
      %v5275 = vpack.c.b16 %v5122, %v5119
      %v5276 = vpack.c.b16 %v5123, %v5120
      %v5277 = vpack.c.b16 %v5127, %v5124
      %v5278 = vpack.c.b16 %v5128, %v5125
      %v5279 = vpack.c.b16 %v5129, %v5126
      %v5280 = vpack.c.b16 %v5133, %v5130
      %v5281 = vpack.c.b16 %v5134, %v5131
      %v5282 = vpack.c.b16 %v5135, %v5132
      %v5283 = vpack.c.b16 %v5139, %v5136
      %v5284 = vpack.c.b16 %v5140, %v5137
      %v5285 = vpack.c.b16 %v5141, %v5138
      %v5286 = vpack.c.b16 %v5145, %v5142
      %v5287 = vpack.c.b16 %v5146, %v5143
      %v5288 = vpack.c.b16 %v5147, %v5144
      %v5289 = vpack.c.b16 %v5151, %v5148
      %v5290 = vpack.c.b16 %v5152, %v5149
      %v5291 = vpack.c.b16 %v5153, %v5150
      %v5292 = vpack.c.b16 %v5157, %v5154
      %v5293 = vpack.c.b16 %v5158, %v5155
      %v5294 = vpack.c.b16 %v5159, %v5156
      %v5295 = vpack.c.b16 %v5163, %v5160
      %v5296 = vpack.c.b16 %v5164, %v5161
      %v5297 = vpack.c.b16 %v5165, %v5162
      %v5298 = vpack.c.b16 %v5169, %v5166
      %v5299 = vpack.c.b16 %v5170, %v5167
      %v5300 = vpack.c.b16 %v5171, %v5168
      %v5301 = vpack.c.b16 %v5175, %v5172
      %v5302 = vpack.c.b16 %v5176, %v5173
      %v5303 = vpack.c.b16 %v5177, %v5174
      %v5304 = vpack.c.b16 %v5181, %v5178
      %v5305 = vpack.c.b16 %v5182, %v5179
      %v5306 = vpack.c.b16 %v5183, %v5180
      %v5307 = vpack.c.b16 %v5187, %v5184
      %v5308 = vpack.c.b16 %v5188, %v5185
      %v5309 = vpack.c.b16 %v5189, %v5186
      %5430 = vmatpush.bf16.msra.mxu0 %v5211
      %5431 = vmatpush.bf16.msra.mxu0 %v5208
      %5432 = vmatpush.bf16.msra.mxu0 %v5205
      %5433 = vmatpush.bf16.msra.mxu0 %v5202
      %5434 = vmatpush.bf16.msra.mxu0 %v5199
      %5435 = vmatpush.bf16.msra.mxu0 %v5196
      %5436 = vmatpush.bf16.msra.mxu0 %v5193
      %5437 = vmatpush.bf16.msra.mxu0 %v5190
      %5438 = vmatmul.bf16.gmra.mxu0 %v4617
      %v5439 = vpop.f32.mrf.mxu0
      %v5440 = vadd.f32 %v4784, %v5439
      %v5441 = vpop.f32.mrf.mxu0
      %5442 = vdwg.mxu0
      %5443 = vmatpush.bf16.msra.mxu0 %v5235
      %5444 = vmatpush.bf16.msra.mxu0 %v5232
      %5445 = vmatpush.bf16.msra.mxu0 %v5229
      %5446 = vmatpush.bf16.msra.mxu0 %v5226
      %5447 = vmatpush.bf16.msra.mxu0 %v5223
      %5448 = vmatpush.bf16.msra.mxu0 %v5220
      %5449 = vmatpush.bf16.msra.mxu0 %v5217
      %5450 = vmatpush.bf16.msra.mxu0 %v5214
      %5451 = vmatmul.bf16.gmra.mxu0 %v4618
      %v5452 = vpop.f32.mrf.mxu0
      %v5453 = vadd.f32 %v5440, %v5452
      %v5454 = vpop.f32.mrf.mxu0
      %5455 = vdwg.mxu0
      %5456 = vmatpush.bf16.msra.mxu0 %v5259
      %5457 = vmatpush.bf16.msra.mxu0 %v5256
      %5458 = vmatpush.bf16.msra.mxu0 %v5253
      %5459 = vmatpush.bf16.msra.mxu0 %v5250
      %5460 = vmatpush.bf16.msra.mxu0 %v5247
      %5461 = vmatpush.bf16.msra.mxu0 %v5244
      %5462 = vmatpush.bf16.msra.mxu0 %v5241
      %5463 = vmatpush.bf16.msra.mxu0 %v5238
      %5464 = vmatmul.bf16.gmra.mxu0 %v4619
      %v5465 = vpop.f32.mrf.mxu0
      %v5466 = vadd.f32 %v5453, %v5465
      %v5467 = vpop.f32.mrf.mxu0
      %5468 = vdwg.mxu0
      %5469 = vmatpush.bf16.msra.mxu0 %v5283
      %5470 = vmatpush.bf16.msra.mxu0 %v5280
      %5471 = vmatpush.bf16.msra.mxu0 %v5277
      %5472 = vmatpush.bf16.msra.mxu0 %v5274
      %5473 = vmatpush.bf16.msra.mxu0 %v5271
      %5474 = vmatpush.bf16.msra.mxu0 %v5268
      %5475 = vmatpush.bf16.msra.mxu0 %v5265
      %5476 = vmatpush.bf16.msra.mxu0 %v5262
      %5477 = vmatmul.bf16.gmra.mxu0 %v4620
      %v5478 = vpop.f32.mrf.mxu0
      %v5479 = vadd.f32 %v5466, %v5478
      %v5480 = vpop.f32.mrf.mxu0
      %5481 = vdwg.mxu0
      %5482 = vmatpush.bf16.msra.mxu0 %v5307
      %5483 = vmatpush.bf16.msra.mxu0 %v5304
      %5484 = vmatpush.bf16.msra.mxu0 %v5301
      %5485 = vmatpush.bf16.msra.mxu0 %v5298
      %5486 = vmatpush.bf16.msra.mxu0 %v5295
      %5487 = vmatpush.bf16.msra.mxu0 %v5292
      %5488 = vmatpush.bf16.msra.mxu0 %v5289
      %5489 = vmatpush.bf16.msra.mxu0 %v5286
      %5490 = vmatmul.bf16.gmra.mxu0 %v4621
      %v5491 = vpop.f32.mrf.mxu0
      %v5492 = vadd.f32 %v5479, %v5491
      %v5493 = vpop.f32.mrf.mxu0
      %5494 = vdwg.mxu0
      %5495 = vmatpush.bf16.msra.mxu0 %v5212
      %5496 = vmatpush.bf16.msra.mxu0 %v5209
      %5497 = vmatpush.bf16.msra.mxu0 %v5206
      %5498 = vmatpush.bf16.msra.mxu0 %v5203
      %5499 = vmatpush.bf16.msra.mxu0 %v5200
      %5500 = vmatpush.bf16.msra.mxu0 %v5197
      %5501 = vmatpush.bf16.msra.mxu0 %v5194
      %5502 = vmatpush.bf16.msra.mxu0 %v5191
      %5503 = vmatmul.bf16.gmra.mxu0 %v4617
      %v5504 = vpop.f32.mrf.mxu0
      %v5505 = vadd.f32 %v4785, %v5504
      %v5506 = vpop.f32.mrf.mxu0
      %5507 = vdwg.mxu0
      %5508 = vmatpush.bf16.msra.mxu0 %v5236
      %5509 = vmatpush.bf16.msra.mxu0 %v5233
      %5510 = vmatpush.bf16.msra.mxu0 %v5230
      %5511 = vmatpush.bf16.msra.mxu0 %v5227
      %5512 = vmatpush.bf16.msra.mxu0 %v5224
      %5513 = vmatpush.bf16.msra.mxu0 %v5221
      %5514 = vmatpush.bf16.msra.mxu0 %v5218
      %5515 = vmatpush.bf16.msra.mxu0 %v5215
      %5516 = vmatmul.bf16.gmra.mxu0 %v4618
      %v5517 = vpop.f32.mrf.mxu0
      %v5518 = vadd.f32 %v5505, %v5517
      %v5519 = vpop.f32.mrf.mxu0
      %5520 = vdwg.mxu0
      %5521 = vmatpush.bf16.msra.mxu0 %v5260
      %5522 = vmatpush.bf16.msra.mxu0 %v5257
      %5523 = vmatpush.bf16.msra.mxu0 %v5254
      %5524 = vmatpush.bf16.msra.mxu0 %v5251
      %5525 = vmatpush.bf16.msra.mxu0 %v5248
      %5526 = vmatpush.bf16.msra.mxu0 %v5245
      %5527 = vmatpush.bf16.msra.mxu0 %v5242
      %5528 = vmatpush.bf16.msra.mxu0 %v5239
      %5529 = vmatmul.bf16.gmra.mxu0 %v4619
      %v5530 = vpop.f32.mrf.mxu0
      %v5531 = vadd.f32 %v5518, %v5530
      %v5532 = vpop.f32.mrf.mxu0
      %5533 = vdwg.mxu0
      %5534 = vmatpush.bf16.msra.mxu0 %v5284
      %5535 = vmatpush.bf16.msra.mxu0 %v5281
      %5536 = vmatpush.bf16.msra.mxu0 %v5278
      %5537 = vmatpush.bf16.msra.mxu0 %v5275
      %5538 = vmatpush.bf16.msra.mxu0 %v5272
      %5539 = vmatpush.bf16.msra.mxu0 %v5269
      %5540 = vmatpush.bf16.msra.mxu0 %v5266
      %5541 = vmatpush.bf16.msra.mxu0 %v5263
      %5542 = vmatmul.bf16.gmra.mxu0 %v4620
      %v5543 = vpop.f32.mrf.mxu0
      %v5544 = vadd.f32 %v5531, %v5543
      %v5545 = vpop.f32.mrf.mxu0
      %5546 = vdwg.mxu0
      %5547 = vmatpush.bf16.msra.mxu0 %v5308
      %5548 = vmatpush.bf16.msra.mxu0 %v5305
      %5549 = vmatpush.bf16.msra.mxu0 %v5302
      %5550 = vmatpush.bf16.msra.mxu0 %v5299
      %5551 = vmatpush.bf16.msra.mxu0 %v5296
      %5552 = vmatpush.bf16.msra.mxu0 %v5293
      %5553 = vmatpush.bf16.msra.mxu0 %v5290
      %5554 = vmatpush.bf16.msra.mxu0 %v5287
      %5555 = vmatmul.bf16.gmra.mxu0 %v4621
      %v5556 = vpop.f32.mrf.mxu0
      %v5557 = vadd.f32 %v5544, %v5556
      %v5558 = vpop.f32.mrf.mxu0
      %5559 = vdwg.mxu0
      %5560 = vmatpush.bf16.msra.mxu0 %v5213
      %5561 = vmatpush.bf16.msra.mxu0 %v5210
      %5562 = vmatpush.bf16.msra.mxu0 %v5207
      %5563 = vmatpush.bf16.msra.mxu0 %v5204
      %5564 = vmatpush.bf16.msra.mxu0 %v5201
      %5565 = vmatpush.bf16.msra.mxu0 %v5198
      %5566 = vmatpush.bf16.msra.mxu0 %v5195
      %5567 = vmatpush.bf16.msra.mxu0 %v5192
      %5568 = vmatmul.bf16.gmra.mxu0 %v4617
      %v5569 = vpop.f32.mrf.mxu0
      %v5570 = vadd.f32 %v4786, %v5569
      %v5571 = vpop.f32.mrf.mxu0
      %5572 = vdwg.mxu0
      %5573 = vmatpush.bf16.msra.mxu0 %v5237
      %5574 = vmatpush.bf16.msra.mxu0 %v5234
      %5575 = vmatpush.bf16.msra.mxu0 %v5231
      %5576 = vmatpush.bf16.msra.mxu0 %v5228
      %5577 = vmatpush.bf16.msra.mxu0 %v5225
      %5578 = vmatpush.bf16.msra.mxu0 %v5222
      %5579 = vmatpush.bf16.msra.mxu0 %v5219
      %5580 = vmatpush.bf16.msra.mxu0 %v5216
      %5581 = vmatmul.bf16.gmra.mxu0 %v4618
      %v5582 = vpop.f32.mrf.mxu0
      %v5583 = vadd.f32 %v5570, %v5582
      %v5584 = vpop.f32.mrf.mxu0
      %5585 = vdwg.mxu0
      %5586 = vmatpush.bf16.msra.mxu0 %v5261
      %5587 = vmatpush.bf16.msra.mxu0 %v5258
      %5588 = vmatpush.bf16.msra.mxu0 %v5255
      %5589 = vmatpush.bf16.msra.mxu0 %v5252
      %5590 = vmatpush.bf16.msra.mxu0 %v5249
      %5591 = vmatpush.bf16.msra.mxu0 %v5246
      %5592 = vmatpush.bf16.msra.mxu0 %v5243
      %5593 = vmatpush.bf16.msra.mxu0 %v5240
      %5594 = vmatmul.bf16.gmra.mxu0 %v4619
      %v5595 = vpop.f32.mrf.mxu0
      %v5596 = vadd.f32 %v5583, %v5595
      %v5597 = vpop.f32.mrf.mxu0
      %5598 = vdwg.mxu0
      %5599 = vmatpush.bf16.msra.mxu0 %v5285
      %5600 = vmatpush.bf16.msra.mxu0 %v5282
      %5601 = vmatpush.bf16.msra.mxu0 %v5279
      %5602 = vmatpush.bf16.msra.mxu0 %v5276
      %5603 = vmatpush.bf16.msra.mxu0 %v5273
      %5604 = vmatpush.bf16.msra.mxu0 %v5270
      %5605 = vmatpush.bf16.msra.mxu0 %v5267
      %5606 = vmatpush.bf16.msra.mxu0 %v5264
      %5607 = vmatmul.bf16.gmra.mxu0 %v4620
      %v5608 = vpop.f32.mrf.mxu0
      %v5609 = vadd.f32 %v5596, %v5608
      %v5610 = vpop.f32.mrf.mxu0
      %5611 = vdwg.mxu0
      %5612 = vmatpush.bf16.msra.mxu0 %v5309
      %5613 = vmatpush.bf16.msra.mxu0 %v5306
      %5614 = vmatpush.bf16.msra.mxu0 %v5303
      %5615 = vmatpush.bf16.msra.mxu0 %v5300
      %5616 = vmatpush.bf16.msra.mxu0 %v5297
      %5617 = vmatpush.bf16.msra.mxu0 %v5294
      %5618 = vmatpush.bf16.msra.mxu0 %v5291
      %5619 = vmatpush.bf16.msra.mxu0 %v5288
      %5620 = vmatmul.bf16.gmra.mxu0 %v4621
      %v5621 = vpop.f32.mrf.mxu0
      %v5622 = vadd.f32 %v5609, %v5621
      %v5623 = vpop.f32.mrf.mxu0
      %5624 = vdwg.mxu0
      %v5625 = vmax.f32 %v5492, 0.0
      %v5626 = vmax.f32 %v5557, 0.0
      %v5627 = vmax.f32 %v5622, 0.0
      %v5628 = vpack.c.bf16 %v5625, %v5625
      %v5629 = vpack.c.bf16 %v5626, %v5626
      %v5630 = vpack.c.bf16 %v5627, %v5627
      %v5631 = vld [vmem:[#allocation26] sm:$0xf]
      %v5632 = vld [vmem:[#allocation26 + $0x4] sm:$0xf]
      %v5633 = vld [vmem:[#allocation26 + $0x8] sm:$0xf]
      %v5634 = vld [vmem:[#allocation26 + $0xc] sm:$0xf]
      %v5635 = vld [vmem:[#allocation26 + $0x10] sm:$0xf]
      %v5636 = vld [vmem:[#allocation26 + $0x14] sm:$0xf]
      %v5637 = vld [vmem:[#allocation26 + $0x18] sm:$0xf]
      %v5638 = vld [vmem:[#allocation26 + $0x1c] sm:$0xf]
      %v5639 = vld [vmem:[#allocation26 + $0x20] sm:$0xf]
      %v5640 = vld [vmem:[#allocation26 + $0x24] sm:$0xf]
      %v5641 = vld [vmem:[#allocation26 + $0x28] sm:$0xf]
      %v5642 = vld [vmem:[#allocation26 + $0x2c] sm:$0xf]
      %v5643 = vld [vmem:[#allocation26 + $0x30] sm:$0xf]
      %v5644 = vld [vmem:[#allocation26 + $0x34] sm:$0xf]
      %v5645 = vld [vmem:[#allocation26 + $0x38] sm:$0xf]
      %v5646 = vld [vmem:[#allocation26 + $0x3c] sm:$0xf]
      %v5647 = vld [vmem:[#allocation26 + $0x40] sm:$0xf]
      %v5648 = vld [vmem:[#allocation26 + $0x44] sm:$0xf]
      %v5649 = vld [vmem:[#allocation26 + $0x48] sm:$0xf]
      %v5650 = vld [vmem:[#allocation26 + $0x4c] sm:$0xf]
      %v5651 = vld [vmem:[#allocation26 + $0x50] sm:$0xf]
      %v5652 = vld [vmem:[#allocation26 + $0x54] sm:$0xf]
      %v5653 = vld [vmem:[#allocation26 + $0x58] sm:$0xf]
      %v5654 = vld [vmem:[#allocation26 + $0x5c] sm:$0xf]
      %v5655 = vld [vmem:[#allocation26 + $0x60] sm:$0xf]
      %v5656 = vld [vmem:[#allocation26 + $0x64] sm:$0xf]
      %v5657 = vld [vmem:[#allocation26 + $0x68] sm:$0xf]
      %v5658 = vld [vmem:[#allocation26 + $0x6c] sm:$0xf]
      %v5659 = vld [vmem:[#allocation26 + $0x70] sm:$0xf]
      %v5660 = vld [vmem:[#allocation26 + $0x74] sm:$0xf]
      %v5661 = vld [vmem:[#allocation26 + $0x78] sm:$0xf]
      %v5662 = vld [vmem:[#allocation26 + $0x7c] sm:$0xf]
      %v5663 = vld [vmem:[#allocation26 + $0x80] sm:$0xf]
      %v5664 = vld [vmem:[#allocation26 + $0x84] sm:$0xf]
      %v5665 = vld [vmem:[#allocation26 + $0x88] sm:$0xf]
      %v5666 = vld [vmem:[#allocation26 + $0x8c] sm:$0xf]
      %v5667 = vld [vmem:[#allocation26 + $0x90] sm:$0xf]
      %v5668 = vld [vmem:[#allocation26 + $0x94] sm:$0xf]
      %v5669 = vld [vmem:[#allocation26 + $0x98] sm:$0xf]
      %v5670 = vld [vmem:[#allocation26 + $0x9c] sm:$0xf]
      %v5671 = vld [vmem:[#allocation27] sm:$0x1]
      %v5673 = vperm.slane %v5671, 0
      %v5715 = vunpack.c.l.b16 %v5631
      %v5716 = vunpack.c.l.b16 %v5632
      %v5717 = vunpack.c.l.b16 %v5633
      %v5718 = vunpack.c.l.b16 %v5634
      %v5719 = vunpack.c.l.b16 %v5635
      %v5720 = vunpack.c.l.b16 %v5636
      %v5721 = vunpack.c.l.b16 %v5637
      %v5722 = vunpack.c.l.b16 %v5638
      %v5723 = vunpack.c.l.b16 %v5639
      %v5724 = vunpack.c.l.b16 %v5640
      %v5725 = vunpack.c.l.b16 %v5641
      %v5726 = vunpack.c.l.b16 %v5642
      %v5727 = vunpack.c.l.b16 %v5643
      %v5728 = vunpack.c.l.b16 %v5644
      %v5729 = vunpack.c.l.b16 %v5645
      %v5730 = vunpack.c.l.b16 %v5646
      %v5731 = vunpack.c.l.b16 %v5647
      %v5732 = vunpack.c.l.b16 %v5648
      %v5733 = vunpack.c.l.b16 %v5649
      %v5734 = vunpack.c.l.b16 %v5650
      %v5735 = vunpack.c.l.b16 %v5651
      %v5736 = vunpack.c.l.b16 %v5652
      %v5737 = vunpack.c.l.b16 %v5653
      %v5738 = vunpack.c.l.b16 %v5654
      %v5739 = vunpack.c.l.b16 %v5655
      %v5740 = vunpack.c.l.b16 %v5656
      %v5741 = vunpack.c.l.b16 %v5657
      %v5742 = vunpack.c.l.b16 %v5658
      %v5743 = vunpack.c.l.b16 %v5659
      %v5744 = vunpack.c.l.b16 %v5660
      %v5745 = vunpack.c.l.b16 %v5661
      %v5746 = vunpack.c.l.b16 %v5662
      %v5747 = vunpack.c.l.b16 %v5663
      %v5748 = vunpack.c.l.b16 %v5664
      %v5749 = vunpack.c.l.b16 %v5665
      %v5750 = vunpack.c.l.b16 %v5666
      %v5751 = vunpack.c.l.b16 %v5667
      %v5752 = vunpack.c.l.b16 %v5668
      %v5753 = vunpack.c.l.b16 %v5669
      %v5754 = vunpack.c.l.b16 %v5670
      %v5755 = vpack.c.b16 %v5716, %v5715
      %v5756 = vpack.c.b16 %v5718, %v5717
      %v5757 = vpack.c.b16 %v5720, %v5719
      %v5758 = vpack.c.b16 %v5722, %v5721
      %v5759 = vpack.c.b16 %v5724, %v5723
      %v5760 = vpack.c.b16 %v5726, %v5725
      %v5761 = vpack.c.b16 %v5728, %v5727
      %v5762 = vpack.c.b16 %v5730, %v5729
      %v5763 = vpack.c.b16 %v5732, %v5731
      %v5764 = vpack.c.b16 %v5734, %v5733
      %v5765 = vpack.c.b16 %v5736, %v5735
      %v5766 = vpack.c.b16 %v5738, %v5737
      %v5767 = vpack.c.b16 %v5740, %v5739
      %v5768 = vpack.c.b16 %v5742, %v5741
      %v5769 = vpack.c.b16 %v5744, %v5743
      %v5770 = vpack.c.b16 %v5746, %v5745
      %v5771 = vpack.c.b16 %v5748, %v5747
      %v5772 = vpack.c.b16 %v5750, %v5749
      %v5773 = vpack.c.b16 %v5752, %v5751
      %v5774 = vpack.c.b16 %v5754, %v5753
      %vm5795 = vcmask 523264
      %v5797 = vsel %vm5795, %v5630, 0
      %5799 = vmatpush.bf16.msra.mxu0 %v5762
      %5800 = vmatpush.bf16.msra.mxu0 %v5761
      %5801 = vmatpush.bf16.msra.mxu0 %v5760
      %5802 = vmatpush.bf16.msra.mxu0 %v5759
      %5803 = vmatpush.bf16.msra.mxu0 %v5758
      %5804 = vmatpush.bf16.msra.mxu0 %v5757
      %5805 = vmatpush.bf16.msra.mxu0 %v5756
      %5806 = vmatpush.bf16.msra.mxu0 %v5755
      %5807 = vmatmul.bf16.gmra.mxu0 %v5628
      %v5808 = vpop.f32.mrf.mxu0
      %v5809 = vadd.f32 %v5673, %v5808
      %v5810 = vpop.f32.mrf.mxu0
      %5811 = vdwg.mxu0
      %5812 = vmatpush.bf16.msra.mxu0 %v5770
      %5813 = vmatpush.bf16.msra.mxu0 %v5769
      %5814 = vmatpush.bf16.msra.mxu0 %v5768
      %5815 = vmatpush.bf16.msra.mxu0 %v5767
      %5816 = vmatpush.bf16.msra.mxu0 %v5766
      %5817 = vmatpush.bf16.msra.mxu0 %v5765
      %5818 = vmatpush.bf16.msra.mxu0 %v5764
      %5819 = vmatpush.bf16.msra.mxu0 %v5763
      %5820 = vmatmul.bf16.gmra.mxu0 %v5629
      %v5821 = vpop.f32.mrf.mxu0
      %v5822 = vadd.f32 %v5809, %v5821
      %v5823 = vpop.f32.mrf.mxu0
      %5824 = vdwg.mxu0
      %5825 = vmatpush.bf16.msra.mxu0 0
      %5826 = vmatpush.bf16.msra.mxu0 0
      %5827 = vmatpush.bf16.msra.mxu0 0
      %5828 = vmatpush.bf16.msra.mxu0 0
      %5829 = vmatpush.bf16.msra.mxu0 %v5774
      %5830 = vmatpush.bf16.msra.mxu0 %v5773
      %5831 = vmatpush.bf16.msra.mxu0 %v5772
      %5832 = vmatpush.bf16.msra.mxu0 %v5771
      %5833 = vmatmul.bf16.gmra.mxu0 %v5797
      %v5834 = vpop.f32.mrf.mxu0
      %v5835 = vadd.f32 %v5822, %v5834
      %v5836 = vpop.f32.mrf.mxu0
      %5837 = vdwg.mxu0
      %5838 = vst [vmem:[#allocation29] sm:$0xff] %v5835
    $region141: #{tpu_custom_call.1} parent=1 // pred_fallthru
      _
    // Predicated region
    $region142: #{tpu_custom_call.1} parent=1 // pred_check
      _
    $region143: #{tpu_custom_call.1} parent=1 // pred_check_branch
      %5840 = sbr.rel (0) target = $region145
    $region144: #{tpu_custom_call.1} parent=1 // pred_region
      %5842 = vsyncadd [#allocation5], 0
      %s5844 = sshll.u32 [#allocation29], 4
      %s5845 = int_to_ptr.vmem [resolvable:$true] %s5844
      %s5846 = sshll.u32 %s17, 4
      %s5847 = int_to_ptr.hbm [resolvable:$true] %s5846
      %5849 = dma.vmem_to_hbm [thread:$0]  %s5845, 128, %s5847, [#allocation5]
    $region145: #{tpu_custom_call.1} parent=1 // pred_fallthru
      _
    // Predicated region
    $region146: #{tpu_custom_call.1} parent=1 // pred_check
      _
    $region147: #{tpu_custom_call.1} parent=1 // pred_check_branch
      %5851 = sbr.rel (0) target = $region149
    $region148: #{tpu_custom_call.1} parent=1 // pred_region
      %5853 = dma.done [#allocation5], 128
    $region149: #{tpu_custom_call.1} parent=1 // pred_fallthru
      _
    %5854 = vsyncpa [#allocation4], 1
    %5855 = vsyncpa [#allocation7], 1
    %5856 = vsyncpa [#allocation10], 1
    %5857 = vsyncpa [#allocation13], 1
    %5858 = vsyncpa [#allocation16], 1
    %5859 = vsyncpa [#allocation19], 1
    %5860 = vsyncpa [#allocation22], 1
    %5861 = vsyncpa [#allocation25], 1
    %5862 = vsyncpa [#allocation28], 1
    %5863 = vsyncpa [#allocation5], 1

</llo_original>
